<compile_context>
chip_gen: v5e
topology: v5e:2x2
jax: 0.10.0
libtpu: 0.0.40
codegen_flags: <defaults>
</compile_context>

<pallas_src>
import functools

import numpy as np
import jax
import jax.numpy as jnp
from jax import lax
from jax.experimental import pallas as pl
from jax.experimental.pallas import tpu as pltpu


# ----------------------------------------------------------------------------
# Pallas kernel: one grid step == one batch tile of B_TILE images.
#   BN1+ReLU -> conv3x3 -> (+BN2 bias)+ReLU -> conv3x3 -> SE gate ->
#   gated multiply -> residual add.
# conv3x3 ("same", no bias) is ONE MXU matmul per conv:
#   out = Wflat @ cat,   Wflat: (C, 9C) bf16,   cat: (9C, B_TILE*HW) bf16
# where cat's 9 row-groups are spatially shifted (pltpu.roll) and
# boundary-masked copies of the activation, streamed into a reused bf16
# VMEM scratch.
# ----------------------------------------------------------------------------
def _res_snet_kernel(x_ref, masks_ref,
                     bn1s_ref, bn1b_ref, w1_ref, b2_ref, w2_ref,
                     f1w_ref, f1b_ref, f2wt_ref, f2b_ref,
                     o_ref, cat_ref, *, W, HW, B_TILE):
    C = x_ref.shape[0]
    N = x_ref.shape[1]                       # = B_TILE * HW, lane-dense
    x = x_ref[...]                           # (C, N) f32

    def conv3x3(h, w_flat_ref):
        # Stream the 9 taps into the shared bf16 scratch, one at a time.
        for ky in range(3):
            for kx in range(3):
                k = ky * 3 + kx
                off = (ky - 1) * W + (kx - 1)        # flat spatial shift
                if off == 0:
                    tap = h                          # center tap, no mask
                else:
                    shift = (-off) % N               # static, non-negative
                    # roll wraps across image/tile edges; the 0/1 mask zeroes
                    # every wrapped / out-of-bounds position.
                    tap = (pltpu.roll(h, shift, axis=1)
                           * masks_ref[pl.ds(k, 1), :])
                cat_ref[pl.ds(k * C, C), :] = tap.astype(jnp.bfloat16)
        # im2col matmul: (C, 9C) @ (9C, N), bf16 operands, f32 accumulation.
        return jnp.dot(w_flat_ref[...], cat_ref[...],
                       preferred_element_type=jnp.float32)       # (C, N) f32

    # BN1 (inference affine) + ReLU, conv1 (BN2 scale folded into weights),
    # BN2 bias + ReLU, conv2.
    h = jnp.maximum(x * bn1s_ref[...] + bn1b_ref[...], 0.0)
    h = conv3x3(h, w1_ref)
    h = jnp.maximum(h + b2_ref[...], 0.0)
    h = conv3x3(h, w2_ref)

    # SNet (per image): global average pool -> small MLP -> sigmoid gate,
    # done on VPU/XLU (broadcast-multiply + reduce), not the MXU.
    f1w = f1w_ref[...]
    f1b = f1b_ref[...]
    f2wt = f2wt_ref[...]
    f2b = f2b_ref[...]
    for b in range(B_TILE):                          # static, lane-aligned
        hb = h[:, b * HW:(b + 1) * HW]               # (C, HW)
        xb = x[:, b * HW:(b + 1) * HW]
        m = jnp.mean(hb, axis=-1, keepdims=True)                         # (C, 1)
        z = jnp.maximum(jnp.sum(f1w * m, axis=0, keepdims=True) + f1b,
                        0.0)                                             # (1, Chid)
        g = jax.nn.sigmoid(jnp.sum(f2wt * z, axis=-1, keepdims=True)
                           + f2b)                                        # (C, 1)
        # gated excitation * conv output, plus the outer residual.
        o_ref[:, pl.ds(b * HW, HW)] = xb + hb * g


def make_tap_masks(H, W):
    """mask[k, y*W+x] == 1 iff tap (ky,kx)=divmod(k,3) reads a valid
    (in-bounds) pixel for output position (y, x)."""
    HW = H * W
    m = np.zeros((9, HW), np.float32)
    for ky in range(3):
        for kx in range(3):
            k = ky * 3 + kx
            dy, dx = ky - 1, kx - 1
            for y in range(H):
                for x in range(W):
                    if 0 <= y + dy < H and 0 <= x + dx < W:
                        m[k, y * W + x] = 1.0
    return m


def res_snet_pallas(x_nchw, params, *, b_tile=None):
    B, C, H, W = x_nchw.shape
    HW = H * W
    assert HW % 128 == 0, "lane-dense layout requires H*W % 128 == 0"
    assert C % 8 == 0, "channels must fill whole sublanes"
    if b_tile is None:
        b_tile = 2 if B % 2 == 0 else 1     # keep grid even for v7x 2-TC split
    assert B % b_tile == 0
    N = b_tile * HW
    Chid = params["f1w"].shape[1]

    # NCHW -> (C, B*HW): channels in sublanes, batch*spatial lane-dense.
    x = jnp.transpose(x_nchw.reshape(B, C, HW), (1, 0, 2)).reshape(C, B * HW)

    # Fold the BN2 scale into conv1's output channels; keep its bias separate.
    w1_folded = params["w1"] * params["bn2_s"][:, None, None, None]  # (C,C,3,3)

    # PyTorch conv weight (Cout, Cin, 3, 3) -> (Cout, 9*Cin), tap-major
    # ordering [(ky*3+kx)*Cin + ci], cast to bf16 for the MXU.
    def flatten_w(w_oihw):
        return jnp.transpose(w_oihw, (0, 2, 3, 1)).reshape(C, 9 * C) \
                  .astype(jnp.bfloat16)

    w1flat = flatten_w(w1_folded)
    w2flat = flatten_w(params["w2"])
    # Per-image tap masks, tiled to the batch tile: (9, B_TILE*HW) f32.
    masks = jnp.asarray(np.tile(make_tap_masks(H, W), (1, b_tile)))

    kernel = functools.partial(_res_snet_kernel, W=W, HW=HW, B_TILE=b_tile)

    def full(shape):
        return pl.BlockSpec(shape, lambda b: (0,) * len(shape))

    out = pl.pallas_call(
        kernel,
        out_shape=jax.ShapeDtypeStruct((C, B * HW), jnp.float32),
        grid=(B // b_tile,),
        in_specs=[
            pl.BlockSpec((C, N), lambda b: (0, b)),              # x, per-tile
            full((9, N)),                                        # tap masks
            full((C, 1)), full((C, 1)),                          # BN1 scale / shift
            full((C, 9 * C)),                                    # conv1 (bf16, BN2-scaled)
            full((C, 1)),                                        # BN2 bias
            full((C, 9 * C)),                                    # conv2 (bf16)
            full((C, Chid)), full((1, Chid)),                    # excite fc1
            full((C, Chid)), full((C, 1)),                       # excite fc2 (W^T), bias
        ],
        out_specs=pl.BlockSpec((C, N), lambda b: (0, b)),
        scratch_shapes=[pltpu.VMEM((9 * C, N), jnp.bfloat16)],   # shared im2col buf
        compiler_params=pltpu.CompilerParams(
            dimension_semantics=("parallel",),
            vmem_limit_bytes=32 * 1024 * 1024),
    )(x, masks,
      params["bn1_s"].reshape(C, 1), params["bn1_b"].reshape(C, 1),
      w1flat, params["bn2_b"].reshape(C, 1), w2flat,
      params["f1w"], params["f1b"].reshape(1, Chid),
      params["f2w"].T, params["f2b"].reshape(C, 1))

    # (C, B*HW) -> NCHW.
    return jnp.transpose(out.reshape(C, B, HW), (1, 0, 2)).reshape(B, C, H, W)


# ----------------------------------------------------------------------------
# Host-side helpers: deterministic params, pure-JAX reference.
# ----------------------------------------------------------------------------
def init_params(key, C, r=16):
    Chid = C // r
    eps = 1e-5
    ks = jax.random.split(key, 10)

    def bn_affine(k):
        k1, k2, k3, k4 = jax.random.split(k, 4)
        gamma = 1.0 + 0.1 * jax.random.normal(k1, (C,), jnp.float32)
        beta = 0.1 * jax.random.normal(k2, (C,), jnp.float32)
        mean = 0.1 * jax.random.normal(k3, (C,), jnp.float32)
        var = jnp.abs(1.0 + 0.1 * jax.random.normal(k4, (C,), jnp.float32))
        scale = gamma / jnp.sqrt(var + eps)
        return scale, beta - mean * scale

    bn1_s, bn1_b = bn_affine(ks[0])
    bn2_s, bn2_b = bn_affine(ks[1])
    w1 = jax.random.normal(ks[2], (C, C, 3, 3), jnp.float32) * np.sqrt(2.0 / (C * 9))
    w2 = jax.random.normal(ks[3], (C, C, 3, 3), jnp.float32) * np.sqrt(2.0 / (C * 9))
    f1w = jax.random.normal(ks[4], (C, Chid), jnp.float32) * (1.0 / np.sqrt(C))
    f1b = 0.1 * jax.random.normal(ks[5], (Chid,), jnp.float32)
    f2w = jax.random.normal(ks[6], (Chid, C), jnp.float32) * (1.0 / np.sqrt(Chid))
    f2b = 0.1 * jax.random.normal(ks[7], (C,), jnp.float32)
    return dict(bn1_s=bn1_s, bn1_b=bn1_b, w1=w1,
                bn2_s=bn2_s, bn2_b=bn2_b, w2=w2,
                f1w=f1w, f1b=f1b, f2w=f2w, f2b=f2b)


def res_snet_ref(x_nchw, params):
    """Pure-JAX reference (inference-mode semantics), NCHW in / NCHW out."""
    x = jnp.transpose(x_nchw, (0, 2, 3, 1))  # NHWC

    def conv(h, w_oihw):
        w_hwio = jnp.transpose(w_oihw, (2, 3, 1, 0))
        return lax.conv_general_dilated(
            h, w_hwio, window_strides=(1, 1), padding=((1, 1), (1, 1)),
            dimension_numbers=("NHWC", "HWIO", "NHWC"),
            precision=lax.Precision.HIGHEST)

    h = jnp.maximum(x * params["bn1_s"] + params["bn1_b"], 0.0)
    h = conv(h, params["w1"])
    h = jnp.maximum(h * params["bn2_s"] + params["bn2_b"], 0.0)
    h = conv(h, params["w2"])
    m = jnp.mean(h, axis=(1, 2), keepdims=True)                        # (B,1,1,C)
    z = jnp.maximum(jnp.einsum("bijc,ch->bijh", m, params["f1w"],
                               precision=lax.Precision.HIGHEST) + params["f1b"], 0.0)
    g = jax.nn.sigmoid(jnp.einsum("bijh,hc->bijc", z, params["f2w"],
                                  precision=lax.Precision.HIGHEST) + params["f2b"])
    return jnp.transpose(x + h * g, (0, 3, 1, 2))


if __name__ == "__main__":
    # SNet uses r=16, so hidden = C // 16 -> need C >= 16.  Small shapes;
    # B=4 with B_TILE=2 exercises the batch-tiled grid (grid length 2).
    B, C, H, W = 4, 32, 16, 16

    key = jax.random.PRNGKey(0)
    kx, kp = jax.random.split(key)
    x = jax.random.normal(kx, (B, C, H, W), jnp.float32)
    params = init_params(kp, C)

    out = res_snet_pallas(x, params)
    out = jax.block_until_ready(out)

    ref = res_snet_ref(x, params)
    # Tolerance covers intentional bf16 matmul operands (f32 accumulation);
    # genuine bugs (wrong tap / mask / roll direction / weight ordering)
    # produce O(1) errors.
    np.testing.assert_allclose(np.asarray(out), np.asarray(ref), rtol=3e-2, atol=3e-2)
    print("KERNEL_OK")
</pallas_src>

<mosaic_0001>
module attributes {stable_mosaic.version = 11 : i64} {
  func.func @_res_snet_kernel(%arg0: i32, %arg1: memref<32x512xf32, #tpu.memory_space<vmem>>, %arg2: memref<9x512xf32, #tpu.memory_space<vmem>>, %arg3: memref<32x1xf32, #tpu.memory_space<vmem>>, %arg4: memref<32x1xf32, #tpu.memory_space<vmem>>, %arg5: memref<32x288xbf16, #tpu.memory_space<vmem>>, %arg6: memref<32x1xf32, #tpu.memory_space<vmem>>, %arg7: memref<32x288xbf16, #tpu.memory_space<vmem>>, %arg8: memref<32x2xf32, #tpu.memory_space<vmem>>, %arg9: memref<1x2xf32, #tpu.memory_space<vmem>>, %arg10: memref<32x2xf32, #tpu.memory_space<vmem>>, %arg11: memref<32x1xf32, #tpu.memory_space<vmem>>, %arg12: memref<32x512xf32, #tpu.memory_space<vmem>>, %arg13: memref<288x512xbf16, #tpu.memory_space<vmem>>) attributes {dimension_semantics = [#tpu.dimension_semantics<parallel>], iteration_bounds = array<i64: 2>, scalar_prefetch = 0 : i64, scratch_operands = 1 : i64, tpu.core_type = #tpu.core_type<tc>, window_params = [{transform_indices = @transform_0, window_bounds = array<i64: 32, 512>}, {pipeline_mode = #tpu.pipeline_mode<synchronous>, transform_indices = @transform_1, window_bounds = array<i64: 9, 512>}, {pipeline_mode = #tpu.pipeline_mode<synchronous>, transform_indices = @transform_2, window_bounds = array<i64: 32, 1>}, {pipeline_mode = #tpu.pipeline_mode<synchronous>, transform_indices = @transform_3, window_bounds = array<i64: 32, 1>}, {pipeline_mode = #tpu.pipeline_mode<synchronous>, transform_indices = @transform_4, window_bounds = array<i64: 32, 288>}, {pipeline_mode = #tpu.pipeline_mode<synchronous>, transform_indices = @transform_5, window_bounds = array<i64: 32, 1>}, {pipeline_mode = #tpu.pipeline_mode<synchronous>, transform_indices = @transform_6, window_bounds = array<i64: 32, 288>}, {pipeline_mode = #tpu.pipeline_mode<synchronous>, transform_indices = @transform_7, window_bounds = array<i64: 32, 2>}, {pipeline_mode = #tpu.pipeline_mode<synchronous>, transform_indices = @transform_8, window_bounds = array<i64: 1, 2>}, {pipeline_mode = #tpu.pipeline_mode<synchronous>, transform_indices = @transform_9, window_bounds = array<i64: 32, 2>}, {pipeline_mode = #tpu.pipeline_mode<synchronous>, transform_indices = @transform_10, window_bounds = array<i64: 32, 1>}, {transform_indices = @transform_11, window_bounds = array<i64: 32, 512>}]} {
    %c0 = arith.constant 0 : index
    %c0_0 = arith.constant 0 : index
    %0 = vector.load %arg1[%c0, %c0_0] : memref<32x512xf32, #tpu.memory_space<vmem>>, vector<32x512xf32>
    %c0_1 = arith.constant 0 : index
    %c0_2 = arith.constant 0 : index
    %1 = vector.load %arg3[%c0_1, %c0_2] : memref<32x1xf32, #tpu.memory_space<vmem>>, vector<32x1xf32>
    %2 = vector.broadcast %1 : vector<32x1xf32> to vector<32x512xf32>
    %3 = arith.mulf %0, %2 : vector<32x512xf32>
    %c0_3 = arith.constant 0 : index
    %c0_4 = arith.constant 0 : index
    %4 = vector.load %arg4[%c0_3, %c0_4] : memref<32x1xf32, #tpu.memory_space<vmem>>, vector<32x1xf32>
    %5 = vector.broadcast %4 : vector<32x1xf32> to vector<32x512xf32>
    %6 = arith.addf %3, %5 : vector<32x512xf32>
    %cst = arith.constant 0.000000e+00 : f32
    %7 = vector.broadcast %cst : f32 to vector<32x512xf32>
    %8 = arith.maximumf %6, %7 : vector<32x512xf32>
    %c17_i32 = arith.constant 17 : i32
    %9 = tpu.dynamic_rotate %8 by %c17_i32 dim 1 : vector<32x512xf32>, i32 -> vector<32x512xf32>
    %c0_5 = arith.constant 0 : index
    %c0_6 = arith.constant 0 : index
    %10 = vector.load %arg2[%c0_5, %c0_6] : memref<9x512xf32, #tpu.memory_space<vmem>>, vector<1x512xf32>
    %11 = vector.broadcast %10 : vector<1x512xf32> to vector<32x512xf32>
    %12 = arith.mulf %9, %11 : vector<32x512xf32>
    %13 = arith.truncf %12 : vector<32x512xf32> to vector<32x512xbf16>
    %c0_7 = arith.constant 0 : index
    %c0_8 = arith.constant 0 : index
    %14 = vector.load %arg13[%c0_7, %c0_8] : memref<288x512xbf16, #tpu.memory_space<vmem>>, vector<32x512xbf16>
    tpu.vector_store %arg13[%c0_7, %c0_8], %13 {strides = array<i32>} : memref<288x512xbf16, #tpu.memory_space<vmem>>, vector<32x512xbf16>,
    %c16_i32 = arith.constant 16 : i32
    %15 = tpu.dynamic_rotate %8 by %c16_i32 dim 1 : vector<32x512xf32>, i32 -> vector<32x512xf32>
    %c1 = arith.constant 1 : index
    %c0_9 = arith.constant 0 : index
    %16 = vector.load %arg2[%c1, %c0_9] : memref<9x512xf32, #tpu.memory_space<vmem>>, vector<1x512xf32>
    %17 = vector.broadcast %16 : vector<1x512xf32> to vector<32x512xf32>
    %18 = arith.mulf %15, %17 : vector<32x512xf32>
    %19 = arith.truncf %18 : vector<32x512xf32> to vector<32x512xbf16>
    %c32 = arith.constant 32 : index
    %c0_10 = arith.constant 0 : index
    %20 = vector.load %arg13[%c32, %c0_10] : memref<288x512xbf16, #tpu.memory_space<vmem>>, vector<32x512xbf16>
    tpu.vector_store %arg13[%c32, %c0_10], %19 {strides = array<i32>} : memref<288x512xbf16, #tpu.memory_space<vmem>>, vector<32x512xbf16>,
    %c15_i32 = arith.constant 15 : i32
    %21 = tpu.dynamic_rotate %8 by %c15_i32 dim 1 : vector<32x512xf32>, i32 -> vector<32x512xf32>
    %c2 = arith.constant 2 : index
    %c0_11 = arith.constant 0 : index
    %22 = vector.load %arg2[%c2, %c0_11] : memref<9x512xf32, #tpu.memory_space<vmem>>, vector<1x512xf32>
    %23 = vector.broadcast %22 : vector<1x512xf32> to vector<32x512xf32>
    %24 = arith.mulf %21, %23 : vector<32x512xf32>
    %25 = arith.truncf %24 : vector<32x512xf32> to vector<32x512xbf16>
    %c64 = arith.constant 64 : index
    %c0_12 = arith.constant 0 : index
    %26 = vector.load %arg13[%c64, %c0_12] : memref<288x512xbf16, #tpu.memory_space<vmem>>, vector<32x512xbf16>
    tpu.vector_store %arg13[%c64, %c0_12], %25 {strides = array<i32>} : memref<288x512xbf16, #tpu.memory_space<vmem>>, vector<32x512xbf16>,
    %c1_i32 = arith.constant 1 : i32
    %27 = tpu.dynamic_rotate %8 by %c1_i32 dim 1 : vector<32x512xf32>, i32 -> vector<32x512xf32>
    %c3 = arith.constant 3 : index
    %c0_13 = arith.constant 0 : index
    %28 = vector.load %arg2[%c3, %c0_13] : memref<9x512xf32, #tpu.memory_space<vmem>>, vector<1x512xf32>
    %29 = vector.broadcast %28 : vector<1x512xf32> to vector<32x512xf32>
    %30 = arith.mulf %27, %29 : vector<32x512xf32>
    %31 = arith.truncf %30 : vector<32x512xf32> to vector<32x512xbf16>
    %c96 = arith.constant 96 : index
    %c0_14 = arith.constant 0 : index
    %32 = vector.load %arg13[%c96, %c0_14] : memref<288x512xbf16, #tpu.memory_space<vmem>>, vector<32x512xbf16>
    tpu.vector_store %arg13[%c96, %c0_14], %31 {strides = array<i32>} : memref<288x512xbf16, #tpu.memory_space<vmem>>, vector<32x512xbf16>,
    %33 = arith.truncf %8 : vector<32x512xf32> to vector<32x512xbf16>
    %c128 = arith.constant 128 : index
    %c0_15 = arith.constant 0 : index
    %34 = vector.load %arg13[%c128, %c0_15] : memref<288x512xbf16, #tpu.memory_space<vmem>>, vector<32x512xbf16>
    tpu.vector_store %arg13[%c128, %c0_15], %33 {strides = array<i32>} : memref<288x512xbf16, #tpu.memory_space<vmem>>, vector<32x512xbf16>,
    %c511_i32 = arith.constant 511 : i32
    %35 = tpu.dynamic_rotate %8 by %c511_i32 dim 1 : vector<32x512xf32>, i32 -> vector<32x512xf32>
    %c5 = arith.constant 5 : index
    %c0_16 = arith.constant 0 : index
    %36 = vector.load %arg2[%c5, %c0_16] : memref<9x512xf32, #tpu.memory_space<vmem>>, vector<1x512xf32>
    %37 = vector.broadcast %36 : vector<1x512xf32> to vector<32x512xf32>
    %38 = arith.mulf %35, %37 : vector<32x512xf32>
    %39 = arith.truncf %38 : vector<32x512xf32> to vector<32x512xbf16>
    %c160 = arith.constant 160 : index
    %c0_17 = arith.constant 0 : index
    %40 = vector.load %arg13[%c160, %c0_17] : memref<288x512xbf16, #tpu.memory_space<vmem>>, vector<32x512xbf16>
    tpu.vector_store %arg13[%c160, %c0_17], %39 {strides = array<i32>} : memref<288x512xbf16, #tpu.memory_space<vmem>>, vector<32x512xbf16>,
    %c497_i32 = arith.constant 497 : i32
    %41 = tpu.dynamic_rotate %8 by %c497_i32 dim 1 : vector<32x512xf32>, i32 -> vector<32x512xf32>
    %c6 = arith.constant 6 : index
    %c0_18 = arith.constant 0 : index
    %42 = vector.load %arg2[%c6, %c0_18] : memref<9x512xf32, #tpu.memory_space<vmem>>, vector<1x512xf32>
    %43 = vector.broadcast %42 : vector<1x512xf32> to vector<32x512xf32>
    %44 = arith.mulf %41, %43 : vector<32x512xf32>
    %45 = arith.truncf %44 : vector<32x512xf32> to vector<32x512xbf16>
    %c192 = arith.constant 192 : index
    %c0_19 = arith.constant 0 : index
    %46 = vector.load %arg13[%c192, %c0_19] : memref<288x512xbf16, #tpu.memory_space<vmem>>, vector<32x512xbf16>
    tpu.vector_store %arg13[%c192, %c0_19], %45 {strides = array<i32>} : memref<288x512xbf16, #tpu.memory_space<vmem>>, vector<32x512xbf16>,
    %c496_i32 = arith.constant 496 : i32
    %47 = tpu.dynamic_rotate %8 by %c496_i32 dim 1 : vector<32x512xf32>, i32 -> vector<32x512xf32>
    %c7 = arith.constant 7 : index
    %c0_20 = arith.constant 0 : index
    %48 = vector.load %arg2[%c7, %c0_20] : memref<9x512xf32, #tpu.memory_space<vmem>>, vector<1x512xf32>
    %49 = vector.broadcast %48 : vector<1x512xf32> to vector<32x512xf32>
    %50 = arith.mulf %47, %49 : vector<32x512xf32>
    %51 = arith.truncf %50 : vector<32x512xf32> to vector<32x512xbf16>
    %c224 = arith.constant 224 : index
    %c0_21 = arith.constant 0 : index
    %52 = vector.load %arg13[%c224, %c0_21] : memref<288x512xbf16, #tpu.memory_space<vmem>>, vector<32x512xbf16>
    tpu.vector_store %arg13[%c224, %c0_21], %51 {strides = array<i32>} : memref<288x512xbf16, #tpu.memory_space<vmem>>, vector<32x512xbf16>,
    %c495_i32 = arith.constant 495 : i32
    %53 = tpu.dynamic_rotate %8 by %c495_i32 dim 1 : vector<32x512xf32>, i32 -> vector<32x512xf32>
    %c8 = arith.constant 8 : index
    %c0_22 = arith.constant 0 : index
    %54 = vector.load %arg2[%c8, %c0_22] : memref<9x512xf32, #tpu.memory_space<vmem>>, vector<1x512xf32>
    %55 = vector.broadcast %54 : vector<1x512xf32> to vector<32x512xf32>
    %56 = arith.mulf %53, %55 : vector<32x512xf32>
    %57 = arith.truncf %56 : vector<32x512xf32> to vector<32x512xbf16>
    %c256 = arith.constant 256 : index
    %c0_23 = arith.constant 0 : index
    %58 = vector.load %arg13[%c256, %c0_23] : memref<288x512xbf16, #tpu.memory_space<vmem>>, vector<32x512xbf16>
    tpu.vector_store %arg13[%c256, %c0_23], %57 {strides = array<i32>} : memref<288x512xbf16, #tpu.memory_space<vmem>>, vector<32x512xbf16>,
    %c0_24 = arith.constant 0 : index
    %c0_25 = arith.constant 0 : index
    %59 = vector.load %arg5[%c0_24, %c0_25] : memref<32x288xbf16, #tpu.memory_space<vmem>>, vector<32x288xbf16>
    %c0_26 = arith.constant 0 : index
    %c0_27 = arith.constant 0 : index
    %60 = vector.load %arg13[%c0_26, %c0_27] : memref<288x512xbf16, #tpu.memory_space<vmem>>, vector<288x512xbf16>
    %cst_28 = arith.constant dense<0.000000e+00> : vector<32x512xf32>
    %61 = tpu.matmul %59, %60, %cst_28 {dimension_numbers = #tpu.dot_dimension_numbers<[1], [0], [0], [1], [0, 0, 1, 1], [], []>} : vector<32x288xbf16>, vector<288x512xbf16>, vector<32x512xf32> -> vector<32x512xf32>
    %c0_29 = arith.constant 0 : index
    %c0_30 = arith.constant 0 : index
    %62 = vector.load %arg6[%c0_29, %c0_30] : memref<32x1xf32, #tpu.memory_space<vmem>>, vector<32x1xf32>
    %63 = vector.broadcast %62 : vector<32x1xf32> to vector<32x512xf32>
    %64 = arith.addf %61, %63 : vector<32x512xf32>
    %cst_31 = arith.constant 0.000000e+00 : f32
    %65 = vector.broadcast %cst_31 : f32 to vector<32x512xf32>
    %66 = arith.maximumf %64, %65 : vector<32x512xf32>
    %c17_i32_32 = arith.constant 17 : i32
    %67 = tpu.dynamic_rotate %66 by %c17_i32_32 dim 1 : vector<32x512xf32>, i32 -> vector<32x512xf32>
    %c0_33 = arith.constant 0 : index
    %c0_34 = arith.constant 0 : index
    %68 = vector.load %arg2[%c0_33, %c0_34] : memref<9x512xf32, #tpu.memory_space<vmem>>, vector<1x512xf32>
    %69 = vector.broadcast %68 : vector<1x512xf32> to vector<32x512xf32>
    %70 = arith.mulf %67, %69 : vector<32x512xf32>
    %71 = arith.truncf %70 : vector<32x512xf32> to vector<32x512xbf16>
    %c0_35 = arith.constant 0 : index
    %c0_36 = arith.constant 0 : index
    %72 = vector.load %arg13[%c0_35, %c0_36] : memref<288x512xbf16, #tpu.memory_space<vmem>>, vector<32x512xbf16>
    tpu.vector_store %arg13[%c0_35, %c0_36], %71 {strides = array<i32>} : memref<288x512xbf16, #tpu.memory_space<vmem>>, vector<32x512xbf16>,
    %c16_i32_37 = arith.constant 16 : i32
    %73 = tpu.dynamic_rotate %66 by %c16_i32_37 dim 1 : vector<32x512xf32>, i32 -> vector<32x512xf32>
    %c1_38 = arith.constant 1 : index
    %c0_39 = arith.constant 0 : index
    %74 = vector.load %arg2[%c1_38, %c0_39] : memref<9x512xf32, #tpu.memory_space<vmem>>, vector<1x512xf32>
    %75 = vector.broadcast %74 : vector<1x512xf32> to vector<32x512xf32>
    %76 = arith.mulf %73, %75 : vector<32x512xf32>
    %77 = arith.truncf %76 : vector<32x512xf32> to vector<32x512xbf16>
    %c32_40 = arith.constant 32 : index
    %c0_41 = arith.constant 0 : index
    %78 = vector.load %arg13[%c32_40, %c0_41] : memref<288x512xbf16, #tpu.memory_space<vmem>>, vector<32x512xbf16>
    tpu.vector_store %arg13[%c32_40, %c0_41], %77 {strides = array<i32>} : memref<288x512xbf16, #tpu.memory_space<vmem>>, vector<32x512xbf16>,
    %c15_i32_42 = arith.constant 15 : i32
    %79 = tpu.dynamic_rotate %66 by %c15_i32_42 dim 1 : vector<32x512xf32>, i32 -> vector<32x512xf32>
    %c2_43 = arith.constant 2 : index
    %c0_44 = arith.constant 0 : index
    %80 = vector.load %arg2[%c2_43, %c0_44] : memref<9x512xf32, #tpu.memory_space<vmem>>, vector<1x512xf32>
    %81 = vector.broadcast %80 : vector<1x512xf32> to vector<32x512xf32>
    %82 = arith.mulf %79, %81 : vector<32x512xf32>
    %83 = arith.truncf %82 : vector<32x512xf32> to vector<32x512xbf16>
    %c64_45 = arith.constant 64 : index
    %c0_46 = arith.constant 0 : index
    %84 = vector.load %arg13[%c64_45, %c0_46] : memref<288x512xbf16, #tpu.memory_space<vmem>>, vector<32x512xbf16>
    tpu.vector_store %arg13[%c64_45, %c0_46], %83 {strides = array<i32>} : memref<288x512xbf16, #tpu.memory_space<vmem>>, vector<32x512xbf16>,
    %c1_i32_47 = arith.constant 1 : i32
    %85 = tpu.dynamic_rotate %66 by %c1_i32_47 dim 1 : vector<32x512xf32>, i32 -> vector<32x512xf32>
    %c3_48 = arith.constant 3 : index
    %c0_49 = arith.constant 0 : index
    %86 = vector.load %arg2[%c3_48, %c0_49] : memref<9x512xf32, #tpu.memory_space<vmem>>, vector<1x512xf32>
    %87 = vector.broadcast %86 : vector<1x512xf32> to vector<32x512xf32>
    %88 = arith.mulf %85, %87 : vector<32x512xf32>
    %89 = arith.truncf %88 : vector<32x512xf32> to vector<32x512xbf16>
    %c96_50 = arith.constant 96 : index
    %c0_51 = arith.constant 0 : index
    %90 = vector.load %arg13[%c96_50, %c0_51] : memref<288x512xbf16, #tpu.memory_space<vmem>>, vector<32x512xbf16>
    tpu.vector_store %arg13[%c96_50, %c0_51], %89 {strides = array<i32>} : memref<288x512xbf16, #tpu.memory_space<vmem>>, vector<32x512xbf16>,
    %91 = arith.truncf %66 : vector<32x512xf32> to vector<32x512xbf16>
    %c128_52 = arith.constant 128 : index
    %c0_53 = arith.constant 0 : index
    %92 = vector.load %arg13[%c128_52, %c0_53] : memref<288x512xbf16, #tpu.memory_space<vmem>>, vector<32x512xbf16>
    tpu.vector_store %arg13[%c128_52, %c0_53], %91 {strides = array<i32>} : memref<288x512xbf16, #tpu.memory_space<vmem>>, vector<32x512xbf16>,
    %c511_i32_54 = arith.constant 511 : i32
    %93 = tpu.dynamic_rotate %66 by %c511_i32_54 dim 1 : vector<32x512xf32>, i32 -> vector<32x512xf32>
    %c5_55 = arith.constant 5 : index
    %c0_56 = arith.constant 0 : index
    %94 = vector.load %arg2[%c5_55, %c0_56] : memref<9x512xf32, #tpu.memory_space<vmem>>, vector<1x512xf32>
    %95 = vector.broadcast %94 : vector<1x512xf32> to vector<32x512xf32>
    %96 = arith.mulf %93, %95 : vector<32x512xf32>
    %97 = arith.truncf %96 : vector<32x512xf32> to vector<32x512xbf16>
    %c160_57 = arith.constant 160 : index
    %c0_58 = arith.constant 0 : index
    %98 = vector.load %arg13[%c160_57, %c0_58] : memref<288x512xbf16, #tpu.memory_space<vmem>>, vector<32x512xbf16>
    tpu.vector_store %arg13[%c160_57, %c0_58], %97 {strides = array<i32>} : memref<288x512xbf16, #tpu.memory_space<vmem>>, vector<32x512xbf16>,
    %c497_i32_59 = arith.constant 497 : i32
    %99 = tpu.dynamic_rotate %66 by %c497_i32_59 dim 1 : vector<32x512xf32>, i32 -> vector<32x512xf32>
    %c6_60 = arith.constant 6 : index
    %c0_61 = arith.constant 0 : index
    %100 = vector.load %arg2[%c6_60, %c0_61] : memref<9x512xf32, #tpu.memory_space<vmem>>, vector<1x512xf32>
    %101 = vector.broadcast %100 : vector<1x512xf32> to vector<32x512xf32>
    %102 = arith.mulf %99, %101 : vector<32x512xf32>
    %103 = arith.truncf %102 : vector<32x512xf32> to vector<32x512xbf16>
    %c192_62 = arith.constant 192 : index
    %c0_63 = arith.constant 0 : index
    %104 = vector.load %arg13[%c192_62, %c0_63] : memref<288x512xbf16, #tpu.memory_space<vmem>>, vector<32x512xbf16>
    tpu.vector_store %arg13[%c192_62, %c0_63], %103 {strides = array<i32>} : memref<288x512xbf16, #tpu.memory_space<vmem>>, vector<32x512xbf16>,
    %c496_i32_64 = arith.constant 496 : i32
    %105 = tpu.dynamic_rotate %66 by %c496_i32_64 dim 1 : vector<32x512xf32>, i32 -> vector<32x512xf32>
    %c7_65 = arith.constant 7 : index
    %c0_66 = arith.constant 0 : index
    %106 = vector.load %arg2[%c7_65, %c0_66] : memref<9x512xf32, #tpu.memory_space<vmem>>, vector<1x512xf32>
    %107 = vector.broadcast %106 : vector<1x512xf32> to vector<32x512xf32>
    %108 = arith.mulf %105, %107 : vector<32x512xf32>
    %109 = arith.truncf %108 : vector<32x512xf32> to vector<32x512xbf16>
    %c224_67 = arith.constant 224 : index
    %c0_68 = arith.constant 0 : index
    %110 = vector.load %arg13[%c224_67, %c0_68] : memref<288x512xbf16, #tpu.memory_space<vmem>>, vector<32x512xbf16>
    tpu.vector_store %arg13[%c224_67, %c0_68], %109 {strides = array<i32>} : memref<288x512xbf16, #tpu.memory_space<vmem>>, vector<32x512xbf16>,
    %c495_i32_69 = arith.constant 495 : i32
    %111 = tpu.dynamic_rotate %66 by %c495_i32_69 dim 1 : vector<32x512xf32>, i32 -> vector<32x512xf32>
    %c8_70 = arith.constant 8 : index
    %c0_71 = arith.constant 0 : index
    %112 = vector.load %arg2[%c8_70, %c0_71] : memref<9x512xf32, #tpu.memory_space<vmem>>, vector<1x512xf32>
    %113 = vector.broadcast %112 : vector<1x512xf32> to vector<32x512xf32>
    %114 = arith.mulf %111, %113 : vector<32x512xf32>
    %115 = arith.truncf %114 : vector<32x512xf32> to vector<32x512xbf16>
    %c256_72 = arith.constant 256 : index
    %c0_73 = arith.constant 0 : index
    %116 = vector.load %arg13[%c256_72, %c0_73] : memref<288x512xbf16, #tpu.memory_space<vmem>>, vector<32x512xbf16>
    tpu.vector_store %arg13[%c256_72, %c0_73], %115 {strides = array<i32>} : memref<288x512xbf16, #tpu.memory_space<vmem>>, vector<32x512xbf16>,
    %c0_74 = arith.constant 0 : index
    %c0_75 = arith.constant 0 : index
    %117 = vector.load %arg7[%c0_74, %c0_75] : memref<32x288xbf16, #tpu.memory_space<vmem>>, vector<32x288xbf16>
    %c0_76 = arith.constant 0 : index
    %c0_77 = arith.constant 0 : index
    %118 = vector.load %arg13[%c0_76, %c0_77] : memref<288x512xbf16, #tpu.memory_space<vmem>>, vector<288x512xbf16>
    %cst_78 = arith.constant dense<0.000000e+00> : vector<32x512xf32>
    %119 = tpu.matmul %117, %118, %cst_78 {dimension_numbers = #tpu.dot_dimension_numbers<[1], [0], [0], [1], [0, 0, 1, 1], [], []>} : vector<32x288xbf16>, vector<288x512xbf16>, vector<32x512xf32> -> vector<32x512xf32>
    %c0_79 = arith.constant 0 : index
    %c0_80 = arith.constant 0 : index
    %120 = vector.load %arg8[%c0_79, %c0_80] : memref<32x2xf32, #tpu.memory_space<vmem>>, vector<32x2xf32>
    %c0_81 = arith.constant 0 : index
    %c0_82 = arith.constant 0 : index
    %121 = vector.load %arg9[%c0_81, %c0_82] : memref<1x2xf32, #tpu.memory_space<vmem>>, vector<1x2xf32>
    %c0_83 = arith.constant 0 : index
    %c0_84 = arith.constant 0 : index
    %122 = vector.load %arg10[%c0_83, %c0_84] : memref<32x2xf32, #tpu.memory_space<vmem>>, vector<32x2xf32>
    %c0_85 = arith.constant 0 : index
    %c0_86 = arith.constant 0 : index
    %123 = vector.load %arg11[%c0_85, %c0_86] : memref<32x1xf32, #tpu.memory_space<vmem>>, vector<32x1xf32>
    %124 = vector.extract_strided_slice %119 {offsets = [0, 0], sizes = [32, 256], strides = [1, 1]} : vector<32x512xf32> to vector<32x256xf32>
    %125 = vector.extract_strided_slice %0 {offsets = [0, 0], sizes = [32, 256], strides = [1, 1]} : vector<32x512xf32> to vector<32x256xf32>
    %cst_87 = arith.constant dense<0.000000e+00> : vector<32xf32>
    %126 = vector.multi_reduction <add>, %124, %cst_87 [1] : vector<32x256xf32> to vector<32xf32>
    %127 = vector.shape_cast %126 : vector<32xf32> to vector<32x1xf32>
    %cst_88 = arith.constant 2.560000e+02 : f32
    %128 = vector.broadcast %cst_88 : f32 to vector<32x1xf32>
    %129 = arith.divf %127, %128 : vector<32x1xf32>
    %130 = vector.broadcast %129 : vector<32x1xf32> to vector<32x2xf32>
    %131 = arith.mulf %120, %130 : vector<32x2xf32>
    %cst_89 = arith.constant dense<0.000000e+00> : vector<2xf32>
    %132 = vector.multi_reduction <add>, %131, %cst_89 [0] : vector<32x2xf32> to vector<2xf32>
    %133 = vector.shape_cast %132 : vector<2xf32> to vector<1x2xf32>
    %134 = arith.addf %133, %121 : vector<1x2xf32>
    %cst_90 = arith.constant 0.000000e+00 : f32
    %135 = vector.broadcast %cst_90 : f32 to vector<1x2xf32>
    %136 = arith.maximumf %134, %135 : vector<1x2xf32>
    %137 = vector.broadcast %136 : vector<1x2xf32> to vector<32x2xf32>
    %138 = arith.mulf %122, %137 : vector<32x2xf32>
    %cst_91 = arith.constant dense<0.000000e+00> : vector<32xf32>
    %139 = vector.multi_reduction <add>, %138, %cst_91 [1] : vector<32x2xf32> to vector<32xf32>
    %140 = vector.shape_cast %139 : vector<32xf32> to vector<32x1xf32>
    %141 = arith.addf %140, %123 : vector<32x1xf32>
    %142 = arith.negf %141 : vector<32x1xf32>
    %143 = math.exp %142 : vector<32x1xf32>
    %cst_92 = arith.constant 1.000000e+00 : f32
    %144 = vector.broadcast %cst_92 : f32 to vector<32x1xf32>
    %145 = arith.addf %144, %143 : vector<32x1xf32>
    %146 = arith.divf %144, %145 : vector<32x1xf32>
    %147 = vector.broadcast %146 : vector<32x1xf32> to vector<32x256xf32>
    %148 = arith.mulf %124, %147 : vector<32x256xf32>
    %149 = arith.addf %125, %148 : vector<32x256xf32>
    %c0_93 = arith.constant 0 : index
    %c0_94 = arith.constant 0 : index
    %150 = vector.load %arg12[%c0_93, %c0_94] : memref<32x512xf32, #tpu.memory_space<vmem>>, vector<32x256xf32>
    tpu.vector_store %arg12[%c0_93, %c0_94], %149 {strides = array<i32>} : memref<32x512xf32, #tpu.memory_space<vmem>>, vector<32x256xf32>,
    %151 = vector.extract_strided_slice %119 {offsets = [0, 256], sizes = [32, 256], strides = [1, 1]} : vector<32x512xf32> to vector<32x256xf32>
    %152 = vector.extract_strided_slice %0 {offsets = [0, 256], sizes = [32, 256], strides = [1, 1]} : vector<32x512xf32> to vector<32x256xf32>
    %cst_95 = arith.constant dense<0.000000e+00> : vector<32xf32>
    %153 = vector.multi_reduction <add>, %151, %cst_95 [1] : vector<32x256xf32> to vector<32xf32>
    %154 = vector.shape_cast %153 : vector<32xf32> to vector<32x1xf32>
    %cst_96 = arith.constant 2.560000e+02 : f32
    %155 = vector.broadcast %cst_96 : f32 to vector<32x1xf32>
    %156 = arith.divf %154, %155 : vector<32x1xf32>
    %157 = vector.broadcast %156 : vector<32x1xf32> to vector<32x2xf32>
    %158 = arith.mulf %120, %157 : vector<32x2xf32>
    %cst_97 = arith.constant dense<0.000000e+00> : vector<2xf32>
    %159 = vector.multi_reduction <add>, %158, %cst_97 [0] : vector<32x2xf32> to vector<2xf32>
    %160 = vector.shape_cast %159 : vector<2xf32> to vector<1x2xf32>
    %161 = arith.addf %160, %121 : vector<1x2xf32>
    %cst_98 = arith.constant 0.000000e+00 : f32
    %162 = vector.broadcast %cst_98 : f32 to vector<1x2xf32>
    %163 = arith.maximumf %161, %162 : vector<1x2xf32>
    %164 = vector.broadcast %163 : vector<1x2xf32> to vector<32x2xf32>
    %165 = arith.mulf %122, %164 : vector<32x2xf32>
    %cst_99 = arith.constant dense<0.000000e+00> : vector<32xf32>
    %166 = vector.multi_reduction <add>, %165, %cst_99 [1] : vector<32x2xf32> to vector<32xf32>
    %167 = vector.shape_cast %166 : vector<32xf32> to vector<32x1xf32>
    %168 = arith.addf %167, %123 : vector<32x1xf32>
    %169 = arith.negf %168 : vector<32x1xf32>
    %170 = math.exp %169 : vector<32x1xf32>
    %cst_100 = arith.constant 1.000000e+00 : f32
    %171 = vector.broadcast %cst_100 : f32 to vector<32x1xf32>
    %172 = arith.addf %171, %170 : vector<32x1xf32>
    %173 = arith.divf %171, %172 : vector<32x1xf32>
    %174 = vector.broadcast %173 : vector<32x1xf32> to vector<32x256xf32>
    %175 = arith.mulf %151, %174 : vector<32x256xf32>
    %176 = arith.addf %152, %175 : vector<32x256xf32>
    %c0_101 = arith.constant 0 : index
    %c256_102 = arith.constant 256 : index
    %177 = vector.load %arg12[%c0_101, %c256_102] : memref<32x512xf32, #tpu.memory_space<vmem>>, vector<32x256xf32>
    tpu.vector_store %arg12[%c0_101, %c256_102], %176 {strides = array<i32>} : memref<32x512xf32, #tpu.memory_space<vmem>>, vector<32x256xf32>,
    return
  }
  func.func @transform_0(%arg0: i32) -> (i32, i32) {
    %c0_i32 = arith.constant 0 : i32
    %c0_i32_0 = arith.constant 0 : i32
    return %c0_i32, %arg0 : i32, i32
  }
  func.func @transform_1(%arg0: i32) -> (i32, i32) {
    %c0_i32 = arith.constant 0 : i32
    %c0_i32_0 = arith.constant 0 : i32
    %c0_i32_1 = arith.constant 0 : i32
    return %c0_i32, %c0_i32_0 : i32, i32
  }
  func.func @transform_2(%arg0: i32) -> (i32, i32) {
    %c0_i32 = arith.constant 0 : i32
    %c0_i32_0 = arith.constant 0 : i32
    %c0_i32_1 = arith.constant 0 : i32
    return %c0_i32, %c0_i32_0 : i32, i32
  }
  func.func @transform_3(%arg0: i32) -> (i32, i32) {
    %c0_i32 = arith.constant 0 : i32
    %c0_i32_0 = arith.constant 0 : i32
    %c0_i32_1 = arith.constant 0 : i32
    return %c0_i32, %c0_i32_0 : i32, i32
  }
  func.func @transform_4(%arg0: i32) -> (i32, i32) {
    %c0_i32 = arith.constant 0 : i32
    %c0_i32_0 = arith.constant 0 : i32
    %c0_i32_1 = arith.constant 0 : i32
    return %c0_i32, %c0_i32_0 : i32, i32
  }
  func.func @transform_5(%arg0: i32) -> (i32, i32) {
    %c0_i32 = arith.constant 0 : i32
    %c0_i32_0 = arith.constant 0 : i32
    %c0_i32_1 = arith.constant 0 : i32
    return %c0_i32, %c0_i32_0 : i32, i32
  }
  func.func @transform_6(%arg0: i32) -> (i32, i32) {
    %c0_i32 = arith.constant 0 : i32
    %c0_i32_0 = arith.constant 0 : i32
    %c0_i32_1 = arith.constant 0 : i32
    return %c0_i32, %c0_i32_0 : i32, i32
  }
  func.func @transform_7(%arg0: i32) -> (i32, i32) {
    %c0_i32 = arith.constant 0 : i32
    %c0_i32_0 = arith.constant 0 : i32
    %c0_i32_1 = arith.constant 0 : i32
    return %c0_i32, %c0_i32_0 : i32, i32
  }
  func.func @transform_8(%arg0: i32) -> (i32, i32) {
    %c0_i32 = arith.constant 0 : i32
    %c0_i32_0 = arith.constant 0 : i32
    %c0_i32_1 = arith.constant 0 : i32
    return %c0_i32, %c0_i32_0 : i32, i32
  }
  func.func @transform_9(%arg0: i32) -> (i32, i32) {
    %c0_i32 = arith.constant 0 : i32
    %c0_i32_0 = arith.constant 0 : i32
    %c0_i32_1 = arith.constant 0 : i32
    return %c0_i32, %c0_i32_0 : i32, i32
  }
  func.func @transform_10(%arg0: i32) -> (i32, i32) {
    %c0_i32 = arith.constant 0 : i32
    %c0_i32_0 = arith.constant 0 : i32
    %c0_i32_1 = arith.constant 0 : i32
    return %c0_i32, %c0_i32_0 : i32, i32
  }
  func.func @transform_11(%arg0: i32) -> (i32, i32) {
    %c0_i32 = arith.constant 0 : i32
    %c0_i32_0 = arith.constant 0 : i32
    return %c0_i32, %arg0 : i32, i32
  }
}

</mosaic_0001>

<llo_original>
// kernel: tpu_custom_call.1
$region0: #{tpu_custom_call.1}
  #allocation0 [shape = 'u32[]', space=smem, size = 0x4, offset = 0x4, fixed_abs, tag = 'smem constant byte address 0x4 - core index']
  #allocation1 [shape = 'u32[72,128]{1,0:T(1,128)}', space=vmem, size = 0x9000, scoped, tag = 'internal scratch']
  #allocation2 [shape = 'bf16[288,512]{1,0:T(8,128)(2,1)}', space=vmem, size = 0x48000, scoped, tag = 'scratch operand']
  %s0 = inlined_call_operand.hbm [shape: f32[32,1024], index: 0, kind: input, shape index: {}]
  %s1 = inlined_call_operand.vmem [shape: f32[9,512], index: 1, kind: input, shape index: {}]
  %s2 = inlined_call_operand.vmem [shape: f32[32,1], index: 2, kind: input, shape index: {}]
  %s3 = inlined_call_operand.vmem [shape: f32[32,1], index: 3, kind: input, shape index: {}]
  %s4 = inlined_call_operand.vmem [shape: bf16[32,288], index: 4, kind: input, shape index: {}]
  %s5 = inlined_call_operand.vmem [shape: f32[32,1], index: 5, kind: input, shape index: {}]
  %s6 = inlined_call_operand.hbm [shape: bf16[32,288], index: 6, kind: input, shape index: {}]
  %s7 = inlined_call_operand.vmem [shape: f32[32,2], index: 7, kind: input, shape index: {}]
  %s8 = inlined_call_operand.vmem [shape: f32[1,2], index: 8, kind: input, shape index: {}]
  %s9 = inlined_call_operand.vmem [shape: f32[32,2], index: 9, kind: input, shape index: {}]
  %s10 = inlined_call_operand.vmem [shape: f32[32,1], index: 10, kind: input, shape index: {}]
  %s11 = inlined_call_operand.hbm [shape: f32[32,1024], index: 11, kind: output, shape index: {}]
  %s12 = sld [smem:[#allocation0]]
  $region85: #{tpu_custom_call.1} parent=0
    _
  %s14 = ssub.s32 1, %s12
  %s15 = scalar_select 0, %s14, %s12
  $region1: #{tpu_custom_call.1} parent=0
    #allocation3 [shape = 'u8[131072]{0}', space=vmem, size = 0x20000, scoped, tag = 'input window, operand 0']
    #allocation4 [shape = 's32[2]{0}', space=sflag, size = 0x8, scoped, tag = 'scoped memory for tpu_custom_call.1']
    #allocation5 [shape = 's32[2]{0}', space=sflag, size = 0x8, scoped, tag = 'scoped memory for tpu_custom_call.1']
    #allocation6 [shape = 'u8[24576]{0}', space=vmem, size = 0x6000, scoped, tag = 'input window, operand 6, single buffered']
    #allocation7 [shape = 's32[1]{0}', space=sflag, size = 0x4, scoped, tag = 'scoped memory for tpu_custom_call.1']
    #allocation8 [shape = 'u8[131072]{0}', space=vmem, size = 0x20000, scoped, tag = 'output window, operand 0']
    %16 = vsyncpa [#allocation4], 0
    %s17 = scalar_lea.sflag [#allocation4], 1
    %18 = vsyncpa %s17, 0
    %19 = vsyncpa [#allocation7], 0
    %20 = vsyncpa [#allocation5], 0
    %s21 = scalar_lea.sflag [#allocation5], 1
    %22 = vsyncpa %s21, 0
    loop: start=0, step=1, limit=4
    $region2: #{tpu_custom_call.1} parent=1 // loop_pre_header
      _
    $region3: #{tpu_custom_call.1} parent=1 // loop_header
      %s24 = sphi 0, %s28
      %p25 = scmp.ge.s32.totalorder %s24, 4
      %s34 = sphi 0, %s36
      %s37 = sphi 0, %s34
      %s38 = sphi 0, %s37
      %s54 = sphi 0, %s38
      %s58 = sphi 0, %s58
      %s60 = sphi 0, %s58
      %s61 = sphi 0, %s60
      %s75 = sphi 0, %s61
      %s79 = sphi 0, %s79
      %s81 = sphi 0, %s79
      %s82 = sphi 0, %s81
      %s96 = sphi 0, %s82
      %s100 = sphi 0, %s100
      %s102 = sphi 0, %s100
      %s103 = sphi 0, %s102
      %s117 = sphi 0, %s103
      %s121 = sphi 0, %s121
      %s123 = sphi 0, %s121
      %s124 = sphi 0, %s123
      %s138 = sphi 0, %s124
      %s142 = sphi 0, %s142
      %s144 = sphi 0, %s142
      %s145 = sphi 0, %s144
      %s159 = sphi 0, %s145
      %s163 = sphi 0, %s163
      %s165 = sphi 0, %s163
      %s166 = sphi 0, %s165
      %s180 = sphi 0, %s166
      %s184 = sphi 0, %s184
      %s186 = sphi 0, %s184
      %s187 = sphi 0, %s186
      %s201 = sphi 0, %s187
      %s205 = sphi 0, %s205
      %s207 = sphi 0, %s205
      %s208 = sphi 0, %s207
      %s222 = sphi 0, %s208
      %s226 = sphi 0, %s226
      %s228 = sphi 0, %s226
      %s229 = sphi 0, %s228
      %s243 = sphi 0, %s229
      %s247 = sphi 0, %s247
      %s249 = sphi 0, %s247
      %s250 = sphi 0, %s249
      %s264 = sphi 0, %s250
      %s270 = sphi 0, %s272
      %s273 = sphi 0, %s270
      %s274 = sphi 0, %s273
      %s290 = sphi 0, %s274
    $region4: #{tpu_custom_call.1} parent=1 // loop_header_branch
      %27 = sbr.rel (%p25) target = $region8
    $region5: #{tpu_custom_call.1} parent=1 // loop_body
      %s29 = ssub.s32 %s24, 1
      %s30 = ssub.s32 %s24, 2
      %s31 = sadd.s32 %s24, 1
      %s32 = ssub.s32 %s24, %s31
      %p33 = scmp.eq.s32.totalorder %s32, 0
      %s35 = sadd.s32 %s34, 1
      %s36 = scalar_select %p33, %s34, %s35
      %p39 = pneg %p33
      %p40 = scmp.eq.s32.totalorder %s24, 1
      %p41 = por %p39, %p40
      %p42 = scmp.ne.s32.totalorder %s34, %s37
      %p43 = scmp.eq.s32.totalorder %s24, 0
      %p44 = por %p42, %p43
      %p45 = scmp.ne.s32.totalorder %s34, %s37
      %p46 = scmp.eq.s32.totalorder %s29, 1
      %p47 = por %p45, %p46
      %p48 = scmp.ne.s32.totalorder %s37, %s38
      %p49 = scmp.eq.s32.totalorder %s29, 0
      %p50 = por %p48, %p49
      %p51 = scmp.ne.s32.totalorder %s37, %s38
      %p52 = scmp.eq.s32.totalorder %s30, 1
      %p53 = por %p51, %p52
      %p55 = scmp.ne.s32.totalorder %s38, %s54
      %p56 = scmp.eq.s32.totalorder %s30, 0
      %p57 = por %p55, %p56
      %s59 = sadd.s32 %s58, 1
      %p62 = scmp.eq.s32.totalorder %s24, 1
      %p63 = scmp.ne.s32.totalorder %s58, %s60
      %p64 = scmp.eq.s32.totalorder %s24, 0
      %p65 = por %p63, %p64
      %p66 = scmp.ne.s32.totalorder %s58, %s60
      %p67 = scmp.eq.s32.totalorder %s29, 1
      %p68 = por %p66, %p67
      %p69 = scmp.ne.s32.totalorder %s60, %s61
      %p70 = scmp.eq.s32.totalorder %s29, 0
      %p71 = por %p69, %p70
      %p72 = scmp.ne.s32.totalorder %s60, %s61
      %p73 = scmp.eq.s32.totalorder %s30, 1
      %p74 = por %p72, %p73
      %p76 = scmp.ne.s32.totalorder %s61, %s75
      %p77 = scmp.eq.s32.totalorder %s30, 0
      %p78 = por %p76, %p77
      %s80 = sadd.s32 %s79, 1
      %p83 = scmp.eq.s32.totalorder %s24, 1
      %p84 = scmp.ne.s32.totalorder %s79, %s81
      %p85 = scmp.eq.s32.totalorder %s24, 0
      %p86 = por %p84, %p85
      %p87 = scmp.ne.s32.totalorder %s79, %s81
      %p88 = scmp.eq.s32.totalorder %s29, 1
      %p89 = por %p87, %p88
      %p90 = scmp.ne.s32.totalorder %s81, %s82
      %p91 = scmp.eq.s32.totalorder %s29, 0
      %p92 = por %p90, %p91
      %p93 = scmp.ne.s32.totalorder %s81, %s82
      %p94 = scmp.eq.s32.totalorder %s30, 1
      %p95 = por %p93, %p94
      %p97 = scmp.ne.s32.totalorder %s82, %s96
      %p98 = scmp.eq.s32.totalorder %s30, 0
      %p99 = por %p97, %p98
      %s101 = sadd.s32 %s100, 1
      %p104 = scmp.eq.s32.totalorder %s24, 1
      %p105 = scmp.ne.s32.totalorder %s100, %s102
      %p106 = scmp.eq.s32.totalorder %s24, 0
      %p107 = por %p105, %p106
      %p108 = scmp.ne.s32.totalorder %s100, %s102
      %p109 = scmp.eq.s32.totalorder %s29, 1
      %p110 = por %p108, %p109
      %p111 = scmp.ne.s32.totalorder %s102, %s103
      %p112 = scmp.eq.s32.totalorder %s29, 0
      %p113 = por %p111, %p112
      %p114 = scmp.ne.s32.totalorder %s102, %s103
      %p115 = scmp.eq.s32.totalorder %s30, 1
      %p116 = por %p114, %p115
      %p118 = scmp.ne.s32.totalorder %s103, %s117
      %p119 = scmp.eq.s32.totalorder %s30, 0
      %p120 = por %p118, %p119
      %s122 = sadd.s32 %s121, 1
      %p125 = scmp.eq.s32.totalorder %s24, 1
      %p126 = scmp.ne.s32.totalorder %s121, %s123
      %p127 = scmp.eq.s32.totalorder %s24, 0
      %p128 = por %p126, %p127
      %p129 = scmp.ne.s32.totalorder %s121, %s123
      %p130 = scmp.eq.s32.totalorder %s29, 1
      %p131 = por %p129, %p130
      %p132 = scmp.ne.s32.totalorder %s123, %s124
      %p133 = scmp.eq.s32.totalorder %s29, 0
      %p134 = por %p132, %p133
      %p135 = scmp.ne.s32.totalorder %s123, %s124
      %p136 = scmp.eq.s32.totalorder %s30, 1
      %p137 = por %p135, %p136
      %p139 = scmp.ne.s32.totalorder %s124, %s138
      %p140 = scmp.eq.s32.totalorder %s30, 0
      %p141 = por %p139, %p140
      %s143 = sadd.s32 %s142, 1
      %p146 = scmp.eq.s32.totalorder %s24, 1
      %p147 = scmp.ne.s32.totalorder %s142, %s144
      %p148 = scmp.eq.s32.totalorder %s24, 0
      %p149 = por %p147, %p148
      %p150 = scmp.ne.s32.totalorder %s142, %s144
      %p151 = scmp.eq.s32.totalorder %s29, 1
      %p152 = por %p150, %p151
      %p153 = scmp.ne.s32.totalorder %s144, %s145
      %p154 = scmp.eq.s32.totalorder %s29, 0
      %p155 = por %p153, %p154
      %p156 = scmp.ne.s32.totalorder %s144, %s145
      %p157 = scmp.eq.s32.totalorder %s30, 1
      %p158 = por %p156, %p157
      %p160 = scmp.ne.s32.totalorder %s145, %s159
      %p161 = scmp.eq.s32.totalorder %s30, 0
      %p162 = por %p160, %p161
      %s164 = sadd.s32 %s163, 1
      %p167 = scmp.eq.s32.totalorder %s24, 1
      %p168 = scmp.ne.s32.totalorder %s163, %s165
      %p169 = scmp.eq.s32.totalorder %s24, 0
      %p170 = por %p168, %p169
      %p171 = scmp.ne.s32.totalorder %s163, %s165
      %p172 = scmp.eq.s32.totalorder %s29, 1
      %p173 = por %p171, %p172
      %p174 = scmp.ne.s32.totalorder %s165, %s166
      %p175 = scmp.eq.s32.totalorder %s29, 0
      %p176 = por %p174, %p175
      %p177 = scmp.ne.s32.totalorder %s165, %s166
      %p178 = scmp.eq.s32.totalorder %s30, 1
      %p179 = por %p177, %p178
      %p181 = scmp.ne.s32.totalorder %s166, %s180
      %p182 = scmp.eq.s32.totalorder %s30, 0
      %p183 = por %p181, %p182
      %s185 = sadd.s32 %s184, 1
      %p188 = scmp.eq.s32.totalorder %s24, 1
      %p189 = scmp.ne.s32.totalorder %s184, %s186
      %p190 = scmp.eq.s32.totalorder %s24, 0
      %p191 = por %p189, %p190
      %p192 = scmp.ne.s32.totalorder %s184, %s186
      %p193 = scmp.eq.s32.totalorder %s29, 1
      %p194 = por %p192, %p193
      %p195 = scmp.ne.s32.totalorder %s186, %s187
      %p196 = scmp.eq.s32.totalorder %s29, 0
      %p197 = por %p195, %p196
      %p198 = scmp.ne.s32.totalorder %s186, %s187
      %p199 = scmp.eq.s32.totalorder %s30, 1
      %p200 = por %p198, %p199
      %p202 = scmp.ne.s32.totalorder %s187, %s201
      %p203 = scmp.eq.s32.totalorder %s30, 0
      %p204 = por %p202, %p203
      %s206 = sadd.s32 %s205, 1
      %p209 = scmp.eq.s32.totalorder %s24, 1
      %p210 = scmp.ne.s32.totalorder %s205, %s207
      %p211 = scmp.eq.s32.totalorder %s24, 0
      %p212 = por %p210, %p211
      %p213 = scmp.ne.s32.totalorder %s205, %s207
      %p214 = scmp.eq.s32.totalorder %s29, 1
      %p215 = por %p213, %p214
      %p216 = scmp.ne.s32.totalorder %s207, %s208
      %p217 = scmp.eq.s32.totalorder %s29, 0
      %p218 = por %p216, %p217
      %p219 = scmp.ne.s32.totalorder %s207, %s208
      %p220 = scmp.eq.s32.totalorder %s30, 1
      %p221 = por %p219, %p220
      %p223 = scmp.ne.s32.totalorder %s208, %s222
      %p224 = scmp.eq.s32.totalorder %s30, 0
      %p225 = por %p223, %p224
      %s227 = sadd.s32 %s226, 1
      %p230 = scmp.eq.s32.totalorder %s24, 1
      %p231 = scmp.ne.s32.totalorder %s226, %s228
      %p232 = scmp.eq.s32.totalorder %s24, 0
      %p233 = por %p231, %p232
      %p234 = scmp.ne.s32.totalorder %s226, %s228
      %p235 = scmp.eq.s32.totalorder %s29, 1
      %p236 = por %p234, %p235
      %p237 = scmp.ne.s32.totalorder %s228, %s229
      %p238 = scmp.eq.s32.totalorder %s29, 0
      %p239 = por %p237, %p238
      %p240 = scmp.ne.s32.totalorder %s228, %s229
      %p241 = scmp.eq.s32.totalorder %s30, 1
      %p242 = por %p240, %p241
      %p244 = scmp.ne.s32.totalorder %s229, %s243
      %p245 = scmp.eq.s32.totalorder %s30, 0
      %p246 = por %p244, %p245
      %s248 = sadd.s32 %s247, 1
      %p251 = scmp.eq.s32.totalorder %s24, 1
      %p252 = scmp.ne.s32.totalorder %s247, %s249
      %p253 = scmp.eq.s32.totalorder %s24, 0
      %p254 = por %p252, %p253
      %p255 = scmp.ne.s32.totalorder %s247, %s249
      %p256 = scmp.eq.s32.totalorder %s29, 1
      %p257 = por %p255, %p256
      %p258 = scmp.ne.s32.totalorder %s249, %s250
      %p259 = scmp.eq.s32.totalorder %s29, 0
      %p260 = por %p258, %p259
      %p261 = scmp.ne.s32.totalorder %s249, %s250
      %p262 = scmp.eq.s32.totalorder %s30, 1
      %p263 = por %p261, %p262
      %p265 = scmp.ne.s32.totalorder %s250, %s264
      %p266 = scmp.eq.s32.totalorder %s30, 0
      %p267 = por %p265, %p266
      %s268 = ssub.s32 %s24, %s31
      %p269 = scmp.eq.s32.totalorder %s268, 0
      %s271 = sadd.s32 %s270, 1
      %s272 = scalar_select %p269, %s270, %s271
      %p275 = pneg %p269
      %p276 = scmp.eq.s32.totalorder %s24, 1
      %p277 = por %p275, %p276
      %p278 = scmp.ne.s32.totalorder %s270, %s273
      %p279 = scmp.eq.s32.totalorder %s24, 0
      %p280 = por %p278, %p279
      %p281 = scmp.ne.s32.totalorder %s270, %s273
      %p282 = scmp.eq.s32.totalorder %s29, 1
      %p283 = por %p281, %p282
      %p284 = scmp.ne.s32.totalorder %s273, %s274
      %p285 = scmp.eq.s32.totalorder %s29, 0
      %p286 = por %p284, %p285
      %p287 = scmp.ne.s32.totalorder %s273, %s274
      %p288 = scmp.eq.s32.totalorder %s30, 1
      %p289 = por %p287, %p288
      %p291 = scmp.ne.s32.totalorder %s274, %s290
      %p292 = scmp.eq.s32.totalorder %s30, 0
      %p293 = por %p291, %p292
      %p294 = scmp.le.s32.totalorder 1, %s24
      %p295 = scmp.lt.s32.totalorder %s24, 3
      %p296 = pnand %p294, %p295
      %p297 = pneg %p296
      // Predicated region
      $region9: #{tpu_custom_call.1} parent=5 // pred_check
        _
      $region10: #{tpu_custom_call.1} parent=5 // pred_check_branch
        %299 = sbr.rel (%p296) target = $region12
      $region11: #{tpu_custom_call.1} parent=5 // pred_region
        %s300 = ssub.s32 %s24, 1
        // Predicated region
        $region13: #{tpu_custom_call.1} parent=11 // pred_check
          %p301 = pneg %p71
        $region14: #{tpu_custom_call.1} parent=11 // pred_check_branch
          %303 = sbr.rel (%p301) target = $region16
        $region15: #{tpu_custom_call.1} parent=11 // pred_region
          _
        $region16: #{tpu_custom_call.1} parent=11 // pred_fallthru
          _
        // Predicated region
        $region17: #{tpu_custom_call.1} parent=11 // pred_check
          %p304 = pneg %p92
        $region18: #{tpu_custom_call.1} parent=11 // pred_check_branch
          %306 = sbr.rel (%p304) target = $region20
        $region19: #{tpu_custom_call.1} parent=11 // pred_region
          _
        $region20: #{tpu_custom_call.1} parent=11 // pred_fallthru
          _
        // Predicated region
        $region21: #{tpu_custom_call.1} parent=11 // pred_check
          %p307 = pneg %p113
        $region22: #{tpu_custom_call.1} parent=11 // pred_check_branch
          %309 = sbr.rel (%p307) target = $region24
        $region23: #{tpu_custom_call.1} parent=11 // pred_region
          _
        $region24: #{tpu_custom_call.1} parent=11 // pred_fallthru
          _
        // Predicated region
        $region25: #{tpu_custom_call.1} parent=11 // pred_check
          %p310 = pneg %p134
        $region26: #{tpu_custom_call.1} parent=11 // pred_check_branch
          %312 = sbr.rel (%p310) target = $region28
        $region27: #{tpu_custom_call.1} parent=11 // pred_region
          _
        $region28: #{tpu_custom_call.1} parent=11 // pred_fallthru
          _
        // Predicated region
        $region29: #{tpu_custom_call.1} parent=11 // pred_check
          %p313 = pneg %p155
        $region30: #{tpu_custom_call.1} parent=11 // pred_check_branch
          %315 = sbr.rel (%p313) target = $region32
        $region31: #{tpu_custom_call.1} parent=11 // pred_region
          _
        $region32: #{tpu_custom_call.1} parent=11 // pred_fallthru
          _
        // Predicated region
        $region33: #{tpu_custom_call.1} parent=11 // pred_check
          %p316 = pneg %p176
        $region34: #{tpu_custom_call.1} parent=11 // pred_check_branch
          %318 = sbr.rel (%p316) target = $region36
        $region35: #{tpu_custom_call.1} parent=11 // pred_region
          %320 = vsyncadd [#allocation7], 0
          %s321 = sshll.u32 %s6, 4
          %s322 = int_to_ptr.hbm [resolvable:$true] %s321
          %s323 = sshll.u32 [#allocation6], 4
          %s324 = int_to_ptr.vmem [resolvable:$true] %s323
          %329 = dma.hbm_to_vmem [thread:$0]  %s322, 768, %s324, [#allocation7], 192, 192, 12
        $region36: #{tpu_custom_call.1} parent=11 // pred_fallthru
          _
        // Predicated region
        $region37: #{tpu_custom_call.1} parent=11 // pred_check
          %p330 = pneg %p197
        $region38: #{tpu_custom_call.1} parent=11 // pred_check_branch
          %332 = sbr.rel (%p330) target = $region40
        $region39: #{tpu_custom_call.1} parent=11 // pred_region
          _
        $region40: #{tpu_custom_call.1} parent=11 // pred_fallthru
          _
        // Predicated region
        $region41: #{tpu_custom_call.1} parent=11 // pred_check
          %p333 = pneg %p218
        $region42: #{tpu_custom_call.1} parent=11 // pred_check_branch
          %335 = sbr.rel (%p333) target = $region44
        $region43: #{tpu_custom_call.1} parent=11 // pred_region
          _
        $region44: #{tpu_custom_call.1} parent=11 // pred_fallthru
          _
        // Predicated region
        $region45: #{tpu_custom_call.1} parent=11 // pred_check
          %p336 = pneg %p239
        $region46: #{tpu_custom_call.1} parent=11 // pred_check_branch
          %338 = sbr.rel (%p336) target = $region48
        $region47: #{tpu_custom_call.1} parent=11 // pred_region
          _
        $region48: #{tpu_custom_call.1} parent=11 // pred_fallthru
          _
        // Predicated region
        $region49: #{tpu_custom_call.1} parent=11 // pred_check
          %p339 = pneg %p260
        $region50: #{tpu_custom_call.1} parent=11 // pred_check_branch
          %341 = sbr.rel (%p339) target = $region52
        $region51: #{tpu_custom_call.1} parent=11 // pred_region
          _
        $region52: #{tpu_custom_call.1} parent=11 // pred_fallthru
          _
      $region12: #{tpu_custom_call.1} parent=5 // pred_fallthru
        _
      %p342 = scmp.lt.s32.totalorder %s24, 2
      // Predicated region
      $region53: #{tpu_custom_call.1} parent=5 // pred_check
        %p343 = pneg %p342
      $region54: #{tpu_custom_call.1} parent=5 // pred_check_branch
        %345 = sbr.rel (%p343) target = $region56
      $region55: #{tpu_custom_call.1} parent=5 // pred_region
        // Predicated region
        $region57: #{tpu_custom_call.1} parent=55 // pred_check
          %p346 = pneg %p44
        $region58: #{tpu_custom_call.1} parent=55 // pred_check_branch
          %348 = sbr.rel (%p346) target = $region60
        $region59: #{tpu_custom_call.1} parent=55 // pred_region
          %s349 = sand.u32 %s34, 1
          %s350 = scalar_lea.sflag [#allocation4], %s349
          %s351 = sand.u32 %s34, 1
          %s352 = smul.addr %s351, 128
          %s353 = scalar_lea.vmem [#allocation3], %s352
          %s354 = smul.u32 4, %s24
          %356 = vsyncadd %s350, 0
          %s357 = smul.addr %s354, 8
          %s358 = scalar_lea.hbm %s0, %s357
          %s359 = sshll.u32 %s358, 4
          %s360 = int_to_ptr.hbm [resolvable:$true] %s359
          %s361 = sshll.u32 %s353, 4
          %s362 = int_to_ptr.vmem [resolvable:$true] %s361
          %367 = dma.hbm_to_vmem [thread:$0]  %s360, 2048, %s362, %s350, 1024, 512, 32
        $region60: #{tpu_custom_call.1} parent=55 // pred_fallthru
          _
      $region56: #{tpu_custom_call.1} parent=5 // pred_fallthru
        _
      %p368 = scmp.le.s32.totalorder 1, %s24
      %p369 = scmp.lt.s32.totalorder %s24, 3
      %p370 = pnand %p368, %p369
      %p371 = pneg %p370
      // Predicated region
      $region61: #{tpu_custom_call.1} parent=5 // pred_check
        _
      $region62: #{tpu_custom_call.1} parent=5 // pred_check_branch
        %373 = sbr.rel (%p370) target = $region64
      $region63: #{tpu_custom_call.1} parent=5 // pred_region
        %s374 = ssub.s32 %s24, 1
        %s375 = sand.u32 %s37, 1
        %s376 = scalar_lea.sflag [#allocation4], %s375
        %s377 = sand.u32 %s37, 1
        %s378 = smul.addr %s377, 128
        %s379 = scalar_lea.vmem [#allocation3], %s378
        // Predicated region
        $region65: #{tpu_custom_call.1} parent=63 // pred_check
          %p380 = pneg %p50
        $region66: #{tpu_custom_call.1} parent=63 // pred_check_branch
          %382 = sbr.rel (%p380) target = $region68
        $region67: #{tpu_custom_call.1} parent=63 // pred_region
          %384 = dma.done %s376, 2048
        $region68: #{tpu_custom_call.1} parent=63 // pred_fallthru
          _
        // Predicated region
        $region69: #{tpu_custom_call.1} parent=63 // pred_check
          %p385 = pneg %p176
        $region70: #{tpu_custom_call.1} parent=63 // pred_check_branch
          %387 = sbr.rel (%p385) target = $region72
        $region71: #{tpu_custom_call.1} parent=63 // pred_region
          %389 = dma.done [#allocation7], 768
        $region72: #{tpu_custom_call.1} parent=63 // pred_fallthru
          _
        %s390 = sand.u32 %s37, 1
        %s391 = scalar_lea.sflag [#allocation4], %s390
        %s392 = sand.u32 %s37, 1
        %s393 = smul.addr %s392, 128
        %s394 = scalar_lea.vmem [#allocation3], %s393
        %p395 = pneg %p50
        %p396 = pneg %p47
        %p397 = pneg %p71
        %p398 = pneg %p68
        %p399 = pneg %p92
        %p400 = pneg %p89
        %p401 = pneg %p113
        %p402 = pneg %p110
        %p403 = pneg %p134
        %p404 = pneg %p131
        %p405 = pneg %p155
        %p406 = pneg %p152
        %p407 = pneg %p176
        %p408 = pneg %p173
        %p409 = pneg %p197
        %p410 = pneg %p194
        %p411 = pneg %p218
        %p412 = pneg %p215
        %p413 = pneg %p239
        %p414 = pneg %p236
        %p415 = pneg %p260
        %p416 = pneg %p257
        %p417 = pneg %p286
        %p418 = pneg %p283
        %s419 = sand.u32 %s273, 1
        %s420 = scalar_lea.sflag [#allocation5], %s419
        %s421 = sand.u32 %s273, 1
        %s422 = smul.addr %s421, 128
        %s423 = scalar_lea.vmem [#allocation8], %s422
        %s424 = smul.u32 4, %s29
        %s425 = smul.u32 4, %s29
        %v427 = vld [vmem:[%s379] sm:$0xff]
        %v428 = vld [vmem:[%s379 + $0x8] sm:$0xff]
        %v429 = vld [vmem:[%s379 + $0x10] sm:$0xff]
        %v430 = vld [vmem:[%s379 + $0x18] sm:$0xff]
        %v431 = vld [vmem:[%s379 + $0x20] sm:$0xff]
        %v432 = vld [vmem:[%s379 + $0x28] sm:$0xff]
        %v433 = vld [vmem:[%s379 + $0x30] sm:$0xff]
        %v434 = vld [vmem:[%s379 + $0x38] sm:$0xff]
        %v435 = vld [vmem:[%s379 + $0x40] sm:$0xff]
        %v436 = vld [vmem:[%s379 + $0x48] sm:$0xff]
        %v437 = vld [vmem:[%s379 + $0x50] sm:$0xff]
        %v438 = vld [vmem:[%s379 + $0x58] sm:$0xff]
        %v439 = vld [vmem:[%s379 + $0x60] sm:$0xff]
        %v440 = vld [vmem:[%s379 + $0x68] sm:$0xff]
        %v441 = vld [vmem:[%s379 + $0x70] sm:$0xff]
        %v442 = vld [vmem:[%s379 + $0x78] sm:$0xff]
        %v443 = vld [vmem:[%s2] sm:$0xff]
        %v444 = vld [vmem:[%s2 + $0x8] sm:$0xff]
        %v445 = vld [vmem:[%s2 + $0x10] sm:$0xff]
        %v446 = vld [vmem:[%s2 + $0x18] sm:$0xff]
        %448 = vset.pattern.permute.xlu0 0
        %449 = vperm.xlu0 %448, %v443
        %v450 = vpop.permute.xlu0 %449
        %453 = vset.pattern.permute.xlu0 0
        %454 = vperm.xlu0 %453, %v444
        %v455 = vpop.permute.xlu0 %454
        %458 = vset.pattern.permute.xlu0 0
        %459 = vperm.xlu0 %458, %v445
        %v460 = vpop.permute.xlu0 %459
        %463 = vset.pattern.permute.xlu0 0
        %464 = vperm.xlu0 %463, %v446
        %v465 = vpop.permute.xlu0 %464
        %v467 = vmul.f32 %v427, %v450
        %v468 = vmul.f32 %v428, %v450
        %v469 = vmul.f32 %v429, %v450
        %v470 = vmul.f32 %v430, %v450
        %v471 = vmul.f32 %v431, %v455
        %v472 = vmul.f32 %v432, %v455
        %v473 = vmul.f32 %v433, %v455
        %v474 = vmul.f32 %v434, %v455
        %v475 = vmul.f32 %v435, %v460
        %v476 = vmul.f32 %v436, %v460
        %v477 = vmul.f32 %v437, %v460
        %v478 = vmul.f32 %v438, %v460
        %v479 = vmul.f32 %v439, %v465
        %v480 = vmul.f32 %v440, %v465
        %v481 = vmul.f32 %v441, %v465
        %v482 = vmul.f32 %v442, %v465
        %v483 = vld [vmem:[%s3] sm:$0xff]
        %v484 = vld [vmem:[%s3 + $0x8] sm:$0xff]
        %v485 = vld [vmem:[%s3 + $0x10] sm:$0xff]
        %v486 = vld [vmem:[%s3 + $0x18] sm:$0xff]
        %488 = vset.pattern.permute.xlu0 0
        %489 = vperm.xlu0 %488, %v483
        %v490 = vpop.permute.xlu0 %489
        %493 = vset.pattern.permute.xlu0 0
        %494 = vperm.xlu0 %493, %v484
        %v495 = vpop.permute.xlu0 %494
        %498 = vset.pattern.permute.xlu0 0
        %499 = vperm.xlu0 %498, %v485
        %v500 = vpop.permute.xlu0 %499
        %503 = vset.pattern.permute.xlu0 0
        %504 = vperm.xlu0 %503, %v486
        %v505 = vpop.permute.xlu0 %504
        %v507 = vadd.f32 %v467, %v490
        %v508 = vadd.f32 %v468, %v490
        %v509 = vadd.f32 %v469, %v490
        %v510 = vadd.f32 %v470, %v490
        %v511 = vadd.f32 %v471, %v495
        %v512 = vadd.f32 %v472, %v495
        %v513 = vadd.f32 %v473, %v495
        %v514 = vadd.f32 %v474, %v495
        %v515 = vadd.f32 %v475, %v500
        %v516 = vadd.f32 %v476, %v500
        %v517 = vadd.f32 %v477, %v500
        %v518 = vadd.f32 %v478, %v500
        %v519 = vadd.f32 %v479, %v505
        %v520 = vadd.f32 %v480, %v505
        %v521 = vadd.f32 %v481, %v505
        %v522 = vadd.f32 %v482, %v505
        %v523 = vmax.f32 %v507, 0.0
        %v524 = vmax.f32 %v508, 0.0
        %v525 = vmax.f32 %v509, 0.0
        %v526 = vmax.f32 %v510, 0.0
        %v527 = vmax.f32 %v511, 0.0
        %v528 = vmax.f32 %v512, 0.0
        %v529 = vmax.f32 %v513, 0.0
        %v530 = vmax.f32 %v514, 0.0
        %v531 = vmax.f32 %v515, 0.0
        %v532 = vmax.f32 %v516, 0.0
        %v533 = vmax.f32 %v517, 0.0
        %v534 = vmax.f32 %v518, 0.0
        %v535 = vmax.f32 %v519, 0.0
        %v536 = vmax.f32 %v520, 0.0
        %v537 = vmax.f32 %v521, 0.0
        %v538 = vmax.f32 %v522, 0.0
        %539 = vrot.lane.b32.xlu0 %v523, 17
        %v540 = vpop.permute.xlu0 %539
        %541 = vrot.lane.b32.xlu0 %v527, 17
        %v542 = vpop.permute.xlu0 %541
        %543 = vrot.lane.b32.xlu0 %v531, 17
        %v544 = vpop.permute.xlu0 %543
        %545 = vrot.lane.b32.xlu0 %v535, 17
        %v546 = vpop.permute.xlu0 %545
        %547 = vrot.lane.b32.xlu0 %v524, 17
        %v548 = vpop.permute.xlu0 %547
        %549 = vrot.lane.b32.xlu0 %v528, 17
        %v550 = vpop.permute.xlu0 %549
        %551 = vrot.lane.b32.xlu0 %v532, 17
        %v552 = vpop.permute.xlu0 %551
        %553 = vrot.lane.b32.xlu0 %v536, 17
        %v554 = vpop.permute.xlu0 %553
        %555 = vrot.lane.b32.xlu0 %v525, 17
        %v556 = vpop.permute.xlu0 %555
        %557 = vrot.lane.b32.xlu0 %v529, 17
        %v558 = vpop.permute.xlu0 %557
        %559 = vrot.lane.b32.xlu0 %v533, 17
        %v560 = vpop.permute.xlu0 %559
        %561 = vrot.lane.b32.xlu0 %v537, 17
        %v562 = vpop.permute.xlu0 %561
        %563 = vrot.lane.b32.xlu0 %v526, 17
        %v564 = vpop.permute.xlu0 %563
        %565 = vrot.lane.b32.xlu0 %v530, 17
        %v566 = vpop.permute.xlu0 %565
        %567 = vrot.lane.b32.xlu0 %v534, 17
        %v568 = vpop.permute.xlu0 %567
        %569 = vrot.lane.b32.xlu0 %v538, 17
        %v570 = vpop.permute.xlu0 %569
        %v571 = vlaneseq
        %v572 = vand.u32 %v571, 127
        %vm573 = vcmp.lt.s32.totalorder %v572, 17
        %v574 = vsel %vm573, %v556, %v564
        %v575 = vsel %vm573, %v558, %v566
        %v576 = vsel %vm573, %v560, %v568
        %v577 = vsel %vm573, %v562, %v570
        %v578 = vsel %vm573, %v548, %v556
        %v579 = vsel %vm573, %v550, %v558
        %v580 = vsel %vm573, %v552, %v560
        %v581 = vsel %vm573, %v554, %v562
        %v582 = vsel %vm573, %v540, %v548
        %v583 = vsel %vm573, %v542, %v550
        %v584 = vsel %vm573, %v544, %v552
        %v585 = vsel %vm573, %v546, %v554
        %v586 = vsel %vm573, %v564, %v540
        %v587 = vsel %vm573, %v566, %v542
        %v588 = vsel %vm573, %v568, %v544
        %v589 = vsel %vm573, %v570, %v546
        %v590 = vld [vmem:[%s1] ss:$8 sm:$0xf]
        %v592 = vperm.slane %v590, 0
        %v593 = vperm.slane %v590, 1
        %v594 = vperm.slane %v590, 2
        %v595 = vperm.slane %v590, 3
        %v600 = vmul.f32 %v586, %v592
        %v601 = vmul.f32 %v582, %v593
        %v602 = vmul.f32 %v578, %v594
        %v603 = vmul.f32 %v574, %v595
        %v604 = vmul.f32 %v587, %v592
        %v605 = vmul.f32 %v583, %v593
        %v606 = vmul.f32 %v579, %v594
        %v607 = vmul.f32 %v575, %v595
        %v608 = vmul.f32 %v588, %v592
        %v609 = vmul.f32 %v584, %v593
        %v610 = vmul.f32 %v580, %v594
        %v611 = vmul.f32 %v576, %v595
        %v612 = vmul.f32 %v589, %v592
        %v613 = vmul.f32 %v585, %v593
        %v614 = vmul.f32 %v581, %v594
        %v615 = vmul.f32 %v577, %v595
        %v616 = vpack.c.bf16 %v601, %v600
        %v617 = vpack.c.bf16 %v603, %v602
        %v618 = vpack.c.bf16 %v605, %v604
        %v619 = vpack.c.bf16 %v607, %v606
        %v620 = vpack.c.bf16 %v609, %v608
        %v621 = vpack.c.bf16 %v611, %v610
        %v622 = vpack.c.bf16 %v613, %v612
        %v623 = vpack.c.bf16 %v615, %v614
        %624 = vst [vmem:[#allocation2] sm:$0xff] %v616
        %625 = vst [vmem:[#allocation2 + $0x8] sm:$0xff] %v617
        %626 = vst [vmem:[#allocation2 + $0x10] sm:$0xff] %v618
        %627 = vst [vmem:[#allocation2 + $0x18] sm:$0xff] %v619
        %628 = vst [vmem:[#allocation2 + $0x20] sm:$0xff] %v620
        %629 = vst [vmem:[#allocation2 + $0x28] sm:$0xff] %v621
        %630 = vst [vmem:[#allocation2 + $0x30] sm:$0xff] %v622
        %631 = vst [vmem:[#allocation2 + $0x38] sm:$0xff] %v623
        %632 = vrot.lane.b32.xlu0 %v523, 16
        %v633 = vpop.permute.xlu0 %632
        %634 = vrot.lane.b32.xlu0 %v527, 16
        %v635 = vpop.permute.xlu0 %634
        %636 = vrot.lane.b32.xlu0 %v531, 16
        %v637 = vpop.permute.xlu0 %636
        %638 = vrot.lane.b32.xlu0 %v535, 16
        %v639 = vpop.permute.xlu0 %638
        %640 = vrot.lane.b32.xlu0 %v524, 16
        %v641 = vpop.permute.xlu0 %640
        %642 = vrot.lane.b32.xlu0 %v528, 16
        %v643 = vpop.permute.xlu0 %642
        %644 = vrot.lane.b32.xlu0 %v532, 16
        %v645 = vpop.permute.xlu0 %644
        %646 = vrot.lane.b32.xlu0 %v536, 16
        %v647 = vpop.permute.xlu0 %646
        %648 = vrot.lane.b32.xlu0 %v525, 16
        %v649 = vpop.permute.xlu0 %648
        %650 = vrot.lane.b32.xlu0 %v529, 16
        %v651 = vpop.permute.xlu0 %650
        %652 = vrot.lane.b32.xlu0 %v533, 16
        %v653 = vpop.permute.xlu0 %652
        %654 = vrot.lane.b32.xlu0 %v537, 16
        %v655 = vpop.permute.xlu0 %654
        %656 = vrot.lane.b32.xlu0 %v526, 16
        %v657 = vpop.permute.xlu0 %656
        %658 = vrot.lane.b32.xlu0 %v530, 16
        %v659 = vpop.permute.xlu0 %658
        %660 = vrot.lane.b32.xlu0 %v534, 16
        %v661 = vpop.permute.xlu0 %660
        %662 = vrot.lane.b32.xlu0 %v538, 16
        %v663 = vpop.permute.xlu0 %662
        %vm664 = vcmp.lt.s32.totalorder %v572, 16
        %v665 = vsel %vm664, %v649, %v657
        %v666 = vsel %vm664, %v651, %v659
        %v667 = vsel %vm664, %v653, %v661
        %v668 = vsel %vm664, %v655, %v663
        %v669 = vsel %vm664, %v641, %v649
        %v670 = vsel %vm664, %v643, %v651
        %v671 = vsel %vm664, %v645, %v653
        %v672 = vsel %vm664, %v647, %v655
        %v673 = vsel %vm664, %v633, %v641
        %v674 = vsel %vm664, %v635, %v643
        %v675 = vsel %vm664, %v637, %v645
        %v676 = vsel %vm664, %v639, %v647
        %v677 = vsel %vm664, %v657, %v633
        %v678 = vsel %vm664, %v659, %v635
        %v679 = vsel %vm664, %v661, %v637
        %v680 = vsel %vm664, %v663, %v639
        %s681 = scalar_lea.vmem %s1, 1
        %v682 = vld [vmem:[%s681] ss:$8 sm:$0xf]
        %v684 = vperm.slane %v682, 0
        %v685 = vperm.slane %v682, 1
        %v686 = vperm.slane %v682, 2
        %v687 = vperm.slane %v682, 3
        %v692 = vmul.f32 %v677, %v684
        %v693 = vmul.f32 %v673, %v685
        %v694 = vmul.f32 %v669, %v686
        %v695 = vmul.f32 %v665, %v687
        %v696 = vmul.f32 %v678, %v684
        %v697 = vmul.f32 %v674, %v685
        %v698 = vmul.f32 %v670, %v686
        %v699 = vmul.f32 %v666, %v687
        %v700 = vmul.f32 %v679, %v684
        %v701 = vmul.f32 %v675, %v685
        %v702 = vmul.f32 %v671, %v686
        %v703 = vmul.f32 %v667, %v687
        %v704 = vmul.f32 %v680, %v684
        %v705 = vmul.f32 %v676, %v685
        %v706 = vmul.f32 %v672, %v686
        %v707 = vmul.f32 %v668, %v687
        %v708 = vpack.c.bf16 %v693, %v692
        %v709 = vpack.c.bf16 %v695, %v694
        %v710 = vpack.c.bf16 %v697, %v696
        %v711 = vpack.c.bf16 %v699, %v698
        %v712 = vpack.c.bf16 %v701, %v700
        %v713 = vpack.c.bf16 %v703, %v702
        %v714 = vpack.c.bf16 %v705, %v704
        %v715 = vpack.c.bf16 %v707, %v706
        %716 = vst [vmem:[#allocation2 + $0x40] sm:$0xff] %v708
        %717 = vst [vmem:[#allocation2 + $0x48] sm:$0xff] %v709
        %718 = vst [vmem:[#allocation2 + $0x50] sm:$0xff] %v710
        %719 = vst [vmem:[#allocation2 + $0x58] sm:$0xff] %v711
        %720 = vst [vmem:[#allocation2 + $0x60] sm:$0xff] %v712
        %721 = vst [vmem:[#allocation2 + $0x68] sm:$0xff] %v713
        %722 = vst [vmem:[#allocation2 + $0x70] sm:$0xff] %v714
        %723 = vst [vmem:[#allocation2 + $0x78] sm:$0xff] %v715
        %724 = vrot.lane.b32.xlu0 %v523, 15
        %v725 = vpop.permute.xlu0 %724
        %726 = vrot.lane.b32.xlu0 %v527, 15
        %v727 = vpop.permute.xlu0 %726
        %728 = vrot.lane.b32.xlu0 %v531, 15
        %v729 = vpop.permute.xlu0 %728
        %730 = vrot.lane.b32.xlu0 %v535, 15
        %v731 = vpop.permute.xlu0 %730
        %732 = vrot.lane.b32.xlu0 %v524, 15
        %v733 = vpop.permute.xlu0 %732
        %734 = vrot.lane.b32.xlu0 %v528, 15
        %v735 = vpop.permute.xlu0 %734
        %736 = vrot.lane.b32.xlu0 %v532, 15
        %v737 = vpop.permute.xlu0 %736
        %738 = vrot.lane.b32.xlu0 %v536, 15
        %v739 = vpop.permute.xlu0 %738
        %740 = vrot.lane.b32.xlu0 %v525, 15
        %v741 = vpop.permute.xlu0 %740
        %742 = vrot.lane.b32.xlu0 %v529, 15
        %v743 = vpop.permute.xlu0 %742
        %744 = vrot.lane.b32.xlu0 %v533, 15
        %v745 = vpop.permute.xlu0 %744
        %746 = vrot.lane.b32.xlu0 %v537, 15
        %v747 = vpop.permute.xlu0 %746
        %748 = vrot.lane.b32.xlu0 %v526, 15
        %v749 = vpop.permute.xlu0 %748
        %750 = vrot.lane.b32.xlu0 %v530, 15
        %v751 = vpop.permute.xlu0 %750
        %752 = vrot.lane.b32.xlu0 %v534, 15
        %v753 = vpop.permute.xlu0 %752
        %754 = vrot.lane.b32.xlu0 %v538, 15
        %v755 = vpop.permute.xlu0 %754
        %vm756 = vcmp.lt.s32.totalorder %v572, 15
        %v757 = vsel %vm756, %v741, %v749
        %v758 = vsel %vm756, %v743, %v751
        %v759 = vsel %vm756, %v745, %v753
        %v760 = vsel %vm756, %v747, %v755
        %v761 = vsel %vm756, %v733, %v741
        %v762 = vsel %vm756, %v735, %v743
        %v763 = vsel %vm756, %v737, %v745
        %v764 = vsel %vm756, %v739, %v747
        %v765 = vsel %vm756, %v725, %v733
        %v766 = vsel %vm756, %v727, %v735
        %v767 = vsel %vm756, %v729, %v737
        %v768 = vsel %vm756, %v731, %v739
        %v769 = vsel %vm756, %v749, %v725
        %v770 = vsel %vm756, %v751, %v727
        %v771 = vsel %vm756, %v753, %v729
        %v772 = vsel %vm756, %v755, %v731
        %s773 = scalar_lea.vmem %s1, 2
        %v774 = vld [vmem:[%s773] ss:$8 sm:$0xf]
        %v776 = vperm.slane %v774, 0
        %v777 = vperm.slane %v774, 1
        %v778 = vperm.slane %v774, 2
        %v779 = vperm.slane %v774, 3
        %v784 = vmul.f32 %v769, %v776
        %v785 = vmul.f32 %v765, %v777
        %v786 = vmul.f32 %v761, %v778
        %v787 = vmul.f32 %v757, %v779
        %v788 = vmul.f32 %v770, %v776
        %v789 = vmul.f32 %v766, %v777
        %v790 = vmul.f32 %v762, %v778
        %v791 = vmul.f32 %v758, %v779
        %v792 = vmul.f32 %v771, %v776
        %v793 = vmul.f32 %v767, %v777
        %v794 = vmul.f32 %v763, %v778
        %v795 = vmul.f32 %v759, %v779
        %v796 = vmul.f32 %v772, %v776
        %v797 = vmul.f32 %v768, %v777
        %v798 = vmul.f32 %v764, %v778
        %v799 = vmul.f32 %v760, %v779
        %v800 = vpack.c.bf16 %v785, %v784
        %v801 = vpack.c.bf16 %v787, %v786
        %v802 = vpack.c.bf16 %v789, %v788
        %v803 = vpack.c.bf16 %v791, %v790
        %v804 = vpack.c.bf16 %v793, %v792
        %v805 = vpack.c.bf16 %v795, %v794
        %v806 = vpack.c.bf16 %v797, %v796
        %v807 = vpack.c.bf16 %v799, %v798
        %808 = vst [vmem:[#allocation2 + $0x80] sm:$0xff] %v800
        %809 = vst [vmem:[#allocation2 + $0x88] sm:$0xff] %v801
        %810 = vst [vmem:[#allocation2 + $0x90] sm:$0xff] %v802
        %811 = vst [vmem:[#allocation2 + $0x98] sm:$0xff] %v803
        %812 = vst [vmem:[#allocation2 + $0xa0] sm:$0xff] %v804
        %813 = vst [vmem:[#allocation2 + $0xa8] sm:$0xff] %v805
        %814 = vst [vmem:[#allocation2 + $0xb0] sm:$0xff] %v806
        %815 = vst [vmem:[#allocation2 + $0xb8] sm:$0xff] %v807
        %816 = vrot.lane.b32.xlu0 %v523, 1
        %v817 = vpop.permute.xlu0 %816
        %818 = vrot.lane.b32.xlu0 %v527, 1
        %v819 = vpop.permute.xlu0 %818
        %820 = vrot.lane.b32.xlu0 %v531, 1
        %v821 = vpop.permute.xlu0 %820
        %822 = vrot.lane.b32.xlu0 %v535, 1
        %v823 = vpop.permute.xlu0 %822
        %824 = vrot.lane.b32.xlu0 %v524, 1
        %v825 = vpop.permute.xlu0 %824
        %826 = vrot.lane.b32.xlu0 %v528, 1
        %v827 = vpop.permute.xlu0 %826
        %828 = vrot.lane.b32.xlu0 %v532, 1
        %v829 = vpop.permute.xlu0 %828
        %830 = vrot.lane.b32.xlu0 %v536, 1
        %v831 = vpop.permute.xlu0 %830
        %832 = vrot.lane.b32.xlu0 %v525, 1
        %v833 = vpop.permute.xlu0 %832
        %834 = vrot.lane.b32.xlu0 %v529, 1
        %v835 = vpop.permute.xlu0 %834
        %836 = vrot.lane.b32.xlu0 %v533, 1
        %v837 = vpop.permute.xlu0 %836
        %838 = vrot.lane.b32.xlu0 %v537, 1
        %v839 = vpop.permute.xlu0 %838
        %840 = vrot.lane.b32.xlu0 %v526, 1
        %v841 = vpop.permute.xlu0 %840
        %842 = vrot.lane.b32.xlu0 %v530, 1
        %v843 = vpop.permute.xlu0 %842
        %844 = vrot.lane.b32.xlu0 %v534, 1
        %v845 = vpop.permute.xlu0 %844
        %846 = vrot.lane.b32.xlu0 %v538, 1
        %v847 = vpop.permute.xlu0 %846
        %vm848 = vcmp.lt.s32.totalorder %v572, 1
        %v849 = vsel %vm848, %v833, %v841
        %v850 = vsel %vm848, %v835, %v843
        %v851 = vsel %vm848, %v837, %v845
        %v852 = vsel %vm848, %v839, %v847
        %v853 = vsel %vm848, %v825, %v833
        %v854 = vsel %vm848, %v827, %v835
        %v855 = vsel %vm848, %v829, %v837
        %v856 = vsel %vm848, %v831, %v839
        %v857 = vsel %vm848, %v817, %v825
        %v858 = vsel %vm848, %v819, %v827
        %v859 = vsel %vm848, %v821, %v829
        %v860 = vsel %vm848, %v823, %v831
        %v861 = vsel %vm848, %v841, %v817
        %v862 = vsel %vm848, %v843, %v819
        %v863 = vsel %vm848, %v845, %v821
        %v864 = vsel %vm848, %v847, %v823
        %s865 = scalar_lea.vmem %s1, 3
        %v866 = vld [vmem:[%s865] ss:$8 sm:$0xf]
        %v868 = vperm.slane %v866, 0
        %v869 = vperm.slane %v866, 1
        %v870 = vperm.slane %v866, 2
        %v871 = vperm.slane %v866, 3
        %v876 = vmul.f32 %v861, %v868
        %v877 = vmul.f32 %v857, %v869
        %v878 = vmul.f32 %v853, %v870
        %v879 = vmul.f32 %v849, %v871
        %v880 = vmul.f32 %v862, %v868
        %v881 = vmul.f32 %v858, %v869
        %v882 = vmul.f32 %v854, %v870
        %v883 = vmul.f32 %v850, %v871
        %v884 = vmul.f32 %v863, %v868
        %v885 = vmul.f32 %v859, %v869
        %v886 = vmul.f32 %v855, %v870
        %v887 = vmul.f32 %v851, %v871
        %v888 = vmul.f32 %v864, %v868
        %v889 = vmul.f32 %v860, %v869
        %v890 = vmul.f32 %v856, %v870
        %v891 = vmul.f32 %v852, %v871
        %v892 = vpack.c.bf16 %v877, %v876
        %v893 = vpack.c.bf16 %v879, %v878
        %v894 = vpack.c.bf16 %v881, %v880
        %v895 = vpack.c.bf16 %v883, %v882
        %v896 = vpack.c.bf16 %v885, %v884
        %v897 = vpack.c.bf16 %v887, %v886
        %v898 = vpack.c.bf16 %v889, %v888
        %v899 = vpack.c.bf16 %v891, %v890
        %900 = vst [vmem:[#allocation2 + $0xc0] sm:$0xff] %v892
        %901 = vst [vmem:[#allocation2 + $0xc8] sm:$0xff] %v893
        %902 = vst [vmem:[#allocation2 + $0xd0] sm:$0xff] %v894
        %903 = vst [vmem:[#allocation2 + $0xd8] sm:$0xff] %v895
        %904 = vst [vmem:[#allocation2 + $0xe0] sm:$0xff] %v896
        %905 = vst [vmem:[#allocation2 + $0xe8] sm:$0xff] %v897
        %906 = vst [vmem:[#allocation2 + $0xf0] sm:$0xff] %v898
        %907 = vst [vmem:[#allocation2 + $0xf8] sm:$0xff] %v899
        %v908 = vpack.c.bf16 %v524, %v523
        %v909 = vpack.c.bf16 %v526, %v525
        %v910 = vpack.c.bf16 %v528, %v527
        %v911 = vpack.c.bf16 %v530, %v529
        %v912 = vpack.c.bf16 %v532, %v531
        %v913 = vpack.c.bf16 %v534, %v533
        %v914 = vpack.c.bf16 %v536, %v535
        %v915 = vpack.c.bf16 %v538, %v537
        %916 = vst [vmem:[#allocation2 + $0x100] sm:$0xff] %v908
        %917 = vst [vmem:[#allocation2 + $0x108] sm:$0xff] %v909
        %918 = vst [vmem:[#allocation2 + $0x110] sm:$0xff] %v910
        %919 = vst [vmem:[#allocation2 + $0x118] sm:$0xff] %v911
        %920 = vst [vmem:[#allocation2 + $0x120] sm:$0xff] %v912
        %921 = vst [vmem:[#allocation2 + $0x128] sm:$0xff] %v913
        %922 = vst [vmem:[#allocation2 + $0x130] sm:$0xff] %v914
        %923 = vst [vmem:[#allocation2 + $0x138] sm:$0xff] %v915
        %924 = vrot.lane.b32.xlu0 %v523, 127
        %v925 = vpop.permute.xlu0 %924
        %926 = vrot.lane.b32.xlu0 %v527, 127
        %v927 = vpop.permute.xlu0 %926
        %928 = vrot.lane.b32.xlu0 %v531, 127
        %v929 = vpop.permute.xlu0 %928
        %930 = vrot.lane.b32.xlu0 %v535, 127
        %v931 = vpop.permute.xlu0 %930
        %932 = vrot.lane.b32.xlu0 %v524, 127
        %v933 = vpop.permute.xlu0 %932
        %934 = vrot.lane.b32.xlu0 %v528, 127
        %v935 = vpop.permute.xlu0 %934
        %936 = vrot.lane.b32.xlu0 %v532, 127
        %v937 = vpop.permute.xlu0 %936
        %938 = vrot.lane.b32.xlu0 %v536, 127
        %v939 = vpop.permute.xlu0 %938
        %940 = vrot.lane.b32.xlu0 %v525, 127
        %v941 = vpop.permute.xlu0 %940
        %942 = vrot.lane.b32.xlu0 %v529, 127
        %v943 = vpop.permute.xlu0 %942
        %944 = vrot.lane.b32.xlu0 %v533, 127
        %v945 = vpop.permute.xlu0 %944
        %946 = vrot.lane.b32.xlu0 %v537, 127
        %v947 = vpop.permute.xlu0 %946
        %948 = vrot.lane.b32.xlu0 %v526, 127
        %v949 = vpop.permute.xlu0 %948
        %950 = vrot.lane.b32.xlu0 %v530, 127
        %v951 = vpop.permute.xlu0 %950
        %952 = vrot.lane.b32.xlu0 %v534, 127
        %v953 = vpop.permute.xlu0 %952
        %954 = vrot.lane.b32.xlu0 %v538, 127
        %v955 = vpop.permute.xlu0 %954
        %vm956 = vcmp.lt.s32.totalorder %v572, 127
        %v957 = vsel %vm956, %v941, %v949
        %v958 = vsel %vm956, %v943, %v951
        %v959 = vsel %vm956, %v945, %v953
        %v960 = vsel %vm956, %v947, %v955
        %v961 = vsel %vm956, %v933, %v941
        %v962 = vsel %vm956, %v935, %v943
        %v963 = vsel %vm956, %v937, %v945
        %v964 = vsel %vm956, %v939, %v947
        %v965 = vsel %vm956, %v925, %v933
        %v966 = vsel %vm956, %v927, %v935
        %v967 = vsel %vm956, %v929, %v937
        %v968 = vsel %vm956, %v931, %v939
        %v969 = vsel %vm956, %v949, %v925
        %v970 = vsel %vm956, %v951, %v927
        %v971 = vsel %vm956, %v953, %v929
        %v972 = vsel %vm956, %v955, %v931
        %s973 = scalar_lea.vmem %s1, 5
        %v974 = vld [vmem:[%s973] ss:$8 sm:$0xf]
        %v976 = vperm.slane %v974, 0
        %v977 = vperm.slane %v974, 1
        %v978 = vperm.slane %v974, 2
        %v979 = vperm.slane %v974, 3
        %v984 = vmul.f32 %v965, %v976
        %v985 = vmul.f32 %v961, %v977
        %v986 = vmul.f32 %v957, %v978
        %v987 = vmul.f32 %v969, %v979
        %v988 = vmul.f32 %v966, %v976
        %v989 = vmul.f32 %v962, %v977
        %v990 = vmul.f32 %v958, %v978
        %v991 = vmul.f32 %v970, %v979
        %v992 = vmul.f32 %v967, %v976
        %v993 = vmul.f32 %v963, %v977
        %v994 = vmul.f32 %v959, %v978
        %v995 = vmul.f32 %v971, %v979
        %v996 = vmul.f32 %v968, %v976
        %v997 = vmul.f32 %v964, %v977
        %v998 = vmul.f32 %v960, %v978
        %v999 = vmul.f32 %v972, %v979
        %v1000 = vpack.c.bf16 %v985, %v984
        %v1001 = vpack.c.bf16 %v987, %v986
        %v1002 = vpack.c.bf16 %v989, %v988
        %v1003 = vpack.c.bf16 %v991, %v990
        %v1004 = vpack.c.bf16 %v993, %v992
        %v1005 = vpack.c.bf16 %v995, %v994
        %v1006 = vpack.c.bf16 %v997, %v996
        %v1007 = vpack.c.bf16 %v999, %v998
        %1008 = vst [vmem:[#allocation2 + $0x140] sm:$0xff] %v1000
        %1009 = vst [vmem:[#allocation2 + $0x148] sm:$0xff] %v1001
        %1010 = vst [vmem:[#allocation2 + $0x150] sm:$0xff] %v1002
        %1011 = vst [vmem:[#allocation2 + $0x158] sm:$0xff] %v1003
        %1012 = vst [vmem:[#allocation2 + $0x160] sm:$0xff] %v1004
        %1013 = vst [vmem:[#allocation2 + $0x168] sm:$0xff] %v1005
        %1014 = vst [vmem:[#allocation2 + $0x170] sm:$0xff] %v1006
        %1015 = vst [vmem:[#allocation2 + $0x178] sm:$0xff] %v1007
        %1016 = vrot.lane.b32.xlu0 %v523, 113
        %v1017 = vpop.permute.xlu0 %1016
        %1018 = vrot.lane.b32.xlu0 %v527, 113
        %v1019 = vpop.permute.xlu0 %1018
        %1020 = vrot.lane.b32.xlu0 %v531, 113
        %v1021 = vpop.permute.xlu0 %1020
        %1022 = vrot.lane.b32.xlu0 %v535, 113
        %v1023 = vpop.permute.xlu0 %1022
        %1024 = vrot.lane.b32.xlu0 %v524, 113
        %v1025 = vpop.permute.xlu0 %1024
        %1026 = vrot.lane.b32.xlu0 %v528, 113
        %v1027 = vpop.permute.xlu0 %1026
        %1028 = vrot.lane.b32.xlu0 %v532, 113
        %v1029 = vpop.permute.xlu0 %1028
        %1030 = vrot.lane.b32.xlu0 %v536, 113
        %v1031 = vpop.permute.xlu0 %1030
        %1032 = vrot.lane.b32.xlu0 %v525, 113
        %v1033 = vpop.permute.xlu0 %1032
        %1034 = vrot.lane.b32.xlu0 %v529, 113
        %v1035 = vpop.permute.xlu0 %1034
        %1036 = vrot.lane.b32.xlu0 %v533, 113
        %v1037 = vpop.permute.xlu0 %1036
        %1038 = vrot.lane.b32.xlu0 %v537, 113
        %v1039 = vpop.permute.xlu0 %1038
        %1040 = vrot.lane.b32.xlu0 %v526, 113
        %v1041 = vpop.permute.xlu0 %1040
        %1042 = vrot.lane.b32.xlu0 %v530, 113
        %v1043 = vpop.permute.xlu0 %1042
        %1044 = vrot.lane.b32.xlu0 %v534, 113
        %v1045 = vpop.permute.xlu0 %1044
        %1046 = vrot.lane.b32.xlu0 %v538, 113
        %v1047 = vpop.permute.xlu0 %1046
        %vm1048 = vcmp.lt.s32.totalorder %v572, 113
        %v1049 = vsel %vm1048, %v1033, %v1041
        %v1050 = vsel %vm1048, %v1035, %v1043
        %v1051 = vsel %vm1048, %v1037, %v1045
        %v1052 = vsel %vm1048, %v1039, %v1047
        %v1053 = vsel %vm1048, %v1025, %v1033
        %v1054 = vsel %vm1048, %v1027, %v1035
        %v1055 = vsel %vm1048, %v1029, %v1037
        %v1056 = vsel %vm1048, %v1031, %v1039
        %v1057 = vsel %vm1048, %v1017, %v1025
        %v1058 = vsel %vm1048, %v1019, %v1027
        %v1059 = vsel %vm1048, %v1021, %v1029
        %v1060 = vsel %vm1048, %v1023, %v1031
        %v1061 = vsel %vm1048, %v1041, %v1017
        %v1062 = vsel %vm1048, %v1043, %v1019
        %v1063 = vsel %vm1048, %v1045, %v1021
        %v1064 = vsel %vm1048, %v1047, %v1023
        %s1065 = scalar_lea.vmem %s1, 6
        %v1066 = vld [vmem:[%s1065] ss:$8 sm:$0xf]
        %v1068 = vperm.slane %v1066, 0
        %v1069 = vperm.slane %v1066, 1
        %v1070 = vperm.slane %v1066, 2
        %v1071 = vperm.slane %v1066, 3
        %v1076 = vmul.f32 %v1057, %v1068
        %v1077 = vmul.f32 %v1053, %v1069
        %v1078 = vmul.f32 %v1049, %v1070
        %v1079 = vmul.f32 %v1061, %v1071
        %v1080 = vmul.f32 %v1058, %v1068
        %v1081 = vmul.f32 %v1054, %v1069
        %v1082 = vmul.f32 %v1050, %v1070
        %v1083 = vmul.f32 %v1062, %v1071
        %v1084 = vmul.f32 %v1059, %v1068
        %v1085 = vmul.f32 %v1055, %v1069
        %v1086 = vmul.f32 %v1051, %v1070
        %v1087 = vmul.f32 %v1063, %v1071
        %v1088 = vmul.f32 %v1060, %v1068
        %v1089 = vmul.f32 %v1056, %v1069
        %v1090 = vmul.f32 %v1052, %v1070
        %v1091 = vmul.f32 %v1064, %v1071
        %v1092 = vpack.c.bf16 %v1077, %v1076
        %v1093 = vpack.c.bf16 %v1079, %v1078
        %v1094 = vpack.c.bf16 %v1081, %v1080
        %v1095 = vpack.c.bf16 %v1083, %v1082
        %v1096 = vpack.c.bf16 %v1085, %v1084
        %v1097 = vpack.c.bf16 %v1087, %v1086
        %v1098 = vpack.c.bf16 %v1089, %v1088
        %v1099 = vpack.c.bf16 %v1091, %v1090
        %1100 = vst [vmem:[#allocation2 + $0x180] sm:$0xff] %v1092
        %1101 = vst [vmem:[#allocation2 + $0x188] sm:$0xff] %v1093
        %1102 = vst [vmem:[#allocation2 + $0x190] sm:$0xff] %v1094
        %1103 = vst [vmem:[#allocation2 + $0x198] sm:$0xff] %v1095
        %1104 = vst [vmem:[#allocation2 + $0x1a0] sm:$0xff] %v1096
        %1105 = vst [vmem:[#allocation2 + $0x1a8] sm:$0xff] %v1097
        %1106 = vst [vmem:[#allocation2 + $0x1b0] sm:$0xff] %v1098
        %1107 = vst [vmem:[#allocation2 + $0x1b8] sm:$0xff] %v1099
        %1108 = vrot.lane.b32.xlu0 %v523, 112
        %v1109 = vpop.permute.xlu0 %1108
        %1110 = vrot.lane.b32.xlu0 %v527, 112
        %v1111 = vpop.permute.xlu0 %1110
        %1112 = vrot.lane.b32.xlu0 %v531, 112
        %v1113 = vpop.permute.xlu0 %1112
        %1114 = vrot.lane.b32.xlu0 %v535, 112
        %v1115 = vpop.permute.xlu0 %1114
        %1116 = vrot.lane.b32.xlu0 %v524, 112
        %v1117 = vpop.permute.xlu0 %1116
        %1118 = vrot.lane.b32.xlu0 %v528, 112
        %v1119 = vpop.permute.xlu0 %1118
        %1120 = vrot.lane.b32.xlu0 %v532, 112
        %v1121 = vpop.permute.xlu0 %1120
        %1122 = vrot.lane.b32.xlu0 %v536, 112
        %v1123 = vpop.permute.xlu0 %1122
        %1124 = vrot.lane.b32.xlu0 %v525, 112
        %v1125 = vpop.permute.xlu0 %1124
        %1126 = vrot.lane.b32.xlu0 %v529, 112
        %v1127 = vpop.permute.xlu0 %1126
        %1128 = vrot.lane.b32.xlu0 %v533, 112
        %v1129 = vpop.permute.xlu0 %1128
        %1130 = vrot.lane.b32.xlu0 %v537, 112
        %v1131 = vpop.permute.xlu0 %1130
        %1132 = vrot.lane.b32.xlu0 %v526, 112
        %v1133 = vpop.permute.xlu0 %1132
        %1134 = vrot.lane.b32.xlu0 %v530, 112
        %v1135 = vpop.permute.xlu0 %1134
        %1136 = vrot.lane.b32.xlu0 %v534, 112
        %v1137 = vpop.permute.xlu0 %1136
        %1138 = vrot.lane.b32.xlu0 %v538, 112
        %v1139 = vpop.permute.xlu0 %1138
        %vm1140 = vcmp.lt.s32.totalorder %v572, 112
        %v1141 = vsel %vm1140, %v1125, %v1133
        %v1142 = vsel %vm1140, %v1127, %v1135
        %v1143 = vsel %vm1140, %v1129, %v1137
        %v1144 = vsel %vm1140, %v1131, %v1139
        %v1145 = vsel %vm1140, %v1117, %v1125
        %v1146 = vsel %vm1140, %v1119, %v1127
        %v1147 = vsel %vm1140, %v1121, %v1129
        %v1148 = vsel %vm1140, %v1123, %v1131
        %v1149 = vsel %vm1140, %v1109, %v1117
        %v1150 = vsel %vm1140, %v1111, %v1119
        %v1151 = vsel %vm1140, %v1113, %v1121
        %v1152 = vsel %vm1140, %v1115, %v1123
        %v1153 = vsel %vm1140, %v1133, %v1109
        %v1154 = vsel %vm1140, %v1135, %v1111
        %v1155 = vsel %vm1140, %v1137, %v1113
        %v1156 = vsel %vm1140, %v1139, %v1115
        %s1157 = scalar_lea.vmem %s1, 7
        %v1158 = vld [vmem:[%s1157] ss:$8 sm:$0xf]
        %v1160 = vperm.slane %v1158, 0
        %v1161 = vperm.slane %v1158, 1
        %v1162 = vperm.slane %v1158, 2
        %v1163 = vperm.slane %v1158, 3
        %v1168 = vmul.f32 %v1149, %v1160
        %v1169 = vmul.f32 %v1145, %v1161
        %v1170 = vmul.f32 %v1141, %v1162
        %v1171 = vmul.f32 %v1153, %v1163
        %v1172 = vmul.f32 %v1150, %v1160
        %v1173 = vmul.f32 %v1146, %v1161
        %v1174 = vmul.f32 %v1142, %v1162
        %v1175 = vmul.f32 %v1154, %v1163
        %v1176 = vmul.f32 %v1151, %v1160
        %v1177 = vmul.f32 %v1147, %v1161
        %v1178 = vmul.f32 %v1143, %v1162
        %v1179 = vmul.f32 %v1155, %v1163
        %v1180 = vmul.f32 %v1152, %v1160
        %v1181 = vmul.f32 %v1148, %v1161
        %v1182 = vmul.f32 %v1144, %v1162
        %v1183 = vmul.f32 %v1156, %v1163
        %v1184 = vpack.c.bf16 %v1169, %v1168
        %v1185 = vpack.c.bf16 %v1171, %v1170
        %v1186 = vpack.c.bf16 %v1173, %v1172
        %v1187 = vpack.c.bf16 %v1175, %v1174
        %v1188 = vpack.c.bf16 %v1177, %v1176
        %v1189 = vpack.c.bf16 %v1179, %v1178
        %v1190 = vpack.c.bf16 %v1181, %v1180
        %v1191 = vpack.c.bf16 %v1183, %v1182
        %1192 = vst [vmem:[#allocation2 + $0x1c0] sm:$0xff] %v1184
        %1193 = vst [vmem:[#allocation2 + $0x1c8] sm:$0xff] %v1185
        %1194 = vst [vmem:[#allocation2 + $0x1d0] sm:$0xff] %v1186
        %1195 = vst [vmem:[#allocation2 + $0x1d8] sm:$0xff] %v1187
        %1196 = vst [vmem:[#allocation2 + $0x1e0] sm:$0xff] %v1188
        %1197 = vst [vmem:[#allocation2 + $0x1e8] sm:$0xff] %v1189
        %1198 = vst [vmem:[#allocation2 + $0x1f0] sm:$0xff] %v1190
        %1199 = vst [vmem:[#allocation2 + $0x1f8] sm:$0xff] %v1191
        %1200 = vrot.lane.b32.xlu0 %v523, 111
        %v1201 = vpop.permute.xlu0 %1200
        %1202 = vrot.lane.b32.xlu0 %v527, 111
        %v1203 = vpop.permute.xlu0 %1202
        %1204 = vrot.lane.b32.xlu0 %v531, 111
        %v1205 = vpop.permute.xlu0 %1204
        %1206 = vrot.lane.b32.xlu0 %v535, 111
        %v1207 = vpop.permute.xlu0 %1206
        %1208 = vrot.lane.b32.xlu0 %v524, 111
        %v1209 = vpop.permute.xlu0 %1208
        %1210 = vrot.lane.b32.xlu0 %v528, 111
        %v1211 = vpop.permute.xlu0 %1210
        %1212 = vrot.lane.b32.xlu0 %v532, 111
        %v1213 = vpop.permute.xlu0 %1212
        %1214 = vrot.lane.b32.xlu0 %v536, 111
        %v1215 = vpop.permute.xlu0 %1214
        %1216 = vrot.lane.b32.xlu0 %v525, 111
        %v1217 = vpop.permute.xlu0 %1216
        %1218 = vrot.lane.b32.xlu0 %v529, 111
        %v1219 = vpop.permute.xlu0 %1218
        %1220 = vrot.lane.b32.xlu0 %v533, 111
        %v1221 = vpop.permute.xlu0 %1220
        %1222 = vrot.lane.b32.xlu0 %v537, 111
        %v1223 = vpop.permute.xlu0 %1222
        %1224 = vrot.lane.b32.xlu0 %v526, 111
        %v1225 = vpop.permute.xlu0 %1224
        %1226 = vrot.lane.b32.xlu0 %v530, 111
        %v1227 = vpop.permute.xlu0 %1226
        %1228 = vrot.lane.b32.xlu0 %v534, 111
        %v1229 = vpop.permute.xlu0 %1228
        %1230 = vrot.lane.b32.xlu0 %v538, 111
        %v1231 = vpop.permute.xlu0 %1230
        %vm1232 = vcmp.lt.s32.totalorder %v572, 111
        %v1233 = vsel %vm1232, %v1217, %v1225
        %v1234 = vsel %vm1232, %v1219, %v1227
        %v1235 = vsel %vm1232, %v1221, %v1229
        %v1236 = vsel %vm1232, %v1223, %v1231
        %v1237 = vsel %vm1232, %v1209, %v1217
        %v1238 = vsel %vm1232, %v1211, %v1219
        %v1239 = vsel %vm1232, %v1213, %v1221
        %v1240 = vsel %vm1232, %v1215, %v1223
        %v1241 = vsel %vm1232, %v1201, %v1209
        %v1242 = vsel %vm1232, %v1203, %v1211
        %v1243 = vsel %vm1232, %v1205, %v1213
        %v1244 = vsel %vm1232, %v1207, %v1215
        %v1245 = vsel %vm1232, %v1225, %v1201
        %v1246 = vsel %vm1232, %v1227, %v1203
        %v1247 = vsel %vm1232, %v1229, %v1205
        %v1248 = vsel %vm1232, %v1231, %v1207
        %s1249 = scalar_lea.vmem %s1, 32
        %v1250 = vld [vmem:[%s1249] ss:$8 sm:$0xf]
        %v1252 = vperm.slane %v1250, 0
        %v1253 = vperm.slane %v1250, 1
        %v1254 = vperm.slane %v1250, 2
        %v1255 = vperm.slane %v1250, 3
        %v1260 = vmul.f32 %v1241, %v1252
        %v1261 = vmul.f32 %v1237, %v1253
        %v1262 = vmul.f32 %v1233, %v1254
        %v1263 = vmul.f32 %v1245, %v1255
        %v1264 = vmul.f32 %v1242, %v1252
        %v1265 = vmul.f32 %v1238, %v1253
        %v1266 = vmul.f32 %v1234, %v1254
        %v1267 = vmul.f32 %v1246, %v1255
        %v1268 = vmul.f32 %v1243, %v1252
        %v1269 = vmul.f32 %v1239, %v1253
        %v1270 = vmul.f32 %v1235, %v1254
        %v1271 = vmul.f32 %v1247, %v1255
        %v1272 = vmul.f32 %v1244, %v1252
        %v1273 = vmul.f32 %v1240, %v1253
        %v1274 = vmul.f32 %v1236, %v1254
        %v1275 = vmul.f32 %v1248, %v1255
        %v1276 = vpack.c.bf16 %v1261, %v1260
        %v1277 = vpack.c.bf16 %v1263, %v1262
        %v1278 = vpack.c.bf16 %v1265, %v1264
        %v1279 = vpack.c.bf16 %v1267, %v1266
        %v1280 = vpack.c.bf16 %v1269, %v1268
        %v1281 = vpack.c.bf16 %v1271, %v1270
        %v1282 = vpack.c.bf16 %v1273, %v1272
        %v1283 = vpack.c.bf16 %v1275, %v1274
        %1284 = vst [vmem:[#allocation2 + $0x200] sm:$0xff] %v1276
        %1285 = vst [vmem:[#allocation2 + $0x208] sm:$0xff] %v1277
        %1286 = vst [vmem:[#allocation2 + $0x210] sm:$0xff] %v1278
        %1287 = vst [vmem:[#allocation2 + $0x218] sm:$0xff] %v1279
        %1288 = vst [vmem:[#allocation2 + $0x220] sm:$0xff] %v1280
        %1289 = vst [vmem:[#allocation2 + $0x228] sm:$0xff] %v1281
        %1290 = vst [vmem:[#allocation2 + $0x230] sm:$0xff] %v1282
        %1291 = vst [vmem:[#allocation2 + $0x238] sm:$0xff] %v1283
        %v1292 = vld [vmem:[%s4] sm:$0xff]
        %v1293 = vld [vmem:[%s4 + $0x8] sm:$0xf]
        %v1294 = vld [vmem:[%s4 + $0xc] sm:$0xff]
        %v1295 = vld [vmem:[%s4 + $0x14] sm:$0xf]
        %v1296 = vld [vmem:[%s4 + $0x18] sm:$0xff]
        %v1297 = vld [vmem:[%s4 + $0x20] sm:$0xf]
        %v1298 = vld [vmem:[%s4 + $0x24] sm:$0xff]
        %v1299 = vld [vmem:[%s4 + $0x2c] sm:$0xf]
        %v1300 = vld [vmem:[#allocation2] sm:$0xff]
        %v1301 = vld [vmem:[#allocation2 + $0x8] sm:$0xff]
        %v1302 = vld [vmem:[#allocation2 + $0x10] sm:$0xff]
        %v1303 = vld [vmem:[#allocation2 + $0x18] sm:$0xff]
        %v1304 = vld [vmem:[#allocation2 + $0x20] sm:$0xff]
        %v1305 = vld [vmem:[#allocation2 + $0x28] sm:$0xff]
        %v1306 = vld [vmem:[#allocation2 + $0x30] sm:$0xff]
        %v1307 = vld [vmem:[#allocation2 + $0x38] sm:$0xff]
        %v1308 = vld [vmem:[#allocation2 + $0x40] sm:$0xff]
        %v1309 = vld [vmem:[#allocation2 + $0x48] sm:$0xff]
        %v1310 = vld [vmem:[#allocation2 + $0x50] sm:$0xff]
        %v1311 = vld [vmem:[#allocation2 + $0x58] sm:$0xff]
        %v1312 = vld [vmem:[#allocation2 + $0x60] sm:$0xff]
        %v1313 = vld [vmem:[#allocation2 + $0x68] sm:$0xff]
        %v1314 = vld [vmem:[#allocation2 + $0x70] sm:$0xff]
        %v1315 = vld [vmem:[#allocation2 + $0x78] sm:$0xff]
        %v1316 = vld [vmem:[#allocation2 + $0x80] sm:$0xff]
        %v1317 = vld [vmem:[#allocation2 + $0x88] sm:$0xff]
        %v1318 = vld [vmem:[#allocation2 + $0x90] sm:$0xff]
        %v1319 = vld [vmem:[#allocation2 + $0x98] sm:$0xff]
        %v1320 = vld [vmem:[#allocation2 + $0xa0] sm:$0xff]
        %v1321 = vld [vmem:[#allocation2 + $0xa8] sm:$0xff]
        %v1322 = vld [vmem:[#allocation2 + $0xb0] sm:$0xff]
        %v1323 = vld [vmem:[#allocation2 + $0xb8] sm:$0xff]
        %v1324 = vld [vmem:[#allocation2 + $0xc0] sm:$0xff]
        %v1325 = vld [vmem:[#allocation2 + $0xc8] sm:$0xff]
        %v1326 = vld [vmem:[#allocation2 + $0xd0] sm:$0xff]
        %v1327 = vld [vmem:[#allocation2 + $0xd8] sm:$0xff]
        %v1328 = vld [vmem:[#allocation2 + $0xe0] sm:$0xff]
        %v1329 = vld [vmem:[#allocation2 + $0xe8] sm:$0xff]
        %v1330 = vld [vmem:[#allocation2 + $0xf0] sm:$0xff]
        %v1331 = vld [vmem:[#allocation2 + $0xf8] sm:$0xff]
        %v1332 = vld [vmem:[#allocation2 + $0x100] sm:$0xff]
        %v1333 = vld [vmem:[#allocation2 + $0x108] sm:$0xff]
        %v1334 = vld [vmem:[#allocation2 + $0x110] sm:$0xff]
        %v1335 = vld [vmem:[#allocation2 + $0x118] sm:$0xff]
        %v1336 = vld [vmem:[#allocation2 + $0x120] sm:$0xff]
        %v1337 = vld [vmem:[#allocation2 + $0x128] sm:$0xff]
        %v1338 = vld [vmem:[#allocation2 + $0x130] sm:$0xff]
        %v1339 = vld [vmem:[#allocation2 + $0x138] sm:$0xff]
        %v1340 = vld [vmem:[#allocation2 + $0x140] sm:$0xff]
        %v1341 = vld [vmem:[#allocation2 + $0x148] sm:$0xff]
        %v1342 = vld [vmem:[#allocation2 + $0x150] sm:$0xff]
        %v1343 = vld [vmem:[#allocation2 + $0x158] sm:$0xff]
        %v1344 = vld [vmem:[#allocation2 + $0x160] sm:$0xff]
        %v1345 = vld [vmem:[#allocation2 + $0x168] sm:$0xff]
        %v1346 = vld [vmem:[#allocation2 + $0x170] sm:$0xff]
        %v1347 = vld [vmem:[#allocation2 + $0x178] sm:$0xff]
        %v1348 = vld [vmem:[#allocation2 + $0x180] sm:$0xff]
        %v1349 = vld [vmem:[#allocation2 + $0x188] sm:$0xff]
        %v1350 = vld [vmem:[#allocation2 + $0x190] sm:$0xff]
        %v1351 = vld [vmem:[#allocation2 + $0x198] sm:$0xff]
        %v1352 = vld [vmem:[#allocation2 + $0x1a0] sm:$0xff]
        %v1353 = vld [vmem:[#allocation2 + $0x1a8] sm:$0xff]
        %v1354 = vld [vmem:[#allocation2 + $0x1b0] sm:$0xff]
        %v1355 = vld [vmem:[#allocation2 + $0x1b8] sm:$0xff]
        %v1356 = vld [vmem:[#allocation2 + $0x1c0] sm:$0xff]
        %v1357 = vld [vmem:[#allocation2 + $0x1c8] sm:$0xff]
        %v1358 = vld [vmem:[#allocation2 + $0x1d0] sm:$0xff]
        %v1359 = vld [vmem:[#allocation2 + $0x1d8] sm:$0xff]
        %v1360 = vld [vmem:[#allocation2 + $0x1e0] sm:$0xff]
        %v1361 = vld [vmem:[#allocation2 + $0x1e8] sm:$0xff]
        %v1362 = vld [vmem:[#allocation2 + $0x1f0] sm:$0xff]
        %v1363 = vld [vmem:[#allocation2 + $0x1f8] sm:$0xff]
        %v1364 = vld [vmem:[#allocation2 + $0x200] sm:$0xff]
        %v1365 = vld [vmem:[#allocation2 + $0x208] sm:$0xff]
        %v1366 = vld [vmem:[#allocation2 + $0x210] sm:$0xff]
        %v1367 = vld [vmem:[#allocation2 + $0x218] sm:$0xff]
        %v1368 = vld [vmem:[#allocation2 + $0x220] sm:$0xff]
        %v1369 = vld [vmem:[#allocation2 + $0x228] sm:$0xff]
        %v1370 = vld [vmem:[#allocation2 + $0x230] sm:$0xff]
        %v1371 = vld [vmem:[#allocation2 + $0x238] sm:$0xff]
        %v1372 = vld [vmem:[%s5] sm:$0xff]
        %v1373 = vld [vmem:[%s5 + $0x8] sm:$0xff]
        %v1374 = vld [vmem:[%s5 + $0x10] sm:$0xff]
        %v1375 = vld [vmem:[%s5 + $0x18] sm:$0xff]
        %1377 = vset.pattern.permute.xlu0 0
        %1378 = vperm.xlu0 %1377, %v1372
        %v1379 = vpop.permute.xlu0 %1378
        %1382 = vset.pattern.permute.xlu0 0
        %1383 = vperm.xlu0 %1382, %v1373
        %v1384 = vpop.permute.xlu0 %1383
        %1387 = vset.pattern.permute.xlu0 0
        %1388 = vperm.xlu0 %1387, %v1374
        %v1389 = vpop.permute.xlu0 %1388
        %1392 = vset.pattern.permute.xlu0 0
        %1393 = vperm.xlu0 %1392, %v1375
        %v1394 = vpop.permute.xlu0 %1393
        %v1404 = vunpack.c.l.b16 %v1292
        %v1405 = vunpack.c.h.b16 %v1292
        %v1406 = vunpack.c.l.b16 %v1293
        %v1407 = vunpack.c.l.b16 %v1294
        %v1408 = vunpack.c.h.b16 %v1294
        %v1409 = vunpack.c.l.b16 %v1295
        %v1410 = vunpack.c.l.b16 %v1296
        %v1411 = vunpack.c.h.b16 %v1296
        %v1412 = vunpack.c.l.b16 %v1297
        %v1413 = vunpack.c.l.b16 %v1298
        %v1414 = vunpack.c.h.b16 %v1298
        %v1415 = vunpack.c.l.b16 %v1299
        %v1416 = vpack.c.b16 %v1407, %v1404
        %v1417 = vpack.c.b16 %v1408, %v1405
        %v1418 = vpack.c.b16 %v1409, %v1406
        %v1419 = vpack.c.b16 %v1413, %v1410
        %v1420 = vpack.c.b16 %v1414, %v1411
        %v1421 = vpack.c.b16 %v1415, %v1412
        %v1498 = vunpack.c.l.b16 %v1300
        %v1499 = vunpack.c.h.b16 %v1300
        %v1500 = vunpack.c.l.b16 %v1301
        %v1501 = vunpack.c.h.b16 %v1301
        %v1502 = vunpack.c.l.b16 %v1302
        %v1503 = vunpack.c.h.b16 %v1302
        %v1504 = vunpack.c.l.b16 %v1303
        %v1505 = vunpack.c.h.b16 %v1303
        %v1506 = vunpack.c.l.b16 %v1304
        %v1507 = vunpack.c.h.b16 %v1304
        %v1508 = vunpack.c.l.b16 %v1305
        %v1509 = vunpack.c.h.b16 %v1305
        %v1510 = vunpack.c.l.b16 %v1306
        %v1511 = vunpack.c.h.b16 %v1306
        %v1512 = vunpack.c.l.b16 %v1307
        %v1513 = vunpack.c.h.b16 %v1307
        %v1514 = vunpack.c.l.b16 %v1308
        %v1515 = vunpack.c.h.b16 %v1308
        %v1516 = vunpack.c.l.b16 %v1309
        %v1517 = vunpack.c.h.b16 %v1309
        %v1518 = vunpack.c.l.b16 %v1310
        %v1519 = vunpack.c.h.b16 %v1310
        %v1520 = vunpack.c.l.b16 %v1311
        %v1521 = vunpack.c.h.b16 %v1311
        %v1522 = vunpack.c.l.b16 %v1312
        %v1523 = vunpack.c.h.b16 %v1312
        %v1524 = vunpack.c.l.b16 %v1313
        %v1525 = vunpack.c.h.b16 %v1313
        %v1526 = vunpack.c.l.b16 %v1314
        %v1527 = vunpack.c.h.b16 %v1314
        %v1528 = vunpack.c.l.b16 %v1315
        %v1529 = vunpack.c.h.b16 %v1315
        %v1530 = vunpack.c.l.b16 %v1316
        %v1531 = vunpack.c.h.b16 %v1316
        %v1532 = vunpack.c.l.b16 %v1317
        %v1533 = vunpack.c.h.b16 %v1317
        %v1534 = vunpack.c.l.b16 %v1318
        %v1535 = vunpack.c.h.b16 %v1318
        %v1536 = vunpack.c.l.b16 %v1319
        %v1537 = vunpack.c.h.b16 %v1319
        %v1538 = vunpack.c.l.b16 %v1320
        %v1539 = vunpack.c.h.b16 %v1320
        %v1540 = vunpack.c.l.b16 %v1321
        %v1541 = vunpack.c.h.b16 %v1321
        %v1542 = vunpack.c.l.b16 %v1322
        %v1543 = vunpack.c.h.b16 %v1322
        %v1544 = vunpack.c.l.b16 %v1323
        %v1545 = vunpack.c.h.b16 %v1323
        %v1546 = vunpack.c.l.b16 %v1324
        %v1547 = vunpack.c.h.b16 %v1324
        %v1548 = vunpack.c.l.b16 %v1325
        %v1549 = vunpack.c.h.b16 %v1325
        %v1550 = vunpack.c.l.b16 %v1326
        %v1551 = vunpack.c.h.b16 %v1326
        %v1552 = vunpack.c.l.b16 %v1327
        %v1553 = vunpack.c.h.b16 %v1327
        %v1554 = vunpack.c.l.b16 %v1328
        %v1555 = vunpack.c.h.b16 %v1328
        %v1556 = vunpack.c.l.b16 %v1329
        %v1557 = vunpack.c.h.b16 %v1329
        %v1558 = vunpack.c.l.b16 %v1330
        %v1559 = vunpack.c.h.b16 %v1330
        %v1560 = vunpack.c.l.b16 %v1331
        %v1561 = vunpack.c.h.b16 %v1331
        %v1562 = vunpack.c.l.b16 %v1332
        %v1563 = vunpack.c.h.b16 %v1332
        %v1564 = vunpack.c.l.b16 %v1333
        %v1565 = vunpack.c.h.b16 %v1333
        %v1566 = vunpack.c.l.b16 %v1334
        %v1567 = vunpack.c.h.b16 %v1334
        %v1568 = vunpack.c.l.b16 %v1335
        %v1569 = vunpack.c.h.b16 %v1335
        %v1570 = vunpack.c.l.b16 %v1336
        %v1571 = vunpack.c.h.b16 %v1336
        %v1572 = vunpack.c.l.b16 %v1337
        %v1573 = vunpack.c.h.b16 %v1337
        %v1574 = vunpack.c.l.b16 %v1338
        %v1575 = vunpack.c.h.b16 %v1338
        %v1576 = vunpack.c.l.b16 %v1339
        %v1577 = vunpack.c.h.b16 %v1339
        %v1578 = vunpack.c.l.b16 %v1340
        %v1579 = vunpack.c.h.b16 %v1340
        %v1580 = vunpack.c.l.b16 %v1341
        %v1581 = vunpack.c.h.b16 %v1341
        %v1582 = vunpack.c.l.b16 %v1342
        %v1583 = vunpack.c.h.b16 %v1342
        %v1584 = vunpack.c.l.b16 %v1343
        %v1585 = vunpack.c.h.b16 %v1343
        %v1586 = vunpack.c.l.b16 %v1344
        %v1587 = vunpack.c.h.b16 %v1344
        %v1588 = vunpack.c.l.b16 %v1345
        %v1589 = vunpack.c.h.b16 %v1345
        %v1590 = vunpack.c.l.b16 %v1346
        %v1591 = vunpack.c.h.b16 %v1346
        %v1592 = vunpack.c.l.b16 %v1347
        %v1593 = vunpack.c.h.b16 %v1347
        %v1594 = vunpack.c.l.b16 %v1348
        %v1595 = vunpack.c.h.b16 %v1348
        %v1596 = vunpack.c.l.b16 %v1349
        %v1597 = vunpack.c.h.b16 %v1349
        %v1598 = vunpack.c.l.b16 %v1350
        %v1599 = vunpack.c.h.b16 %v1350
        %v1600 = vunpack.c.l.b16 %v1351
        %v1601 = vunpack.c.h.b16 %v1351
        %v1602 = vunpack.c.l.b16 %v1352
        %v1603 = vunpack.c.h.b16 %v1352
        %v1604 = vunpack.c.l.b16 %v1353
        %v1605 = vunpack.c.h.b16 %v1353
        %v1606 = vunpack.c.l.b16 %v1354
        %v1607 = vunpack.c.h.b16 %v1354
        %v1608 = vunpack.c.l.b16 %v1355
        %v1609 = vunpack.c.h.b16 %v1355
        %v1610 = vunpack.c.l.b16 %v1356
        %v1611 = vunpack.c.h.b16 %v1356
        %v1612 = vunpack.c.l.b16 %v1357
        %v1613 = vunpack.c.h.b16 %v1357
        %v1614 = vunpack.c.l.b16 %v1358
        %v1615 = vunpack.c.h.b16 %v1358
        %v1616 = vunpack.c.l.b16 %v1359
        %v1617 = vunpack.c.h.b16 %v1359
        %v1618 = vunpack.c.l.b16 %v1360
        %v1619 = vunpack.c.h.b16 %v1360
        %v1620 = vunpack.c.l.b16 %v1361
        %v1621 = vunpack.c.h.b16 %v1361
        %v1622 = vunpack.c.l.b16 %v1362
        %v1623 = vunpack.c.h.b16 %v1362
        %v1624 = vunpack.c.l.b16 %v1363
        %v1625 = vunpack.c.h.b16 %v1363
        %v1626 = vunpack.c.l.b16 %v1364
        %v1627 = vunpack.c.h.b16 %v1364
        %v1628 = vunpack.c.l.b16 %v1365
        %v1629 = vunpack.c.h.b16 %v1365
        %v1630 = vunpack.c.l.b16 %v1366
        %v1631 = vunpack.c.h.b16 %v1366
        %v1632 = vunpack.c.l.b16 %v1367
        %v1633 = vunpack.c.h.b16 %v1367
        %v1634 = vunpack.c.l.b16 %v1368
        %v1635 = vunpack.c.h.b16 %v1368
        %v1636 = vunpack.c.l.b16 %v1369
        %v1637 = vunpack.c.h.b16 %v1369
        %v1638 = vunpack.c.l.b16 %v1370
        %v1639 = vunpack.c.h.b16 %v1370
        %v1640 = vunpack.c.l.b16 %v1371
        %v1641 = vunpack.c.h.b16 %v1371
        %v1642 = vpack.c.b16 %v1502, %v1498
        %v1643 = vpack.c.b16 %v1503, %v1499
        %v1644 = vpack.c.b16 %v1504, %v1500
        %v1645 = vpack.c.b16 %v1505, %v1501
        %v1646 = vpack.c.b16 %v1510, %v1506
        %v1647 = vpack.c.b16 %v1511, %v1507
        %v1648 = vpack.c.b16 %v1512, %v1508
        %v1649 = vpack.c.b16 %v1513, %v1509
        %v1650 = vpack.c.b16 %v1518, %v1514
        %v1651 = vpack.c.b16 %v1519, %v1515
        %v1652 = vpack.c.b16 %v1520, %v1516
        %v1653 = vpack.c.b16 %v1521, %v1517
        %v1654 = vpack.c.b16 %v1526, %v1522
        %v1655 = vpack.c.b16 %v1527, %v1523
        %v1656 = vpack.c.b16 %v1528, %v1524
        %v1657 = vpack.c.b16 %v1529, %v1525
        %v1658 = vpack.c.b16 %v1534, %v1530
        %v1659 = vpack.c.b16 %v1535, %v1531
        %v1660 = vpack.c.b16 %v1536, %v1532
        %v1661 = vpack.c.b16 %v1537, %v1533
        %v1662 = vpack.c.b16 %v1542, %v1538
        %v1663 = vpack.c.b16 %v1543, %v1539
        %v1664 = vpack.c.b16 %v1544, %v1540
        %v1665 = vpack.c.b16 %v1545, %v1541
        %v1666 = vpack.c.b16 %v1550, %v1546
        %v1667 = vpack.c.b16 %v1551, %v1547
        %v1668 = vpack.c.b16 %v1552, %v1548
        %v1669 = vpack.c.b16 %v1553, %v1549
        %v1670 = vpack.c.b16 %v1558, %v1554
        %v1671 = vpack.c.b16 %v1559, %v1555
        %v1672 = vpack.c.b16 %v1560, %v1556
        %v1673 = vpack.c.b16 %v1561, %v1557
        %v1674 = vpack.c.b16 %v1566, %v1562
        %v1675 = vpack.c.b16 %v1567, %v1563
        %v1676 = vpack.c.b16 %v1568, %v1564
        %v1677 = vpack.c.b16 %v1569, %v1565
        %v1678 = vpack.c.b16 %v1574, %v1570
        %v1679 = vpack.c.b16 %v1575, %v1571
        %v1680 = vpack.c.b16 %v1576, %v1572
        %v1681 = vpack.c.b16 %v1577, %v1573
        %v1682 = vpack.c.b16 %v1582, %v1578
        %v1683 = vpack.c.b16 %v1583, %v1579
        %v1684 = vpack.c.b16 %v1584, %v1580
        %v1685 = vpack.c.b16 %v1585, %v1581
        %v1686 = vpack.c.b16 %v1590, %v1586
        %v1687 = vpack.c.b16 %v1591, %v1587
        %v1688 = vpack.c.b16 %v1592, %v1588
        %v1689 = vpack.c.b16 %v1593, %v1589
        %v1690 = vpack.c.b16 %v1598, %v1594
        %v1691 = vpack.c.b16 %v1599, %v1595
        %v1692 = vpack.c.b16 %v1600, %v1596
        %v1693 = vpack.c.b16 %v1601, %v1597
        %v1694 = vpack.c.b16 %v1606, %v1602
        %v1695 = vpack.c.b16 %v1607, %v1603
        %v1696 = vpack.c.b16 %v1608, %v1604
        %v1697 = vpack.c.b16 %v1609, %v1605
        %v1698 = vpack.c.b16 %v1614, %v1610
        %v1699 = vpack.c.b16 %v1615, %v1611
        %v1700 = vpack.c.b16 %v1616, %v1612
        %v1701 = vpack.c.b16 %v1617, %v1613
        %v1702 = vpack.c.b16 %v1622, %v1618
        %v1703 = vpack.c.b16 %v1623, %v1619
        %v1704 = vpack.c.b16 %v1624, %v1620
        %v1705 = vpack.c.b16 %v1625, %v1621
        %v1706 = vpack.c.b16 %v1630, %v1626
        %v1707 = vpack.c.b16 %v1631, %v1627
        %v1708 = vpack.c.b16 %v1632, %v1628
        %v1709 = vpack.c.b16 %v1633, %v1629
        %v1710 = vpack.c.b16 %v1638, %v1634
        %v1711 = vpack.c.b16 %v1639, %v1635
        %v1712 = vpack.c.b16 %v1640, %v1636
        %v1713 = vpack.c.b16 %v1641, %v1637
        %vm1786 = vcmask 261120
        %v1788 = vsel %vm1786, %v1418, 0
        %v1791 = vsel %vm1786, %v1421, 0
        %1793 = vmatpush.bf16.msra.mxu0 %v1670
        %1794 = vmatpush.bf16.msra.mxu0 %v1666
        %1795 = vmatpush.bf16.msra.mxu0 %v1662
        %1796 = vmatpush.bf16.msra.mxu0 %v1658
        %1797 = vmatpush.bf16.msra.mxu0 %v1654
        %1798 = vmatpush.bf16.msra.mxu0 %v1650
        %1799 = vmatpush.bf16.msra.mxu0 %v1646
        %1800 = vmatpush.bf16.msra.mxu0 %v1642
        %1801 = vmatmul.bf16.gmra.mxu0 %v1416
        %v1802 = vpop.f32.mrf.mxu0
        %v1803 = vadd.f32 %v1379, %v1802
        %v1804 = vpop.f32.mrf.mxu0
        %v1805 = vadd.f32 %v1384, %v1804
        %1806 = vmatmul.bf16.gmra.mxu0 %v1419
        %v1807 = vpop.f32.mrf.mxu0
        %v1808 = vadd.f32 %v1389, %v1807
        %v1809 = vpop.f32.mrf.mxu0
        %v1810 = vadd.f32 %v1394, %v1809
        %1811 = vdwg.mxu0
        %1812 = vmatpush.bf16.msra.mxu0 %v1702
        %1813 = vmatpush.bf16.msra.mxu0 %v1698
        %1814 = vmatpush.bf16.msra.mxu0 %v1694
        %1815 = vmatpush.bf16.msra.mxu0 %v1690
        %1816 = vmatpush.bf16.msra.mxu0 %v1686
        %1817 = vmatpush.bf16.msra.mxu0 %v1682
        %1818 = vmatpush.bf16.msra.mxu0 %v1678
        %1819 = vmatpush.bf16.msra.mxu0 %v1674
        %1820 = vmatmul.bf16.gmra.mxu0 %v1417
        %v1821 = vpop.f32.mrf.mxu0
        %v1822 = vadd.f32 %v1803, %v1821
        %v1823 = vpop.f32.mrf.mxu0
        %v1824 = vadd.f32 %v1805, %v1823
        %1825 = vmatmul.bf16.gmra.mxu0 %v1420
        %v1826 = vpop.f32.mrf.mxu0
        %v1827 = vadd.f32 %v1808, %v1826
        %v1828 = vpop.f32.mrf.mxu0
        %v1829 = vadd.f32 %v1810, %v1828
        %1830 = vdwg.mxu0
        %1831 = vmatpush.bf16.msra.mxu0 0
        %1832 = vmatpush.bf16.msra.mxu0 0
        %1833 = vmatpush.bf16.msra.mxu0 0
        %1834 = vmatpush.bf16.msra.mxu0 0
        %1835 = vmatpush.bf16.msra.mxu0 0
        %1836 = vmatpush.bf16.msra.mxu0 0
        %1837 = vmatpush.bf16.msra.mxu0 %v1710
        %1838 = vmatpush.bf16.msra.mxu0 %v1706
        %1839 = vmatmul.bf16.gmra.mxu0 %v1788
        %v1840 = vpop.f32.mrf.mxu0
        %v1841 = vadd.f32 %v1822, %v1840
        %v1842 = vpop.f32.mrf.mxu0
        %v1843 = vadd.f32 %v1824, %v1842
        %1844 = vmatmul.bf16.gmra.mxu0 %v1791
        %v1845 = vpop.f32.mrf.mxu0
        %v1846 = vadd.f32 %v1827, %v1845
        %v1847 = vpop.f32.mrf.mxu0
        %v1848 = vadd.f32 %v1829, %v1847
        %1849 = vdwg.mxu0
        %1850 = vmatpush.bf16.msra.mxu0 %v1671
        %1851 = vmatpush.bf16.msra.mxu0 %v1667
        %1852 = vmatpush.bf16.msra.mxu0 %v1663
        %1853 = vmatpush.bf16.msra.mxu0 %v1659
        %1854 = vmatpush.bf16.msra.mxu0 %v1655
        %1855 = vmatpush.bf16.msra.mxu0 %v1651
        %1856 = vmatpush.bf16.msra.mxu0 %v1647
        %1857 = vmatpush.bf16.msra.mxu0 %v1643
        %1858 = vmatmul.bf16.gmra.mxu0 %v1416
        %v1859 = vpop.f32.mrf.mxu0
        %v1860 = vadd.f32 %v1379, %v1859
        %v1861 = vpop.f32.mrf.mxu0
        %v1862 = vadd.f32 %v1384, %v1861
        %1863 = vmatmul.bf16.gmra.mxu0 %v1419
        %v1864 = vpop.f32.mrf.mxu0
        %v1865 = vadd.f32 %v1389, %v1864
        %v1866 = vpop.f32.mrf.mxu0
        %v1867 = vadd.f32 %v1394, %v1866
        %1868 = vdwg.mxu0
        %1869 = vmatpush.bf16.msra.mxu0 %v1703
        %1870 = vmatpush.bf16.msra.mxu0 %v1699
        %1871 = vmatpush.bf16.msra.mxu0 %v1695
        %1872 = vmatpush.bf16.msra.mxu0 %v1691
        %1873 = vmatpush.bf16.msra.mxu0 %v1687
        %1874 = vmatpush.bf16.msra.mxu0 %v1683
        %1875 = vmatpush.bf16.msra.mxu0 %v1679
        %1876 = vmatpush.bf16.msra.mxu0 %v1675
        %1877 = vmatmul.bf16.gmra.mxu0 %v1417
        %v1878 = vpop.f32.mrf.mxu0
        %v1879 = vadd.f32 %v1860, %v1878
        %v1880 = vpop.f32.mrf.mxu0
        %v1881 = vadd.f32 %v1862, %v1880
        %1882 = vmatmul.bf16.gmra.mxu0 %v1420
        %v1883 = vpop.f32.mrf.mxu0
        %v1884 = vadd.f32 %v1865, %v1883
        %v1885 = vpop.f32.mrf.mxu0
        %v1886 = vadd.f32 %v1867, %v1885
        %1887 = vdwg.mxu0
        %1888 = vmatpush.bf16.msra.mxu0 0
        %1889 = vmatpush.bf16.msra.mxu0 0
        %1890 = vmatpush.bf16.msra.mxu0 0
        %1891 = vmatpush.bf16.msra.mxu0 0
        %1892 = vmatpush.bf16.msra.mxu0 0
        %1893 = vmatpush.bf16.msra.mxu0 0
        %1894 = vmatpush.bf16.msra.mxu0 %v1711
        %1895 = vmatpush.bf16.msra.mxu0 %v1707
        %1896 = vmatmul.bf16.gmra.mxu0 %v1788
        %v1897 = vpop.f32.mrf.mxu0
        %v1898 = vadd.f32 %v1879, %v1897
        %v1899 = vpop.f32.mrf.mxu0
        %v1900 = vadd.f32 %v1881, %v1899
        %1901 = vmatmul.bf16.gmra.mxu0 %v1791
        %v1902 = vpop.f32.mrf.mxu0
        %v1903 = vadd.f32 %v1884, %v1902
        %v1904 = vpop.f32.mrf.mxu0
        %v1905 = vadd.f32 %v1886, %v1904
        %1906 = vdwg.mxu0
        %1907 = vmatpush.bf16.msra.mxu0 %v1672
        %1908 = vmatpush.bf16.msra.mxu0 %v1668
        %1909 = vmatpush.bf16.msra.mxu0 %v1664
        %1910 = vmatpush.bf16.msra.mxu0 %v1660
        %1911 = vmatpush.bf16.msra.mxu0 %v1656
        %1912 = vmatpush.bf16.msra.mxu0 %v1652
        %1913 = vmatpush.bf16.msra.mxu0 %v1648
        %1914 = vmatpush.bf16.msra.mxu0 %v1644
        %1915 = vmatmul.bf16.gmra.mxu0 %v1416
        %v1916 = vpop.f32.mrf.mxu0
        %v1917 = vadd.f32 %v1379, %v1916
        %v1918 = vpop.f32.mrf.mxu0
        %v1919 = vadd.f32 %v1384, %v1918
        %1920 = vmatmul.bf16.gmra.mxu0 %v1419
        %v1921 = vpop.f32.mrf.mxu0
        %v1922 = vadd.f32 %v1389, %v1921
        %v1923 = vpop.f32.mrf.mxu0
        %v1924 = vadd.f32 %v1394, %v1923
        %1925 = vdwg.mxu0
        %1926 = vmatpush.bf16.msra.mxu0 %v1704
        %1927 = vmatpush.bf16.msra.mxu0 %v1700
        %1928 = vmatpush.bf16.msra.mxu0 %v1696
        %1929 = vmatpush.bf16.msra.mxu0 %v1692
        %1930 = vmatpush.bf16.msra.mxu0 %v1688
        %1931 = vmatpush.bf16.msra.mxu0 %v1684
        %1932 = vmatpush.bf16.msra.mxu0 %v1680
        %1933 = vmatpush.bf16.msra.mxu0 %v1676
        %1934 = vmatmul.bf16.gmra.mxu0 %v1417
        %v1935 = vpop.f32.mrf.mxu0
        %v1936 = vadd.f32 %v1917, %v1935
        %v1937 = vpop.f32.mrf.mxu0
        %v1938 = vadd.f32 %v1919, %v1937
        %1939 = vmatmul.bf16.gmra.mxu0 %v1420
        %v1940 = vpop.f32.mrf.mxu0
        %v1941 = vadd.f32 %v1922, %v1940
        %v1942 = vpop.f32.mrf.mxu0
        %v1943 = vadd.f32 %v1924, %v1942
        %1944 = vdwg.mxu0
        %1945 = vmatpush.bf16.msra.mxu0 0
        %1946 = vmatpush.bf16.msra.mxu0 0
        %1947 = vmatpush.bf16.msra.mxu0 0
        %1948 = vmatpush.bf16.msra.mxu0 0
        %1949 = vmatpush.bf16.msra.mxu0 0
        %1950 = vmatpush.bf16.msra.mxu0 0
        %1951 = vmatpush.bf16.msra.mxu0 %v1712
        %1952 = vmatpush.bf16.msra.mxu0 %v1708
        %1953 = vmatmul.bf16.gmra.mxu0 %v1788
        %v1954 = vpop.f32.mrf.mxu0
        %v1955 = vadd.f32 %v1936, %v1954
        %v1956 = vpop.f32.mrf.mxu0
        %v1957 = vadd.f32 %v1938, %v1956
        %1958 = vmatmul.bf16.gmra.mxu0 %v1791
        %v1959 = vpop.f32.mrf.mxu0
        %v1960 = vadd.f32 %v1941, %v1959
        %v1961 = vpop.f32.mrf.mxu0
        %v1962 = vadd.f32 %v1943, %v1961
        %1963 = vdwg.mxu0
        %1964 = vmatpush.bf16.msra.mxu0 %v1673
        %1965 = vmatpush.bf16.msra.mxu0 %v1669
        %1966 = vmatpush.bf16.msra.mxu0 %v1665
        %1967 = vmatpush.bf16.msra.mxu0 %v1661
        %1968 = vmatpush.bf16.msra.mxu0 %v1657
        %1969 = vmatpush.bf16.msra.mxu0 %v1653
        %1970 = vmatpush.bf16.msra.mxu0 %v1649
        %1971 = vmatpush.bf16.msra.mxu0 %v1645
        %1972 = vmatmul.bf16.gmra.mxu0 %v1416
        %v1973 = vpop.f32.mrf.mxu0
        %v1974 = vadd.f32 %v1379, %v1973
        %v1975 = vpop.f32.mrf.mxu0
        %v1976 = vadd.f32 %v1384, %v1975
        %1977 = vmatmul.bf16.gmra.mxu0 %v1419
        %v1978 = vpop.f32.mrf.mxu0
        %v1979 = vadd.f32 %v1389, %v1978
        %v1980 = vpop.f32.mrf.mxu0
        %v1981 = vadd.f32 %v1394, %v1980
        %1982 = vdwg.mxu0
        %1983 = vmatpush.bf16.msra.mxu0 %v1705
        %1984 = vmatpush.bf16.msra.mxu0 %v1701
        %1985 = vmatpush.bf16.msra.mxu0 %v1697
        %1986 = vmatpush.bf16.msra.mxu0 %v1693
        %1987 = vmatpush.bf16.msra.mxu0 %v1689
        %1988 = vmatpush.bf16.msra.mxu0 %v1685
        %1989 = vmatpush.bf16.msra.mxu0 %v1681
        %1990 = vmatpush.bf16.msra.mxu0 %v1677
        %1991 = vmatmul.bf16.gmra.mxu0 %v1417
        %v1992 = vpop.f32.mrf.mxu0
        %v1993 = vadd.f32 %v1974, %v1992
        %v1994 = vpop.f32.mrf.mxu0
        %v1995 = vadd.f32 %v1976, %v1994
        %1996 = vmatmul.bf16.gmra.mxu0 %v1420
        %v1997 = vpop.f32.mrf.mxu0
        %v1998 = vadd.f32 %v1979, %v1997
        %v1999 = vpop.f32.mrf.mxu0
        %v2000 = vadd.f32 %v1981, %v1999
        %2001 = vdwg.mxu0
        %2002 = vmatpush.bf16.msra.mxu0 0
        %2003 = vmatpush.bf16.msra.mxu0 0
        %2004 = vmatpush.bf16.msra.mxu0 0
        %2005 = vmatpush.bf16.msra.mxu0 0
        %2006 = vmatpush.bf16.msra.mxu0 0
        %2007 = vmatpush.bf16.msra.mxu0 0
        %2008 = vmatpush.bf16.msra.mxu0 %v1713
        %2009 = vmatpush.bf16.msra.mxu0 %v1709
        %2010 = vmatmul.bf16.gmra.mxu0 %v1788
        %v2011 = vpop.f32.mrf.mxu0
        %v2012 = vadd.f32 %v1993, %v2011
        %v2013 = vpop.f32.mrf.mxu0
        %v2014 = vadd.f32 %v1995, %v2013
        %2015 = vmatmul.bf16.gmra.mxu0 %v1791
        %v2016 = vpop.f32.mrf.mxu0
        %v2017 = vadd.f32 %v1998, %v2016
        %v2018 = vpop.f32.mrf.mxu0
        %v2019 = vadd.f32 %v2000, %v2018
        %2020 = vdwg.mxu0
        %v2021 = vmax.f32 %v1841, 0.0
        %v2022 = vmax.f32 %v1898, 0.0
        %v2023 = vmax.f32 %v1955, 0.0
        %v2024 = vmax.f32 %v2012, 0.0
        %v2025 = vmax.f32 %v1843, 0.0
        %v2026 = vmax.f32 %v1900, 0.0
        %v2027 = vmax.f32 %v1957, 0.0
        %v2028 = vmax.f32 %v2014, 0.0
        %v2029 = vmax.f32 %v1846, 0.0
        %v2030 = vmax.f32 %v1903, 0.0
        %v2031 = vmax.f32 %v1960, 0.0
        %v2032 = vmax.f32 %v2017, 0.0
        %v2033 = vmax.f32 %v1848, 0.0
        %v2034 = vmax.f32 %v1905, 0.0
        %v2035 = vmax.f32 %v1962, 0.0
        %v2036 = vmax.f32 %v2019, 0.0
        %2037 = vrot.lane.b32.xlu0 %v2021, 17
        %v2038 = vpop.permute.xlu0 %2037
        %2039 = vrot.lane.b32.xlu0 %v2025, 17
        %v2040 = vpop.permute.xlu0 %2039
        %2041 = vrot.lane.b32.xlu0 %v2029, 17
        %v2042 = vpop.permute.xlu0 %2041
        %2043 = vrot.lane.b32.xlu0 %v2033, 17
        %v2044 = vpop.permute.xlu0 %2043
        %2045 = vrot.lane.b32.xlu0 %v2022, 17
        %v2046 = vpop.permute.xlu0 %2045
        %2047 = vrot.lane.b32.xlu0 %v2026, 17
        %v2048 = vpop.permute.xlu0 %2047
        %2049 = vrot.lane.b32.xlu0 %v2030, 17
        %v2050 = vpop.permute.xlu0 %2049
        %2051 = vrot.lane.b32.xlu0 %v2034, 17
        %v2052 = vpop.permute.xlu0 %2051
        %2053 = vrot.lane.b32.xlu0 %v2023, 17
        %v2054 = vpop.permute.xlu0 %2053
        %2055 = vrot.lane.b32.xlu0 %v2027, 17
        %v2056 = vpop.permute.xlu0 %2055
        %2057 = vrot.lane.b32.xlu0 %v2031, 17
        %v2058 = vpop.permute.xlu0 %2057
        %2059 = vrot.lane.b32.xlu0 %v2035, 17
        %v2060 = vpop.permute.xlu0 %2059
        %2061 = vrot.lane.b32.xlu0 %v2024, 17
        %v2062 = vpop.permute.xlu0 %2061
        %2063 = vrot.lane.b32.xlu0 %v2028, 17
        %v2064 = vpop.permute.xlu0 %2063
        %2065 = vrot.lane.b32.xlu0 %v2032, 17
        %v2066 = vpop.permute.xlu0 %2065
        %2067 = vrot.lane.b32.xlu0 %v2036, 17
        %v2068 = vpop.permute.xlu0 %2067
        %v2069 = vsel %vm573, %v2054, %v2062
        %v2070 = vsel %vm573, %v2056, %v2064
        %v2071 = vsel %vm573, %v2058, %v2066
        %v2072 = vsel %vm573, %v2060, %v2068
        %v2073 = vsel %vm573, %v2046, %v2054
        %v2074 = vsel %vm573, %v2048, %v2056
        %v2075 = vsel %vm573, %v2050, %v2058
        %v2076 = vsel %vm573, %v2052, %v2060
        %v2077 = vsel %vm573, %v2038, %v2046
        %v2078 = vsel %vm573, %v2040, %v2048
        %v2079 = vsel %vm573, %v2042, %v2050
        %v2080 = vsel %vm573, %v2044, %v2052
        %v2081 = vsel %vm573, %v2062, %v2038
        %v2082 = vsel %vm573, %v2064, %v2040
        %v2083 = vsel %vm573, %v2066, %v2042
        %v2084 = vsel %vm573, %v2068, %v2044
        %v2085 = vld [vmem:[%s1] ss:$8 sm:$0xf]
        %v2087 = vperm.slane %v2085, 0
        %v2088 = vperm.slane %v2085, 1
        %v2089 = vperm.slane %v2085, 2
        %v2090 = vperm.slane %v2085, 3
        %v2095 = vmul.f32 %v2081, %v2087
        %v2096 = vmul.f32 %v2077, %v2088
        %v2097 = vmul.f32 %v2073, %v2089
        %v2098 = vmul.f32 %v2069, %v2090
        %v2099 = vmul.f32 %v2082, %v2087
        %v2100 = vmul.f32 %v2078, %v2088
        %v2101 = vmul.f32 %v2074, %v2089
        %v2102 = vmul.f32 %v2070, %v2090
        %v2103 = vmul.f32 %v2083, %v2087
        %v2104 = vmul.f32 %v2079, %v2088
        %v2105 = vmul.f32 %v2075, %v2089
        %v2106 = vmul.f32 %v2071, %v2090
        %v2107 = vmul.f32 %v2084, %v2087
        %v2108 = vmul.f32 %v2080, %v2088
        %v2109 = vmul.f32 %v2076, %v2089
        %v2110 = vmul.f32 %v2072, %v2090
        %v2111 = vpack.c.bf16 %v2096, %v2095
        %v2112 = vpack.c.bf16 %v2098, %v2097
        %v2113 = vpack.c.bf16 %v2100, %v2099
        %v2114 = vpack.c.bf16 %v2102, %v2101
        %v2115 = vpack.c.bf16 %v2104, %v2103
        %v2116 = vpack.c.bf16 %v2106, %v2105
        %v2117 = vpack.c.bf16 %v2108, %v2107
        %v2118 = vpack.c.bf16 %v2110, %v2109
        %2119 = vst [vmem:[#allocation2] sm:$0xff] %v2111
        %2120 = vst [vmem:[#allocation2 + $0x8] sm:$0xff] %v2112
        %2121 = vst [vmem:[#allocation2 + $0x10] sm:$0xff] %v2113
        %2122 = vst [vmem:[#allocation2 + $0x18] sm:$0xff] %v2114
        %2123 = vst [vmem:[#allocation2 + $0x20] sm:$0xff] %v2115
        %2124 = vst [vmem:[#allocation2 + $0x28] sm:$0xff] %v2116
        %2125 = vst [vmem:[#allocation2 + $0x30] sm:$0xff] %v2117
        %2126 = vst [vmem:[#allocation2 + $0x38] sm:$0xff] %v2118
        %2127 = vrot.lane.b32.xlu0 %v2021, 16
        %v2128 = vpop.permute.xlu0 %2127
        %2129 = vrot.lane.b32.xlu0 %v2025, 16
        %v2130 = vpop.permute.xlu0 %2129
        %2131 = vrot.lane.b32.xlu0 %v2029, 16
        %v2132 = vpop.permute.xlu0 %2131
        %2133 = vrot.lane.b32.xlu0 %v2033, 16
        %v2134 = vpop.permute.xlu0 %2133
        %2135 = vrot.lane.b32.xlu0 %v2022, 16
        %v2136 = vpop.permute.xlu0 %2135
        %2137 = vrot.lane.b32.xlu0 %v2026, 16
        %v2138 = vpop.permute.xlu0 %2137
        %2139 = vrot.lane.b32.xlu0 %v2030, 16
        %v2140 = vpop.permute.xlu0 %2139
        %2141 = vrot.lane.b32.xlu0 %v2034, 16
        %v2142 = vpop.permute.xlu0 %2141
        %2143 = vrot.lane.b32.xlu0 %v2023, 16
        %v2144 = vpop.permute.xlu0 %2143
        %2145 = vrot.lane.b32.xlu0 %v2027, 16
        %v2146 = vpop.permute.xlu0 %2145
        %2147 = vrot.lane.b32.xlu0 %v2031, 16
        %v2148 = vpop.permute.xlu0 %2147
        %2149 = vrot.lane.b32.xlu0 %v2035, 16
        %v2150 = vpop.permute.xlu0 %2149
        %2151 = vrot.lane.b32.xlu0 %v2024, 16
        %v2152 = vpop.permute.xlu0 %2151
        %2153 = vrot.lane.b32.xlu0 %v2028, 16
        %v2154 = vpop.permute.xlu0 %2153
        %2155 = vrot.lane.b32.xlu0 %v2032, 16
        %v2156 = vpop.permute.xlu0 %2155
        %2157 = vrot.lane.b32.xlu0 %v2036, 16
        %v2158 = vpop.permute.xlu0 %2157
        %v2159 = vsel %vm664, %v2144, %v2152
        %v2160 = vsel %vm664, %v2146, %v2154
        %v2161 = vsel %vm664, %v2148, %v2156
        %v2162 = vsel %vm664, %v2150, %v2158
        %v2163 = vsel %vm664, %v2136, %v2144
        %v2164 = vsel %vm664, %v2138, %v2146
        %v2165 = vsel %vm664, %v2140, %v2148
        %v2166 = vsel %vm664, %v2142, %v2150
        %v2167 = vsel %vm664, %v2128, %v2136
        %v2168 = vsel %vm664, %v2130, %v2138
        %v2169 = vsel %vm664, %v2132, %v2140
        %v2170 = vsel %vm664, %v2134, %v2142
        %v2171 = vsel %vm664, %v2152, %v2128
        %v2172 = vsel %vm664, %v2154, %v2130
        %v2173 = vsel %vm664, %v2156, %v2132
        %v2174 = vsel %vm664, %v2158, %v2134
        %v2175 = vld [vmem:[%s681] ss:$8 sm:$0xf]
        %v2177 = vperm.slane %v2175, 0
        %v2178 = vperm.slane %v2175, 1
        %v2179 = vperm.slane %v2175, 2
        %v2180 = vperm.slane %v2175, 3
        %v2185 = vmul.f32 %v2171, %v2177
        %v2186 = vmul.f32 %v2167, %v2178
        %v2187 = vmul.f32 %v2163, %v2179
        %v2188 = vmul.f32 %v2159, %v2180
        %v2189 = vmul.f32 %v2172, %v2177
        %v2190 = vmul.f32 %v2168, %v2178
        %v2191 = vmul.f32 %v2164, %v2179
        %v2192 = vmul.f32 %v2160, %v2180
        %v2193 = vmul.f32 %v2173, %v2177
        %v2194 = vmul.f32 %v2169, %v2178
        %v2195 = vmul.f32 %v2165, %v2179
        %v2196 = vmul.f32 %v2161, %v2180
        %v2197 = vmul.f32 %v2174, %v2177
        %v2198 = vmul.f32 %v2170, %v2178
        %v2199 = vmul.f32 %v2166, %v2179
        %v2200 = vmul.f32 %v2162, %v2180
        %v2201 = vpack.c.bf16 %v2186, %v2185
        %v2202 = vpack.c.bf16 %v2188, %v2187
        %v2203 = vpack.c.bf16 %v2190, %v2189
        %v2204 = vpack.c.bf16 %v2192, %v2191
        %v2205 = vpack.c.bf16 %v2194, %v2193
        %v2206 = vpack.c.bf16 %v2196, %v2195
        %v2207 = vpack.c.bf16 %v2198, %v2197
        %v2208 = vpack.c.bf16 %v2200, %v2199
        %2209 = vst [vmem:[#allocation2 + $0x40] sm:$0xff] %v2201
        %2210 = vst [vmem:[#allocation2 + $0x48] sm:$0xff] %v2202
        %2211 = vst [vmem:[#allocation2 + $0x50] sm:$0xff] %v2203
        %2212 = vst [vmem:[#allocation2 + $0x58] sm:$0xff] %v2204
        %2213 = vst [vmem:[#allocation2 + $0x60] sm:$0xff] %v2205
        %2214 = vst [vmem:[#allocation2 + $0x68] sm:$0xff] %v2206
        %2215 = vst [vmem:[#allocation2 + $0x70] sm:$0xff] %v2207
        %2216 = vst [vmem:[#allocation2 + $0x78] sm:$0xff] %v2208
        %2217 = vrot.lane.b32.xlu0 %v2021, 15
        %v2218 = vpop.permute.xlu0 %2217
        %2219 = vrot.lane.b32.xlu0 %v2025, 15
        %v2220 = vpop.permute.xlu0 %2219
        %2221 = vrot.lane.b32.xlu0 %v2029, 15
        %v2222 = vpop.permute.xlu0 %2221
        %2223 = vrot.lane.b32.xlu0 %v2033, 15
        %v2224 = vpop.permute.xlu0 %2223
        %2225 = vrot.lane.b32.xlu0 %v2022, 15
        %v2226 = vpop.permute.xlu0 %2225
        %2227 = vrot.lane.b32.xlu0 %v2026, 15
        %v2228 = vpop.permute.xlu0 %2227
        %2229 = vrot.lane.b32.xlu0 %v2030, 15
        %v2230 = vpop.permute.xlu0 %2229
        %2231 = vrot.lane.b32.xlu0 %v2034, 15
        %v2232 = vpop.permute.xlu0 %2231
        %2233 = vrot.lane.b32.xlu0 %v2023, 15
        %v2234 = vpop.permute.xlu0 %2233
        %2235 = vrot.lane.b32.xlu0 %v2027, 15
        %v2236 = vpop.permute.xlu0 %2235
        %2237 = vrot.lane.b32.xlu0 %v2031, 15
        %v2238 = vpop.permute.xlu0 %2237
        %2239 = vrot.lane.b32.xlu0 %v2035, 15
        %v2240 = vpop.permute.xlu0 %2239
        %2241 = vrot.lane.b32.xlu0 %v2024, 15
        %v2242 = vpop.permute.xlu0 %2241
        %2243 = vrot.lane.b32.xlu0 %v2028, 15
        %v2244 = vpop.permute.xlu0 %2243
        %2245 = vrot.lane.b32.xlu0 %v2032, 15
        %v2246 = vpop.permute.xlu0 %2245
        %2247 = vrot.lane.b32.xlu0 %v2036, 15
        %v2248 = vpop.permute.xlu0 %2247
        %v2249 = vsel %vm756, %v2234, %v2242
        %v2250 = vsel %vm756, %v2236, %v2244
        %v2251 = vsel %vm756, %v2238, %v2246
        %v2252 = vsel %vm756, %v2240, %v2248
        %v2253 = vsel %vm756, %v2226, %v2234
        %v2254 = vsel %vm756, %v2228, %v2236
        %v2255 = vsel %vm756, %v2230, %v2238
        %v2256 = vsel %vm756, %v2232, %v2240
        %v2257 = vsel %vm756, %v2218, %v2226
        %v2258 = vsel %vm756, %v2220, %v2228
        %v2259 = vsel %vm756, %v2222, %v2230
        %v2260 = vsel %vm756, %v2224, %v2232
        %v2261 = vsel %vm756, %v2242, %v2218
        %v2262 = vsel %vm756, %v2244, %v2220
        %v2263 = vsel %vm756, %v2246, %v2222
        %v2264 = vsel %vm756, %v2248, %v2224
        %v2265 = vld [vmem:[%s773] ss:$8 sm:$0xf]
        %v2267 = vperm.slane %v2265, 0
        %v2268 = vperm.slane %v2265, 1
        %v2269 = vperm.slane %v2265, 2
        %v2270 = vperm.slane %v2265, 3
        %v2275 = vmul.f32 %v2261, %v2267
        %v2276 = vmul.f32 %v2257, %v2268
        %v2277 = vmul.f32 %v2253, %v2269
        %v2278 = vmul.f32 %v2249, %v2270
        %v2279 = vmul.f32 %v2262, %v2267
        %v2280 = vmul.f32 %v2258, %v2268
        %v2281 = vmul.f32 %v2254, %v2269
        %v2282 = vmul.f32 %v2250, %v2270
        %v2283 = vmul.f32 %v2263, %v2267
        %v2284 = vmul.f32 %v2259, %v2268
        %v2285 = vmul.f32 %v2255, %v2269
        %v2286 = vmul.f32 %v2251, %v2270
        %v2287 = vmul.f32 %v2264, %v2267
        %v2288 = vmul.f32 %v2260, %v2268
        %v2289 = vmul.f32 %v2256, %v2269
        %v2290 = vmul.f32 %v2252, %v2270
        %v2291 = vpack.c.bf16 %v2276, %v2275
        %v2292 = vpack.c.bf16 %v2278, %v2277
        %v2293 = vpack.c.bf16 %v2280, %v2279
        %v2294 = vpack.c.bf16 %v2282, %v2281
        %v2295 = vpack.c.bf16 %v2284, %v2283
        %v2296 = vpack.c.bf16 %v2286, %v2285
        %v2297 = vpack.c.bf16 %v2288, %v2287
        %v2298 = vpack.c.bf16 %v2290, %v2289
        %2299 = vst [vmem:[#allocation2 + $0x80] sm:$0xff] %v2291
        %2300 = vst [vmem:[#allocation2 + $0x88] sm:$0xff] %v2292
        %2301 = vst [vmem:[#allocation2 + $0x90] sm:$0xff] %v2293
        %2302 = vst [vmem:[#allocation2 + $0x98] sm:$0xff] %v2294
        %2303 = vst [vmem:[#allocation2 + $0xa0] sm:$0xff] %v2295
        %2304 = vst [vmem:[#allocation2 + $0xa8] sm:$0xff] %v2296
        %2305 = vst [vmem:[#allocation2 + $0xb0] sm:$0xff] %v2297
        %2306 = vst [vmem:[#allocation2 + $0xb8] sm:$0xff] %v2298
        %2307 = vrot.lane.b32.xlu0 %v2021, 1
        %v2308 = vpop.permute.xlu0 %2307
        %2309 = vrot.lane.b32.xlu0 %v2025, 1
        %v2310 = vpop.permute.xlu0 %2309
        %2311 = vrot.lane.b32.xlu0 %v2029, 1
        %v2312 = vpop.permute.xlu0 %2311
        %2313 = vrot.lane.b32.xlu0 %v2033, 1
        %v2314 = vpop.permute.xlu0 %2313
        %2315 = vrot.lane.b32.xlu0 %v2022, 1
        %v2316 = vpop.permute.xlu0 %2315
        %2317 = vrot.lane.b32.xlu0 %v2026, 1
        %v2318 = vpop.permute.xlu0 %2317
        %2319 = vrot.lane.b32.xlu0 %v2030, 1
        %v2320 = vpop.permute.xlu0 %2319
        %2321 = vrot.lane.b32.xlu0 %v2034, 1
        %v2322 = vpop.permute.xlu0 %2321
        %2323 = vrot.lane.b32.xlu0 %v2023, 1
        %v2324 = vpop.permute.xlu0 %2323
        %2325 = vrot.lane.b32.xlu0 %v2027, 1
        %v2326 = vpop.permute.xlu0 %2325
        %2327 = vrot.lane.b32.xlu0 %v2031, 1
        %v2328 = vpop.permute.xlu0 %2327
        %2329 = vrot.lane.b32.xlu0 %v2035, 1
        %v2330 = vpop.permute.xlu0 %2329
        %2331 = vrot.lane.b32.xlu0 %v2024, 1
        %v2332 = vpop.permute.xlu0 %2331
        %2333 = vrot.lane.b32.xlu0 %v2028, 1
        %v2334 = vpop.permute.xlu0 %2333
        %2335 = vrot.lane.b32.xlu0 %v2032, 1
        %v2336 = vpop.permute.xlu0 %2335
        %2337 = vrot.lane.b32.xlu0 %v2036, 1
        %v2338 = vpop.permute.xlu0 %2337
        %v2339 = vsel %vm848, %v2324, %v2332
        %v2340 = vsel %vm848, %v2326, %v2334
        %v2341 = vsel %vm848, %v2328, %v2336
        %v2342 = vsel %vm848, %v2330, %v2338
        %v2343 = vsel %vm848, %v2316, %v2324
        %v2344 = vsel %vm848, %v2318, %v2326
        %v2345 = vsel %vm848, %v2320, %v2328
        %v2346 = vsel %vm848, %v2322, %v2330
        %v2347 = vsel %vm848, %v2308, %v2316
        %v2348 = vsel %vm848, %v2310, %v2318
        %v2349 = vsel %vm848, %v2312, %v2320
        %v2350 = vsel %vm848, %v2314, %v2322
        %v2351 = vsel %vm848, %v2332, %v2308
        %v2352 = vsel %vm848, %v2334, %v2310
        %v2353 = vsel %vm848, %v2336, %v2312
        %v2354 = vsel %vm848, %v2338, %v2314
        %v2355 = vld [vmem:[%s865] ss:$8 sm:$0xf]
        %v2357 = vperm.slane %v2355, 0
        %v2358 = vperm.slane %v2355, 1
        %v2359 = vperm.slane %v2355, 2
        %v2360 = vperm.slane %v2355, 3
        %v2365 = vmul.f32 %v2351, %v2357
        %v2366 = vmul.f32 %v2347, %v2358
        %v2367 = vmul.f32 %v2343, %v2359
        %v2368 = vmul.f32 %v2339, %v2360
        %v2369 = vmul.f32 %v2352, %v2357
        %v2370 = vmul.f32 %v2348, %v2358
        %v2371 = vmul.f32 %v2344, %v2359
        %v2372 = vmul.f32 %v2340, %v2360
        %v2373 = vmul.f32 %v2353, %v2357
        %v2374 = vmul.f32 %v2349, %v2358
        %v2375 = vmul.f32 %v2345, %v2359
        %v2376 = vmul.f32 %v2341, %v2360
        %v2377 = vmul.f32 %v2354, %v2357
        %v2378 = vmul.f32 %v2350, %v2358
        %v2379 = vmul.f32 %v2346, %v2359
        %v2380 = vmul.f32 %v2342, %v2360
        %v2381 = vpack.c.bf16 %v2366, %v2365
        %v2382 = vpack.c.bf16 %v2368, %v2367
        %v2383 = vpack.c.bf16 %v2370, %v2369
        %v2384 = vpack.c.bf16 %v2372, %v2371
        %v2385 = vpack.c.bf16 %v2374, %v2373
        %v2386 = vpack.c.bf16 %v2376, %v2375
        %v2387 = vpack.c.bf16 %v2378, %v2377
        %v2388 = vpack.c.bf16 %v2380, %v2379
        %2389 = vst [vmem:[#allocation2 + $0xc0] sm:$0xff] %v2381
        %2390 = vst [vmem:[#allocation2 + $0xc8] sm:$0xff] %v2382
        %2391 = vst [vmem:[#allocation2 + $0xd0] sm:$0xff] %v2383
        %2392 = vst [vmem:[#allocation2 + $0xd8] sm:$0xff] %v2384
        %2393 = vst [vmem:[#allocation2 + $0xe0] sm:$0xff] %v2385
        %2394 = vst [vmem:[#allocation2 + $0xe8] sm:$0xff] %v2386
        %2395 = vst [vmem:[#allocation2 + $0xf0] sm:$0xff] %v2387
        %2396 = vst [vmem:[#allocation2 + $0xf8] sm:$0xff] %v2388
        %v2397 = vpack.c.bf16 %v2022, %v2021
        %v2398 = vpack.c.bf16 %v2024, %v2023
        %v2399 = vpack.c.bf16 %v2026, %v2025
        %v2400 = vpack.c.bf16 %v2028, %v2027
        %v2401 = vpack.c.bf16 %v2030, %v2029
        %v2402 = vpack.c.bf16 %v2032, %v2031
        %v2403 = vpack.c.bf16 %v2034, %v2033
        %v2404 = vpack.c.bf16 %v2036, %v2035
        %2405 = vst [vmem:[#allocation2 + $0x100] sm:$0xff] %v2397
        %2406 = vst [vmem:[#allocation2 + $0x108] sm:$0xff] %v2398
        %2407 = vst [vmem:[#allocation2 + $0x110] sm:$0xff] %v2399
        %2408 = vst [vmem:[#allocation2 + $0x118] sm:$0xff] %v2400
        %2409 = vst [vmem:[#allocation2 + $0x120] sm:$0xff] %v2401
        %2410 = vst [vmem:[#allocation2 + $0x128] sm:$0xff] %v2402
        %2411 = vst [vmem:[#allocation2 + $0x130] sm:$0xff] %v2403
        %2412 = vst [vmem:[#allocation2 + $0x138] sm:$0xff] %v2404
        %2413 = vrot.lane.b32.xlu0 %v2021, 127
        %v2414 = vpop.permute.xlu0 %2413
        %2415 = vrot.lane.b32.xlu0 %v2025, 127
        %v2416 = vpop.permute.xlu0 %2415
        %2417 = vrot.lane.b32.xlu0 %v2029, 127
        %v2418 = vpop.permute.xlu0 %2417
        %2419 = vrot.lane.b32.xlu0 %v2033, 127
        %v2420 = vpop.permute.xlu0 %2419
        %2421 = vrot.lane.b32.xlu0 %v2022, 127
        %v2422 = vpop.permute.xlu0 %2421
        %2423 = vrot.lane.b32.xlu0 %v2026, 127
        %v2424 = vpop.permute.xlu0 %2423
        %2425 = vrot.lane.b32.xlu0 %v2030, 127
        %v2426 = vpop.permute.xlu0 %2425
        %2427 = vrot.lane.b32.xlu0 %v2034, 127
        %v2428 = vpop.permute.xlu0 %2427
        %2429 = vrot.lane.b32.xlu0 %v2023, 127
        %v2430 = vpop.permute.xlu0 %2429
        %2431 = vrot.lane.b32.xlu0 %v2027, 127
        %v2432 = vpop.permute.xlu0 %2431
        %2433 = vrot.lane.b32.xlu0 %v2031, 127
        %v2434 = vpop.permute.xlu0 %2433
        %2435 = vrot.lane.b32.xlu0 %v2035, 127
        %v2436 = vpop.permute.xlu0 %2435
        %2437 = vrot.lane.b32.xlu0 %v2024, 127
        %v2438 = vpop.permute.xlu0 %2437
        %2439 = vrot.lane.b32.xlu0 %v2028, 127
        %v2440 = vpop.permute.xlu0 %2439
        %2441 = vrot.lane.b32.xlu0 %v2032, 127
        %v2442 = vpop.permute.xlu0 %2441
        %2443 = vrot.lane.b32.xlu0 %v2036, 127
        %v2444 = vpop.permute.xlu0 %2443
        %v2445 = vsel %vm956, %v2430, %v2438
        %v2446 = vsel %vm956, %v2432, %v2440
        %v2447 = vsel %vm956, %v2434, %v2442
        %v2448 = vsel %vm956, %v2436, %v2444
        %v2449 = vsel %vm956, %v2422, %v2430
        %v2450 = vsel %vm956, %v2424, %v2432
        %v2451 = vsel %vm956, %v2426, %v2434
        %v2452 = vsel %vm956, %v2428, %v2436
        %v2453 = vsel %vm956, %v2414, %v2422
        %v2454 = vsel %vm956, %v2416, %v2424
        %v2455 = vsel %vm956, %v2418, %v2426
        %v2456 = vsel %vm956, %v2420, %v2428
        %v2457 = vsel %vm956, %v2438, %v2414
        %v2458 = vsel %vm956, %v2440, %v2416
        %v2459 = vsel %vm956, %v2442, %v2418
        %v2460 = vsel %vm956, %v2444, %v2420
        %v2461 = vld [vmem:[%s973] ss:$8 sm:$0xf]
        %v2463 = vperm.slane %v2461, 0
        %v2464 = vperm.slane %v2461, 1
        %v2465 = vperm.slane %v2461, 2
        %v2466 = vperm.slane %v2461, 3
        %v2471 = vmul.f32 %v2453, %v2463
        %v2472 = vmul.f32 %v2449, %v2464
        %v2473 = vmul.f32 %v2445, %v2465
        %v2474 = vmul.f32 %v2457, %v2466
        %v2475 = vmul.f32 %v2454, %v2463
        %v2476 = vmul.f32 %v2450, %v2464
        %v2477 = vmul.f32 %v2446, %v2465
        %v2478 = vmul.f32 %v2458, %v2466
        %v2479 = vmul.f32 %v2455, %v2463
        %v2480 = vmul.f32 %v2451, %v2464
        %v2481 = vmul.f32 %v2447, %v2465
        %v2482 = vmul.f32 %v2459, %v2466
        %v2483 = vmul.f32 %v2456, %v2463
        %v2484 = vmul.f32 %v2452, %v2464
        %v2485 = vmul.f32 %v2448, %v2465
        %v2486 = vmul.f32 %v2460, %v2466
        %v2487 = vpack.c.bf16 %v2472, %v2471
        %v2488 = vpack.c.bf16 %v2474, %v2473
        %v2489 = vpack.c.bf16 %v2476, %v2475
        %v2490 = vpack.c.bf16 %v2478, %v2477
        %v2491 = vpack.c.bf16 %v2480, %v2479
        %v2492 = vpack.c.bf16 %v2482, %v2481
        %v2493 = vpack.c.bf16 %v2484, %v2483
        %v2494 = vpack.c.bf16 %v2486, %v2485
        %2495 = vst [vmem:[#allocation2 + $0x140] sm:$0xff] %v2487
        %2496 = vst [vmem:[#allocation2 + $0x148] sm:$0xff] %v2488
        %2497 = vst [vmem:[#allocation2 + $0x150] sm:$0xff] %v2489
        %2498 = vst [vmem:[#allocation2 + $0x158] sm:$0xff] %v2490
        %2499 = vst [vmem:[#allocation2 + $0x160] sm:$0xff] %v2491
        %2500 = vst [vmem:[#allocation2 + $0x168] sm:$0xff] %v2492
        %2501 = vst [vmem:[#allocation2 + $0x170] sm:$0xff] %v2493
        %2502 = vst [vmem:[#allocation2 + $0x178] sm:$0xff] %v2494
        %2503 = vrot.lane.b32.xlu0 %v2021, 113
        %v2504 = vpop.permute.xlu0 %2503
        %2505 = vrot.lane.b32.xlu0 %v2025, 113
        %v2506 = vpop.permute.xlu0 %2505
        %2507 = vrot.lane.b32.xlu0 %v2029, 113
        %v2508 = vpop.permute.xlu0 %2507
        %2509 = vrot.lane.b32.xlu0 %v2033, 113
        %v2510 = vpop.permute.xlu0 %2509
        %2511 = vrot.lane.b32.xlu0 %v2022, 113
        %v2512 = vpop.permute.xlu0 %2511
        %2513 = vrot.lane.b32.xlu0 %v2026, 113
        %v2514 = vpop.permute.xlu0 %2513
        %2515 = vrot.lane.b32.xlu0 %v2030, 113
        %v2516 = vpop.permute.xlu0 %2515
        %2517 = vrot.lane.b32.xlu0 %v2034, 113
        %v2518 = vpop.permute.xlu0 %2517
        %2519 = vrot.lane.b32.xlu0 %v2023, 113
        %v2520 = vpop.permute.xlu0 %2519
        %2521 = vrot.lane.b32.xlu0 %v2027, 113
        %v2522 = vpop.permute.xlu0 %2521
        %2523 = vrot.lane.b32.xlu0 %v2031, 113
        %v2524 = vpop.permute.xlu0 %2523
        %2525 = vrot.lane.b32.xlu0 %v2035, 113
        %v2526 = vpop.permute.xlu0 %2525
        %2527 = vrot.lane.b32.xlu0 %v2024, 113
        %v2528 = vpop.permute.xlu0 %2527
        %2529 = vrot.lane.b32.xlu0 %v2028, 113
        %v2530 = vpop.permute.xlu0 %2529
        %2531 = vrot.lane.b32.xlu0 %v2032, 113
        %v2532 = vpop.permute.xlu0 %2531
        %2533 = vrot.lane.b32.xlu0 %v2036, 113
        %v2534 = vpop.permute.xlu0 %2533
        %v2535 = vsel %vm1048, %v2520, %v2528
        %v2536 = vsel %vm1048, %v2522, %v2530
        %v2537 = vsel %vm1048, %v2524, %v2532
        %v2538 = vsel %vm1048, %v2526, %v2534
        %v2539 = vsel %vm1048, %v2512, %v2520
        %v2540 = vsel %vm1048, %v2514, %v2522
        %v2541 = vsel %vm1048, %v2516, %v2524
        %v2542 = vsel %vm1048, %v2518, %v2526
        %v2543 = vsel %vm1048, %v2504, %v2512
        %v2544 = vsel %vm1048, %v2506, %v2514
        %v2545 = vsel %vm1048, %v2508, %v2516
        %v2546 = vsel %vm1048, %v2510, %v2518
        %v2547 = vsel %vm1048, %v2528, %v2504
        %v2548 = vsel %vm1048, %v2530, %v2506
        %v2549 = vsel %vm1048, %v2532, %v2508
        %v2550 = vsel %vm1048, %v2534, %v2510
        %v2551 = vld [vmem:[%s1065] ss:$8 sm:$0xf]
        %v2553 = vperm.slane %v2551, 0
        %v2554 = vperm.slane %v2551, 1
        %v2555 = vperm.slane %v2551, 2
        %v2556 = vperm.slane %v2551, 3
        %v2561 = vmul.f32 %v2543, %v2553
        %v2562 = vmul.f32 %v2539, %v2554
        %v2563 = vmul.f32 %v2535, %v2555
        %v2564 = vmul.f32 %v2547, %v2556
        %v2565 = vmul.f32 %v2544, %v2553
        %v2566 = vmul.f32 %v2540, %v2554
        %v2567 = vmul.f32 %v2536, %v2555
        %v2568 = vmul.f32 %v2548, %v2556
        %v2569 = vmul.f32 %v2545, %v2553
        %v2570 = vmul.f32 %v2541, %v2554
        %v2571 = vmul.f32 %v2537, %v2555
        %v2572 = vmul.f32 %v2549, %v2556
        %v2573 = vmul.f32 %v2546, %v2553
        %v2574 = vmul.f32 %v2542, %v2554
        %v2575 = vmul.f32 %v2538, %v2555
        %v2576 = vmul.f32 %v2550, %v2556
        %v2577 = vpack.c.bf16 %v2562, %v2561
        %v2578 = vpack.c.bf16 %v2564, %v2563
        %v2579 = vpack.c.bf16 %v2566, %v2565
        %v2580 = vpack.c.bf16 %v2568, %v2567
        %v2581 = vpack.c.bf16 %v2570, %v2569
        %v2582 = vpack.c.bf16 %v2572, %v2571
        %v2583 = vpack.c.bf16 %v2574, %v2573
        %v2584 = vpack.c.bf16 %v2576, %v2575
        %2585 = vst [vmem:[#allocation2 + $0x180] sm:$0xff] %v2577
        %2586 = vst [vmem:[#allocation2 + $0x188] sm:$0xff] %v2578
        %2587 = vst [vmem:[#allocation2 + $0x190] sm:$0xff] %v2579
        %2588 = vst [vmem:[#allocation2 + $0x198] sm:$0xff] %v2580
        %2589 = vst [vmem:[#allocation2 + $0x1a0] sm:$0xff] %v2581
        %2590 = vst [vmem:[#allocation2 + $0x1a8] sm:$0xff] %v2582
        %2591 = vst [vmem:[#allocation2 + $0x1b0] sm:$0xff] %v2583
        %2592 = vst [vmem:[#allocation2 + $0x1b8] sm:$0xff] %v2584
        %2593 = vrot.lane.b32.xlu0 %v2021, 112
        %v2594 = vpop.permute.xlu0 %2593
        %2595 = vrot.lane.b32.xlu0 %v2025, 112
        %v2596 = vpop.permute.xlu0 %2595
        %2597 = vrot.lane.b32.xlu0 %v2029, 112
        %v2598 = vpop.permute.xlu0 %2597
        %2599 = vrot.lane.b32.xlu0 %v2033, 112
        %v2600 = vpop.permute.xlu0 %2599
        %2601 = vrot.lane.b32.xlu0 %v2022, 112
        %v2602 = vpop.permute.xlu0 %2601
        %2603 = vrot.lane.b32.xlu0 %v2026, 112
        %v2604 = vpop.permute.xlu0 %2603
        %2605 = vrot.lane.b32.xlu0 %v2030, 112
        %v2606 = vpop.permute.xlu0 %2605
        %2607 = vrot.lane.b32.xlu0 %v2034, 112
        %v2608 = vpop.permute.xlu0 %2607
        %2609 = vrot.lane.b32.xlu0 %v2023, 112
        %v2610 = vpop.permute.xlu0 %2609
        %2611 = vrot.lane.b32.xlu0 %v2027, 112
        %v2612 = vpop.permute.xlu0 %2611
        %2613 = vrot.lane.b32.xlu0 %v2031, 112
        %v2614 = vpop.permute.xlu0 %2613
        %2615 = vrot.lane.b32.xlu0 %v2035, 112
        %v2616 = vpop.permute.xlu0 %2615
        %2617 = vrot.lane.b32.xlu0 %v2024, 112
        %v2618 = vpop.permute.xlu0 %2617
        %2619 = vrot.lane.b32.xlu0 %v2028, 112
        %v2620 = vpop.permute.xlu0 %2619
        %2621 = vrot.lane.b32.xlu0 %v2032, 112
        %v2622 = vpop.permute.xlu0 %2621
        %2623 = vrot.lane.b32.xlu0 %v2036, 112
        %v2624 = vpop.permute.xlu0 %2623
        %v2625 = vsel %vm1140, %v2610, %v2618
        %v2626 = vsel %vm1140, %v2612, %v2620
        %v2627 = vsel %vm1140, %v2614, %v2622
        %v2628 = vsel %vm1140, %v2616, %v2624
        %v2629 = vsel %vm1140, %v2602, %v2610
        %v2630 = vsel %vm1140, %v2604, %v2612
        %v2631 = vsel %vm1140, %v2606, %v2614
        %v2632 = vsel %vm1140, %v2608, %v2616
        %v2633 = vsel %vm1140, %v2594, %v2602
        %v2634 = vsel %vm1140, %v2596, %v2604
        %v2635 = vsel %vm1140, %v2598, %v2606
        %v2636 = vsel %vm1140, %v2600, %v2608
        %v2637 = vsel %vm1140, %v2618, %v2594
        %v2638 = vsel %vm1140, %v2620, %v2596
        %v2639 = vsel %vm1140, %v2622, %v2598
        %v2640 = vsel %vm1140, %v2624, %v2600
        %v2641 = vld [vmem:[%s1157] ss:$8 sm:$0xf]
        %v2643 = vperm.slane %v2641, 0
        %v2644 = vperm.slane %v2641, 1
        %v2645 = vperm.slane %v2641, 2
        %v2646 = vperm.slane %v2641, 3
        %v2651 = vmul.f32 %v2633, %v2643
        %v2652 = vmul.f32 %v2629, %v2644
        %v2653 = vmul.f32 %v2625, %v2645
        %v2654 = vmul.f32 %v2637, %v2646
        %v2655 = vmul.f32 %v2634, %v2643
        %v2656 = vmul.f32 %v2630, %v2644
        %v2657 = vmul.f32 %v2626, %v2645
        %v2658 = vmul.f32 %v2638, %v2646
        %v2659 = vmul.f32 %v2635, %v2643
        %v2660 = vmul.f32 %v2631, %v2644
        %v2661 = vmul.f32 %v2627, %v2645
        %v2662 = vmul.f32 %v2639, %v2646
        %v2663 = vmul.f32 %v2636, %v2643
        %v2664 = vmul.f32 %v2632, %v2644
        %v2665 = vmul.f32 %v2628, %v2645
        %v2666 = vmul.f32 %v2640, %v2646
        %v2667 = vpack.c.bf16 %v2652, %v2651
        %v2668 = vpack.c.bf16 %v2654, %v2653
        %v2669 = vpack.c.bf16 %v2656, %v2655
        %v2670 = vpack.c.bf16 %v2658, %v2657
        %v2671 = vpack.c.bf16 %v2660, %v2659
        %v2672 = vpack.c.bf16 %v2662, %v2661
        %v2673 = vpack.c.bf16 %v2664, %v2663
        %v2674 = vpack.c.bf16 %v2666, %v2665
        %2675 = vst [vmem:[#allocation2 + $0x1c0] sm:$0xff] %v2667
        %2676 = vst [vmem:[#allocation2 + $0x1c8] sm:$0xff] %v2668
        %2677 = vst [vmem:[#allocation2 + $0x1d0] sm:$0xff] %v2669
        %2678 = vst [vmem:[#allocation2 + $0x1d8] sm:$0xff] %v2670
        %2679 = vst [vmem:[#allocation2 + $0x1e0] sm:$0xff] %v2671
        %2680 = vst [vmem:[#allocation2 + $0x1e8] sm:$0xff] %v2672
        %2681 = vst [vmem:[#allocation2 + $0x1f0] sm:$0xff] %v2673
        %2682 = vst [vmem:[#allocation2 + $0x1f8] sm:$0xff] %v2674
        %2683 = vrot.lane.b32.xlu0 %v2021, 111
        %v2684 = vpop.permute.xlu0 %2683
        %2685 = vrot.lane.b32.xlu0 %v2025, 111
        %v2686 = vpop.permute.xlu0 %2685
        %2687 = vrot.lane.b32.xlu0 %v2029, 111
        %v2688 = vpop.permute.xlu0 %2687
        %2689 = vrot.lane.b32.xlu0 %v2033, 111
        %v2690 = vpop.permute.xlu0 %2689
        %2691 = vrot.lane.b32.xlu0 %v2022, 111
        %v2692 = vpop.permute.xlu0 %2691
        %2693 = vrot.lane.b32.xlu0 %v2026, 111
        %v2694 = vpop.permute.xlu0 %2693
        %2695 = vrot.lane.b32.xlu0 %v2030, 111
        %v2696 = vpop.permute.xlu0 %2695
        %2697 = vrot.lane.b32.xlu0 %v2034, 111
        %v2698 = vpop.permute.xlu0 %2697
        %2699 = vrot.lane.b32.xlu0 %v2023, 111
        %v2700 = vpop.permute.xlu0 %2699
        %2701 = vrot.lane.b32.xlu0 %v2027, 111
        %v2702 = vpop.permute.xlu0 %2701
        %2703 = vrot.lane.b32.xlu0 %v2031, 111
        %v2704 = vpop.permute.xlu0 %2703
        %2705 = vrot.lane.b32.xlu0 %v2035, 111
        %v2706 = vpop.permute.xlu0 %2705
        %2707 = vrot.lane.b32.xlu0 %v2024, 111
        %v2708 = vpop.permute.xlu0 %2707
        %2709 = vrot.lane.b32.xlu0 %v2028, 111
        %v2710 = vpop.permute.xlu0 %2709
        %2711 = vrot.lane.b32.xlu0 %v2032, 111
        %v2712 = vpop.permute.xlu0 %2711
        %2713 = vrot.lane.b32.xlu0 %v2036, 111
        %v2714 = vpop.permute.xlu0 %2713
        %v2715 = vsel %vm1232, %v2700, %v2708
        %v2716 = vsel %vm1232, %v2702, %v2710
        %v2717 = vsel %vm1232, %v2704, %v2712
        %v2718 = vsel %vm1232, %v2706, %v2714
        %v2719 = vsel %vm1232, %v2692, %v2700
        %v2720 = vsel %vm1232, %v2694, %v2702
        %v2721 = vsel %vm1232, %v2696, %v2704
        %v2722 = vsel %vm1232, %v2698, %v2706
        %v2723 = vsel %vm1232, %v2684, %v2692
        %v2724 = vsel %vm1232, %v2686, %v2694
        %v2725 = vsel %vm1232, %v2688, %v2696
        %v2726 = vsel %vm1232, %v2690, %v2698
        %v2727 = vsel %vm1232, %v2708, %v2684
        %v2728 = vsel %vm1232, %v2710, %v2686
        %v2729 = vsel %vm1232, %v2712, %v2688
        %v2730 = vsel %vm1232, %v2714, %v2690
        %v2731 = vld [vmem:[%s1249] ss:$8 sm:$0xf]
        %v2733 = vperm.slane %v2731, 0
        %v2734 = vperm.slane %v2731, 1
        %v2735 = vperm.slane %v2731, 2
        %v2736 = vperm.slane %v2731, 3
        %v2741 = vmul.f32 %v2723, %v2733
        %v2742 = vmul.f32 %v2719, %v2734
        %v2743 = vmul.f32 %v2715, %v2735
        %v2744 = vmul.f32 %v2727, %v2736
        %v2745 = vmul.f32 %v2724, %v2733
        %v2746 = vmul.f32 %v2720, %v2734
        %v2747 = vmul.f32 %v2716, %v2735
        %v2748 = vmul.f32 %v2728, %v2736
        %v2749 = vmul.f32 %v2725, %v2733
        %v2750 = vmul.f32 %v2721, %v2734
        %v2751 = vmul.f32 %v2717, %v2735
        %v2752 = vmul.f32 %v2729, %v2736
        %v2753 = vmul.f32 %v2726, %v2733
        %v2754 = vmul.f32 %v2722, %v2734
        %v2755 = vmul.f32 %v2718, %v2735
        %v2756 = vmul.f32 %v2730, %v2736
        %v2757 = vpack.c.bf16 %v2742, %v2741
        %v2758 = vpack.c.bf16 %v2744, %v2743
        %v2759 = vpack.c.bf16 %v2746, %v2745
        %v2760 = vpack.c.bf16 %v2748, %v2747
        %v2761 = vpack.c.bf16 %v2750, %v2749
        %v2762 = vpack.c.bf16 %v2752, %v2751
        %v2763 = vpack.c.bf16 %v2754, %v2753
        %v2764 = vpack.c.bf16 %v2756, %v2755
        %2765 = vst [vmem:[#allocation2 + $0x200] sm:$0xff] %v2757
        %2766 = vst [vmem:[#allocation2 + $0x208] sm:$0xff] %v2758
        %2767 = vst [vmem:[#allocation2 + $0x210] sm:$0xff] %v2759
        %2768 = vst [vmem:[#allocation2 + $0x218] sm:$0xff] %v2760
        %2769 = vst [vmem:[#allocation2 + $0x220] sm:$0xff] %v2761
        %2770 = vst [vmem:[#allocation2 + $0x228] sm:$0xff] %v2762
        %2771 = vst [vmem:[#allocation2 + $0x230] sm:$0xff] %v2763
        %2772 = vst [vmem:[#allocation2 + $0x238] sm:$0xff] %v2764
        %v2773 = vld [vmem:[#allocation6] sm:$0xff]
        %v2774 = vld [vmem:[#allocation6 + $0x8] sm:$0xf]
        %v2775 = vld [vmem:[#allocation6 + $0xc] sm:$0xff]
        %v2776 = vld [vmem:[#allocation6 + $0x14] sm:$0xf]
        %v2777 = vld [vmem:[#allocation6 + $0x18] sm:$0xff]
        %v2778 = vld [vmem:[#allocation6 + $0x20] sm:$0xf]
        %v2779 = vld [vmem:[#allocation6 + $0x24] sm:$0xff]
        %v2780 = vld [vmem:[#allocation6 + $0x2c] sm:$0xf]
        %v2781 = vld [vmem:[#allocation2] sm:$0xff]
        %v2782 = vld [vmem:[#allocation2 + $0x8] sm:$0xff]
        %v2783 = vld [vmem:[#allocation2 + $0x10] sm:$0xff]
        %v2784 = vld [vmem:[#allocation2 + $0x18] sm:$0xff]
        %v2785 = vld [vmem:[#allocation2 + $0x20] sm:$0xff]
        %v2786 = vld [vmem:[#allocation2 + $0x28] sm:$0xff]
        %v2787 = vld [vmem:[#allocation2 + $0x30] sm:$0xff]
        %v2788 = vld [vmem:[#allocation2 + $0x38] sm:$0xff]
        %v2789 = vld [vmem:[#allocation2 + $0x40] sm:$0xff]
        %v2790 = vld [vmem:[#allocation2 + $0x48] sm:$0xff]
        %v2791 = vld [vmem:[#allocation2 + $0x50] sm:$0xff]
        %v2792 = vld [vmem:[#allocation2 + $0x58] sm:$0xff]
        %v2793 = vld [vmem:[#allocation2 + $0x60] sm:$0xff]
        %v2794 = vld [vmem:[#allocation2 + $0x68] sm:$0xff]
        %v2795 = vld [vmem:[#allocation2 + $0x70] sm:$0xff]
        %v2796 = vld [vmem:[#allocation2 + $0x78] sm:$0xff]
        %v2797 = vld [vmem:[#allocation2 + $0x80] sm:$0xff]
        %v2798 = vld [vmem:[#allocation2 + $0x88] sm:$0xff]
        %v2799 = vld [vmem:[#allocation2 + $0x90] sm:$0xff]
        %v2800 = vld [vmem:[#allocation2 + $0x98] sm:$0xff]
        %v2801 = vld [vmem:[#allocation2 + $0xa0] sm:$0xff]
        %v2802 = vld [vmem:[#allocation2 + $0xa8] sm:$0xff]
        %v2803 = vld [vmem:[#allocation2 + $0xb0] sm:$0xff]
        %v2804 = vld [vmem:[#allocation2 + $0xb8] sm:$0xff]
        %v2805 = vld [vmem:[#allocation2 + $0xc0] sm:$0xff]
        %v2806 = vld [vmem:[#allocation2 + $0xc8] sm:$0xff]
        %v2807 = vld [vmem:[#allocation2 + $0xd0] sm:$0xff]
        %v2808 = vld [vmem:[#allocation2 + $0xd8] sm:$0xff]
        %v2809 = vld [vmem:[#allocation2 + $0xe0] sm:$0xff]
        %v2810 = vld [vmem:[#allocation2 + $0xe8] sm:$0xff]
        %v2811 = vld [vmem:[#allocation2 + $0xf0] sm:$0xff]
        %v2812 = vld [vmem:[#allocation2 + $0xf8] sm:$0xff]
        %v2813 = vld [vmem:[#allocation2 + $0x100] sm:$0xff]
        %v2814 = vld [vmem:[#allocation2 + $0x108] sm:$0xff]
        %v2815 = vld [vmem:[#allocation2 + $0x110] sm:$0xff]
        %v2816 = vld [vmem:[#allocation2 + $0x118] sm:$0xff]
        %v2817 = vld [vmem:[#allocation2 + $0x120] sm:$0xff]
        %v2818 = vld [vmem:[#allocation2 + $0x128] sm:$0xff]
        %v2819 = vld [vmem:[#allocation2 + $0x130] sm:$0xff]
        %v2820 = vld [vmem:[#allocation2 + $0x138] sm:$0xff]
        %v2821 = vld [vmem:[#allocation2 + $0x140] sm:$0xff]
        %v2822 = vld [vmem:[#allocation2 + $0x148] sm:$0xff]
        %v2823 = vld [vmem:[#allocation2 + $0x150] sm:$0xff]
        %v2824 = vld [vmem:[#allocation2 + $0x158] sm:$0xff]
        %v2825 = vld [vmem:[#allocation2 + $0x160] sm:$0xff]
        %v2826 = vld [vmem:[#allocation2 + $0x168] sm:$0xff]
        %v2827 = vld [vmem:[#allocation2 + $0x170] sm:$0xff]
        %v2828 = vld [vmem:[#allocation2 + $0x178] sm:$0xff]
        %v2829 = vld [vmem:[#allocation2 + $0x180] sm:$0xff]
        %v2830 = vld [vmem:[#allocation2 + $0x188] sm:$0xff]
        %v2831 = vld [vmem:[#allocation2 + $0x190] sm:$0xff]
        %v2832 = vld [vmem:[#allocation2 + $0x198] sm:$0xff]
        %v2833 = vld [vmem:[#allocation2 + $0x1a0] sm:$0xff]
        %v2834 = vld [vmem:[#allocation2 + $0x1a8] sm:$0xff]
        %v2835 = vld [vmem:[#allocation2 + $0x1b0] sm:$0xff]
        %v2836 = vld [vmem:[#allocation2 + $0x1b8] sm:$0xff]
        %v2837 = vld [vmem:[#allocation2 + $0x1c0] sm:$0xff]
        %v2838 = vld [vmem:[#allocation2 + $0x1c8] sm:$0xff]
        %v2839 = vld [vmem:[#allocation2 + $0x1d0] sm:$0xff]
        %v2840 = vld [vmem:[#allocation2 + $0x1d8] sm:$0xff]
        %v2841 = vld [vmem:[#allocation2 + $0x1e0] sm:$0xff]
        %v2842 = vld [vmem:[#allocation2 + $0x1e8] sm:$0xff]
        %v2843 = vld [vmem:[#allocation2 + $0x1f0] sm:$0xff]
        %v2844 = vld [vmem:[#allocation2 + $0x1f8] sm:$0xff]
        %v2845 = vld [vmem:[#allocation2 + $0x200] sm:$0xff]
        %v2846 = vld [vmem:[#allocation2 + $0x208] sm:$0xff]
        %v2847 = vld [vmem:[#allocation2 + $0x210] sm:$0xff]
        %v2848 = vld [vmem:[#allocation2 + $0x218] sm:$0xff]
        %v2849 = vld [vmem:[#allocation2 + $0x220] sm:$0xff]
        %v2850 = vld [vmem:[#allocation2 + $0x228] sm:$0xff]
        %v2851 = vld [vmem:[#allocation2 + $0x230] sm:$0xff]
        %v2852 = vld [vmem:[#allocation2 + $0x238] sm:$0xff]
        %v2861 = vunpack.c.l.b16 %v2773
        %v2862 = vunpack.c.h.b16 %v2773
        %v2863 = vunpack.c.l.b16 %v2774
        %v2864 = vunpack.c.l.b16 %v2775
        %v2865 = vunpack.c.h.b16 %v2775
        %v2866 = vunpack.c.l.b16 %v2776
        %v2867 = vunpack.c.l.b16 %v2777
        %v2868 = vunpack.c.h.b16 %v2777
        %v2869 = vunpack.c.l.b16 %v2778
        %v2870 = vunpack.c.l.b16 %v2779
        %v2871 = vunpack.c.h.b16 %v2779
        %v2872 = vunpack.c.l.b16 %v2780
        %v2873 = vpack.c.b16 %v2864, %v2861
        %v2874 = vpack.c.b16 %v2865, %v2862
        %v2875 = vpack.c.b16 %v2866, %v2863
        %v2876 = vpack.c.b16 %v2870, %v2867
        %v2877 = vpack.c.b16 %v2871, %v2868
        %v2878 = vpack.c.b16 %v2872, %v2869
        %v2955 = vunpack.c.l.b16 %v2781
        %v2956 = vunpack.c.h.b16 %v2781
        %v2957 = vunpack.c.l.b16 %v2782
        %v2958 = vunpack.c.h.b16 %v2782
        %v2959 = vunpack.c.l.b16 %v2783
        %v2960 = vunpack.c.h.b16 %v2783
        %v2961 = vunpack.c.l.b16 %v2784
        %v2962 = vunpack.c.h.b16 %v2784
        %v2963 = vunpack.c.l.b16 %v2785
        %v2964 = vunpack.c.h.b16 %v2785
        %v2965 = vunpack.c.l.b16 %v2786
        %v2966 = vunpack.c.h.b16 %v2786
        %v2967 = vunpack.c.l.b16 %v2787
        %v2968 = vunpack.c.h.b16 %v2787
        %v2969 = vunpack.c.l.b16 %v2788
        %v2970 = vunpack.c.h.b16 %v2788
        %v2971 = vunpack.c.l.b16 %v2789
        %v2972 = vunpack.c.h.b16 %v2789
        %v2973 = vunpack.c.l.b16 %v2790
        %v2974 = vunpack.c.h.b16 %v2790
        %v2975 = vunpack.c.l.b16 %v2791
        %v2976 = vunpack.c.h.b16 %v2791
        %v2977 = vunpack.c.l.b16 %v2792
        %v2978 = vunpack.c.h.b16 %v2792
        %v2979 = vunpack.c.l.b16 %v2793
        %v2980 = vunpack.c.h.b16 %v2793
        %v2981 = vunpack.c.l.b16 %v2794
        %v2982 = vunpack.c.h.b16 %v2794
        %v2983 = vunpack.c.l.b16 %v2795
        %v2984 = vunpack.c.h.b16 %v2795
        %v2985 = vunpack.c.l.b16 %v2796
        %v2986 = vunpack.c.h.b16 %v2796
        %v2987 = vunpack.c.l.b16 %v2797
        %v2988 = vunpack.c.h.b16 %v2797
        %v2989 = vunpack.c.l.b16 %v2798
        %v2990 = vunpack.c.h.b16 %v2798
        %v2991 = vunpack.c.l.b16 %v2799
        %v2992 = vunpack.c.h.b16 %v2799
        %v2993 = vunpack.c.l.b16 %v2800
        %v2994 = vunpack.c.h.b16 %v2800
        %v2995 = vunpack.c.l.b16 %v2801
        %v2996 = vunpack.c.h.b16 %v2801
        %v2997 = vunpack.c.l.b16 %v2802
        %v2998 = vunpack.c.h.b16 %v2802
        %v2999 = vunpack.c.l.b16 %v2803
        %v3000 = vunpack.c.h.b16 %v2803
        %v3001 = vunpack.c.l.b16 %v2804
        %v3002 = vunpack.c.h.b16 %v2804
        %v3003 = vunpack.c.l.b16 %v2805
        %v3004 = vunpack.c.h.b16 %v2805
        %v3005 = vunpack.c.l.b16 %v2806
        %v3006 = vunpack.c.h.b16 %v2806
        %v3007 = vunpack.c.l.b16 %v2807
        %v3008 = vunpack.c.h.b16 %v2807
        %v3009 = vunpack.c.l.b16 %v2808
        %v3010 = vunpack.c.h.b16 %v2808
        %v3011 = vunpack.c.l.b16 %v2809
        %v3012 = vunpack.c.h.b16 %v2809
        %v3013 = vunpack.c.l.b16 %v2810
        %v3014 = vunpack.c.h.b16 %v2810
        %v3015 = vunpack.c.l.b16 %v2811
        %v3016 = vunpack.c.h.b16 %v2811
        %v3017 = vunpack.c.l.b16 %v2812
        %v3018 = vunpack.c.h.b16 %v2812
        %v3019 = vunpack.c.l.b16 %v2813
        %v3020 = vunpack.c.h.b16 %v2813
        %v3021 = vunpack.c.l.b16 %v2814
        %v3022 = vunpack.c.h.b16 %v2814
        %v3023 = vunpack.c.l.b16 %v2815
        %v3024 = vunpack.c.h.b16 %v2815
        %v3025 = vunpack.c.l.b16 %v2816
        %v3026 = vunpack.c.h.b16 %v2816
        %v3027 = vunpack.c.l.b16 %v2817
        %v3028 = vunpack.c.h.b16 %v2817
        %v3029 = vunpack.c.l.b16 %v2818
        %v3030 = vunpack.c.h.b16 %v2818
        %v3031 = vunpack.c.l.b16 %v2819
        %v3032 = vunpack.c.h.b16 %v2819
        %v3033 = vunpack.c.l.b16 %v2820
        %v3034 = vunpack.c.h.b16 %v2820
        %v3035 = vunpack.c.l.b16 %v2821
        %v3036 = vunpack.c.h.b16 %v2821
        %v3037 = vunpack.c.l.b16 %v2822
        %v3038 = vunpack.c.h.b16 %v2822
        %v3039 = vunpack.c.l.b16 %v2823
        %v3040 = vunpack.c.h.b16 %v2823
        %v3041 = vunpack.c.l.b16 %v2824
        %v3042 = vunpack.c.h.b16 %v2824
        %v3043 = vunpack.c.l.b16 %v2825
        %v3044 = vunpack.c.h.b16 %v2825
        %v3045 = vunpack.c.l.b16 %v2826
        %v3046 = vunpack.c.h.b16 %v2826
        %v3047 = vunpack.c.l.b16 %v2827
        %v3048 = vunpack.c.h.b16 %v2827
        %v3049 = vunpack.c.l.b16 %v2828
        %v3050 = vunpack.c.h.b16 %v2828
        %v3051 = vunpack.c.l.b16 %v2829
        %v3052 = vunpack.c.h.b16 %v2829
        %v3053 = vunpack.c.l.b16 %v2830
        %v3054 = vunpack.c.h.b16 %v2830
        %v3055 = vunpack.c.l.b16 %v2831
        %v3056 = vunpack.c.h.b16 %v2831
        %v3057 = vunpack.c.l.b16 %v2832
        %v3058 = vunpack.c.h.b16 %v2832
        %v3059 = vunpack.c.l.b16 %v2833
        %v3060 = vunpack.c.h.b16 %v2833
        %v3061 = vunpack.c.l.b16 %v2834
        %v3062 = vunpack.c.h.b16 %v2834
        %v3063 = vunpack.c.l.b16 %v2835
        %v3064 = vunpack.c.h.b16 %v2835
        %v3065 = vunpack.c.l.b16 %v2836
        %v3066 = vunpack.c.h.b16 %v2836
        %v3067 = vunpack.c.l.b16 %v2837
        %v3068 = vunpack.c.h.b16 %v2837
        %v3069 = vunpack.c.l.b16 %v2838
        %v3070 = vunpack.c.h.b16 %v2838
        %v3071 = vunpack.c.l.b16 %v2839
        %v3072 = vunpack.c.h.b16 %v2839
        %v3073 = vunpack.c.l.b16 %v2840
        %v3074 = vunpack.c.h.b16 %v2840
        %v3075 = vunpack.c.l.b16 %v2841
        %v3076 = vunpack.c.h.b16 %v2841
        %v3077 = vunpack.c.l.b16 %v2842
        %v3078 = vunpack.c.h.b16 %v2842
        %v3079 = vunpack.c.l.b16 %v2843
        %v3080 = vunpack.c.h.b16 %v2843
        %v3081 = vunpack.c.l.b16 %v2844
        %v3082 = vunpack.c.h.b16 %v2844
        %v3083 = vunpack.c.l.b16 %v2845
        %v3084 = vunpack.c.h.b16 %v2845
        %v3085 = vunpack.c.l.b16 %v2846
        %v3086 = vunpack.c.h.b16 %v2846
        %v3087 = vunpack.c.l.b16 %v2847
        %v3088 = vunpack.c.h.b16 %v2847
        %v3089 = vunpack.c.l.b16 %v2848
        %v3090 = vunpack.c.h.b16 %v2848
        %v3091 = vunpack.c.l.b16 %v2849
        %v3092 = vunpack.c.h.b16 %v2849
        %v3093 = vunpack.c.l.b16 %v2850
        %v3094 = vunpack.c.h.b16 %v2850
        %v3095 = vunpack.c.l.b16 %v2851
        %v3096 = vunpack.c.h.b16 %v2851
        %v3097 = vunpack.c.l.b16 %v2852
        %v3098 = vunpack.c.h.b16 %v2852
        %v3099 = vpack.c.b16 %v2959, %v2955
        %v3100 = vpack.c.b16 %v2960, %v2956
        %v3101 = vpack.c.b16 %v2961, %v2957
        %v3102 = vpack.c.b16 %v2962, %v2958
        %v3103 = vpack.c.b16 %v2967, %v2963
        %v3104 = vpack.c.b16 %v2968, %v2964
        %v3105 = vpack.c.b16 %v2969, %v2965
        %v3106 = vpack.c.b16 %v2970, %v2966
        %v3107 = vpack.c.b16 %v2975, %v2971
        %v3108 = vpack.c.b16 %v2976, %v2972
        %v3109 = vpack.c.b16 %v2977, %v2973
        %v3110 = vpack.c.b16 %v2978, %v2974
        %v3111 = vpack.c.b16 %v2983, %v2979
        %v3112 = vpack.c.b16 %v2984, %v2980
        %v3113 = vpack.c.b16 %v2985, %v2981
        %v3114 = vpack.c.b16 %v2986, %v2982
        %v3115 = vpack.c.b16 %v2991, %v2987
        %v3116 = vpack.c.b16 %v2992, %v2988
        %v3117 = vpack.c.b16 %v2993, %v2989
        %v3118 = vpack.c.b16 %v2994, %v2990
        %v3119 = vpack.c.b16 %v2999, %v2995
        %v3120 = vpack.c.b16 %v3000, %v2996
        %v3121 = vpack.c.b16 %v3001, %v2997
        %v3122 = vpack.c.b16 %v3002, %v2998
        %v3123 = vpack.c.b16 %v3007, %v3003
        %v3124 = vpack.c.b16 %v3008, %v3004
        %v3125 = vpack.c.b16 %v3009, %v3005
        %v3126 = vpack.c.b16 %v3010, %v3006
        %v3127 = vpack.c.b16 %v3015, %v3011
        %v3128 = vpack.c.b16 %v3016, %v3012
        %v3129 = vpack.c.b16 %v3017, %v3013
        %v3130 = vpack.c.b16 %v3018, %v3014
        %v3131 = vpack.c.b16 %v3023, %v3019
        %v3132 = vpack.c.b16 %v3024, %v3020
        %v3133 = vpack.c.b16 %v3025, %v3021
        %v3134 = vpack.c.b16 %v3026, %v3022
        %v3135 = vpack.c.b16 %v3031, %v3027
        %v3136 = vpack.c.b16 %v3032, %v3028
        %v3137 = vpack.c.b16 %v3033, %v3029
        %v3138 = vpack.c.b16 %v3034, %v3030
        %v3139 = vpack.c.b16 %v3039, %v3035
        %v3140 = vpack.c.b16 %v3040, %v3036
        %v3141 = vpack.c.b16 %v3041, %v3037
        %v3142 = vpack.c.b16 %v3042, %v3038
        %v3143 = vpack.c.b16 %v3047, %v3043
        %v3144 = vpack.c.b16 %v3048, %v3044
        %v3145 = vpack.c.b16 %v3049, %v3045
        %v3146 = vpack.c.b16 %v3050, %v3046
        %v3147 = vpack.c.b16 %v3055, %v3051
        %v3148 = vpack.c.b16 %v3056, %v3052
        %v3149 = vpack.c.b16 %v3057, %v3053
        %v3150 = vpack.c.b16 %v3058, %v3054
        %v3151 = vpack.c.b16 %v3063, %v3059
        %v3152 = vpack.c.b16 %v3064, %v3060
        %v3153 = vpack.c.b16 %v3065, %v3061
        %v3154 = vpack.c.b16 %v3066, %v3062
        %v3155 = vpack.c.b16 %v3071, %v3067
        %v3156 = vpack.c.b16 %v3072, %v3068
        %v3157 = vpack.c.b16 %v3073, %v3069
        %v3158 = vpack.c.b16 %v3074, %v3070
        %v3159 = vpack.c.b16 %v3079, %v3075
        %v3160 = vpack.c.b16 %v3080, %v3076
        %v3161 = vpack.c.b16 %v3081, %v3077
        %v3162 = vpack.c.b16 %v3082, %v3078
        %v3163 = vpack.c.b16 %v3087, %v3083
        %v3164 = vpack.c.b16 %v3088, %v3084
        %v3165 = vpack.c.b16 %v3089, %v3085
        %v3166 = vpack.c.b16 %v3090, %v3086
        %v3167 = vpack.c.b16 %v3095, %v3091
        %v3168 = vpack.c.b16 %v3096, %v3092
        %v3169 = vpack.c.b16 %v3097, %v3093
        %v3170 = vpack.c.b16 %v3098, %v3094
        %v3244 = vsel %vm1786, %v2875, 0
        %v3247 = vsel %vm1786, %v2878, 0
        %3249 = vmatpush.bf16.msra.mxu0 %v3127
        %3250 = vmatpush.bf16.msra.mxu0 %v3123
        %3251 = vmatpush.bf16.msra.mxu0 %v3119
        %3252 = vmatpush.bf16.msra.mxu0 %v3115
        %3253 = vmatpush.bf16.msra.mxu0 %v3111
        %3254 = vmatpush.bf16.msra.mxu0 %v3107
        %3255 = vmatpush.bf16.msra.mxu0 %v3103
        %3256 = vmatpush.bf16.msra.mxu0 %v3099
        %3257 = vmatmul.bf16.gmra.mxu0 %v2873
        %v3258 = vpop.f32.mrf.mxu0
        %v3259 = vadd.f32 0.0, %v3258
        %v3260 = vpop.f32.mrf.mxu0
        %v3261 = vadd.f32 0.0, %v3260
        %3262 = vmatmul.bf16.gmra.mxu0 %v2876
        %v3263 = vpop.f32.mrf.mxu0
        %v3264 = vadd.f32 0.0, %v3263
        %v3265 = vpop.f32.mrf.mxu0
        %v3266 = vadd.f32 0.0, %v3265
        %3267 = vdwg.mxu0
        %3268 = vmatpush.bf16.msra.mxu0 %v3159
        %3269 = vmatpush.bf16.msra.mxu0 %v3155
        %3270 = vmatpush.bf16.msra.mxu0 %v3151
        %3271 = vmatpush.bf16.msra.mxu0 %v3147
        %3272 = vmatpush.bf16.msra.mxu0 %v3143
        %3273 = vmatpush.bf16.msra.mxu0 %v3139
        %3274 = vmatpush.bf16.msra.mxu0 %v3135
        %3275 = vmatpush.bf16.msra.mxu0 %v3131
        %3276 = vmatmul.bf16.gmra.mxu0 %v2874
        %v3277 = vpop.f32.mrf.mxu0
        %v3278 = vadd.f32 %v3259, %v3277
        %v3279 = vpop.f32.mrf.mxu0
        %v3280 = vadd.f32 %v3261, %v3279
        %3281 = vmatmul.bf16.gmra.mxu0 %v2877
        %v3282 = vpop.f32.mrf.mxu0
        %v3283 = vadd.f32 %v3264, %v3282
        %v3284 = vpop.f32.mrf.mxu0
        %v3285 = vadd.f32 %v3266, %v3284
        %3286 = vdwg.mxu0
        %3287 = vmatpush.bf16.msra.mxu0 0
        %3288 = vmatpush.bf16.msra.mxu0 0
        %3289 = vmatpush.bf16.msra.mxu0 0
        %3290 = vmatpush.bf16.msra.mxu0 0
        %3291 = vmatpush.bf16.msra.mxu0 0
        %3292 = vmatpush.bf16.msra.mxu0 0
        %3293 = vmatpush.bf16.msra.mxu0 %v3167
        %3294 = vmatpush.bf16.msra.mxu0 %v3163
        %3295 = vmatmul.bf16.gmra.mxu0 %v3244
        %v3296 = vpop.f32.mrf.mxu0
        %v3297 = vadd.f32 %v3278, %v3296
        %v3298 = vpop.f32.mrf.mxu0
        %v3299 = vadd.f32 %v3280, %v3298
        %3300 = vmatmul.bf16.gmra.mxu0 %v3247
        %v3301 = vpop.f32.mrf.mxu0
        %v3302 = vadd.f32 %v3283, %v3301
        %v3303 = vpop.f32.mrf.mxu0
        %v3304 = vadd.f32 %v3285, %v3303
        %3305 = vdwg.mxu0
        %3306 = vmatpush.bf16.msra.mxu0 %v3128
        %3307 = vmatpush.bf16.msra.mxu0 %v3124
        %3308 = vmatpush.bf16.msra.mxu0 %v3120
        %3309 = vmatpush.bf16.msra.mxu0 %v3116
        %3310 = vmatpush.bf16.msra.mxu0 %v3112
        %3311 = vmatpush.bf16.msra.mxu0 %v3108
        %3312 = vmatpush.bf16.msra.mxu0 %v3104
        %3313 = vmatpush.bf16.msra.mxu0 %v3100
        %3314 = vmatmul.bf16.gmra.mxu0 %v2873
        %v3315 = vpop.f32.mrf.mxu0
        %v3316 = vadd.f32 0.0, %v3315
        %v3317 = vpop.f32.mrf.mxu0
        %v3318 = vadd.f32 0.0, %v3317
        %3319 = vmatmul.bf16.gmra.mxu0 %v2876
        %v3320 = vpop.f32.mrf.mxu0
        %v3321 = vadd.f32 0.0, %v3320
        %v3322 = vpop.f32.mrf.mxu0
        %v3323 = vadd.f32 0.0, %v3322
        %3324 = vdwg.mxu0
        %3325 = vmatpush.bf16.msra.mxu0 %v3160
        %3326 = vmatpush.bf16.msra.mxu0 %v3156
        %3327 = vmatpush.bf16.msra.mxu0 %v3152
        %3328 = vmatpush.bf16.msra.mxu0 %v3148
        %3329 = vmatpush.bf16.msra.mxu0 %v3144
        %3330 = vmatpush.bf16.msra.mxu0 %v3140
        %3331 = vmatpush.bf16.msra.mxu0 %v3136
        %3332 = vmatpush.bf16.msra.mxu0 %v3132
        %3333 = vmatmul.bf16.gmra.mxu0 %v2874
        %v3334 = vpop.f32.mrf.mxu0
        %v3335 = vadd.f32 %v3316, %v3334
        %v3336 = vpop.f32.mrf.mxu0
        %v3337 = vadd.f32 %v3318, %v3336
        %3338 = vmatmul.bf16.gmra.mxu0 %v2877
        %v3339 = vpop.f32.mrf.mxu0
        %v3340 = vadd.f32 %v3321, %v3339
        %v3341 = vpop.f32.mrf.mxu0
        %v3342 = vadd.f32 %v3323, %v3341
        %3343 = vdwg.mxu0
        %3344 = vmatpush.bf16.msra.mxu0 0
        %3345 = vmatpush.bf16.msra.mxu0 0
        %3346 = vmatpush.bf16.msra.mxu0 0
        %3347 = vmatpush.bf16.msra.mxu0 0
        %3348 = vmatpush.bf16.msra.mxu0 0
        %3349 = vmatpush.bf16.msra.mxu0 0
        %3350 = vmatpush.bf16.msra.mxu0 %v3168
        %3351 = vmatpush.bf16.msra.mxu0 %v3164
        %3352 = vmatmul.bf16.gmra.mxu0 %v3244
        %v3353 = vpop.f32.mrf.mxu0
        %v3354 = vadd.f32 %v3335, %v3353
        %v3355 = vpop.f32.mrf.mxu0
        %v3356 = vadd.f32 %v3337, %v3355
        %3357 = vmatmul.bf16.gmra.mxu0 %v3247
        %v3358 = vpop.f32.mrf.mxu0
        %v3359 = vadd.f32 %v3340, %v3358
        %v3360 = vpop.f32.mrf.mxu0
        %v3361 = vadd.f32 %v3342, %v3360
        %3362 = vdwg.mxu0
        %3363 = vmatpush.bf16.msra.mxu0 %v3129
        %3364 = vmatpush.bf16.msra.mxu0 %v3125
        %3365 = vmatpush.bf16.msra.mxu0 %v3121
        %3366 = vmatpush.bf16.msra.mxu0 %v3117
        %3367 = vmatpush.bf16.msra.mxu0 %v3113
        %3368 = vmatpush.bf16.msra.mxu0 %v3109
        %3369 = vmatpush.bf16.msra.mxu0 %v3105
        %3370 = vmatpush.bf16.msra.mxu0 %v3101
        %3371 = vmatmul.bf16.gmra.mxu0 %v2873
        %v3372 = vpop.f32.mrf.mxu0
        %v3373 = vadd.f32 0.0, %v3372
        %v3374 = vpop.f32.mrf.mxu0
        %v3375 = vadd.f32 0.0, %v3374
        %3376 = vmatmul.bf16.gmra.mxu0 %v2876
        %v3377 = vpop.f32.mrf.mxu0
        %v3378 = vadd.f32 0.0, %v3377
        %v3379 = vpop.f32.mrf.mxu0
        %v3380 = vadd.f32 0.0, %v3379
        %3381 = vdwg.mxu0
        %3382 = vmatpush.bf16.msra.mxu0 %v3161
        %3383 = vmatpush.bf16.msra.mxu0 %v3157
        %3384 = vmatpush.bf16.msra.mxu0 %v3153
        %3385 = vmatpush.bf16.msra.mxu0 %v3149
        %3386 = vmatpush.bf16.msra.mxu0 %v3145
        %3387 = vmatpush.bf16.msra.mxu0 %v3141
        %3388 = vmatpush.bf16.msra.mxu0 %v3137
        %3389 = vmatpush.bf16.msra.mxu0 %v3133
        %3390 = vmatmul.bf16.gmra.mxu0 %v2874
        %v3391 = vpop.f32.mrf.mxu0
        %v3392 = vadd.f32 %v3373, %v3391
        %v3393 = vpop.f32.mrf.mxu0
        %v3394 = vadd.f32 %v3375, %v3393
        %3395 = vmatmul.bf16.gmra.mxu0 %v2877
        %v3396 = vpop.f32.mrf.mxu0
        %v3397 = vadd.f32 %v3378, %v3396
        %v3398 = vpop.f32.mrf.mxu0
        %v3399 = vadd.f32 %v3380, %v3398
        %3400 = vdwg.mxu0
        %3401 = vmatpush.bf16.msra.mxu0 0
        %3402 = vmatpush.bf16.msra.mxu0 0
        %3403 = vmatpush.bf16.msra.mxu0 0
        %3404 = vmatpush.bf16.msra.mxu0 0
        %3405 = vmatpush.bf16.msra.mxu0 0
        %3406 = vmatpush.bf16.msra.mxu0 0
        %3407 = vmatpush.bf16.msra.mxu0 %v3169
        %3408 = vmatpush.bf16.msra.mxu0 %v3165
        %3409 = vmatmul.bf16.gmra.mxu0 %v3244
        %v3410 = vpop.f32.mrf.mxu0
        %v3411 = vadd.f32 %v3392, %v3410
        %v3412 = vpop.f32.mrf.mxu0
        %v3413 = vadd.f32 %v3394, %v3412
        %3414 = vmatmul.bf16.gmra.mxu0 %v3247
        %v3415 = vpop.f32.mrf.mxu0
        %v3416 = vadd.f32 %v3397, %v3415
        %v3417 = vpop.f32.mrf.mxu0
        %v3418 = vadd.f32 %v3399, %v3417
        %3419 = vdwg.mxu0
        %3420 = vmatpush.bf16.msra.mxu0 %v3130
        %3421 = vmatpush.bf16.msra.mxu0 %v3126
        %3422 = vmatpush.bf16.msra.mxu0 %v3122
        %3423 = vmatpush.bf16.msra.mxu0 %v3118
        %3424 = vmatpush.bf16.msra.mxu0 %v3114
        %3425 = vmatpush.bf16.msra.mxu0 %v3110
        %3426 = vmatpush.bf16.msra.mxu0 %v3106
        %3427 = vmatpush.bf16.msra.mxu0 %v3102
        %3428 = vmatmul.bf16.gmra.mxu0 %v2873
        %v3429 = vpop.f32.mrf.mxu0
        %v3430 = vadd.f32 0.0, %v3429
        %v3431 = vpop.f32.mrf.mxu0
        %v3432 = vadd.f32 0.0, %v3431
        %3433 = vmatmul.bf16.gmra.mxu0 %v2876
        %v3434 = vpop.f32.mrf.mxu0
        %v3435 = vadd.f32 0.0, %v3434
        %v3436 = vpop.f32.mrf.mxu0
        %v3437 = vadd.f32 0.0, %v3436
        %3438 = vdwg.mxu0
        %3439 = vmatpush.bf16.msra.mxu0 %v3162
        %3440 = vmatpush.bf16.msra.mxu0 %v3158
        %3441 = vmatpush.bf16.msra.mxu0 %v3154
        %3442 = vmatpush.bf16.msra.mxu0 %v3150
        %3443 = vmatpush.bf16.msra.mxu0 %v3146
        %3444 = vmatpush.bf16.msra.mxu0 %v3142
        %3445 = vmatpush.bf16.msra.mxu0 %v3138
        %3446 = vmatpush.bf16.msra.mxu0 %v3134
        %3447 = vmatmul.bf16.gmra.mxu0 %v2874
        %v3448 = vpop.f32.mrf.mxu0
        %v3449 = vadd.f32 %v3430, %v3448
        %v3450 = vpop.f32.mrf.mxu0
        %v3451 = vadd.f32 %v3432, %v3450
        %3452 = vmatmul.bf16.gmra.mxu0 %v2877
        %v3453 = vpop.f32.mrf.mxu0
        %v3454 = vadd.f32 %v3435, %v3453
        %v3455 = vpop.f32.mrf.mxu0
        %v3456 = vadd.f32 %v3437, %v3455
        %3457 = vdwg.mxu0
        %3458 = vmatpush.bf16.msra.mxu0 0
        %3459 = vmatpush.bf16.msra.mxu0 0
        %3460 = vmatpush.bf16.msra.mxu0 0
        %3461 = vmatpush.bf16.msra.mxu0 0
        %3462 = vmatpush.bf16.msra.mxu0 0
        %3463 = vmatpush.bf16.msra.mxu0 0
        %3464 = vmatpush.bf16.msra.mxu0 %v3170
        %3465 = vmatpush.bf16.msra.mxu0 %v3166
        %3466 = vmatmul.bf16.gmra.mxu0 %v3244
        %v3467 = vpop.f32.mrf.mxu0
        %v3468 = vadd.f32 %v3449, %v3467
        %v3469 = vpop.f32.mrf.mxu0
        %v3470 = vadd.f32 %v3451, %v3469
        %3471 = vmatmul.bf16.gmra.mxu0 %v3247
        %v3472 = vpop.f32.mrf.mxu0
        %v3473 = vadd.f32 %v3454, %v3472
        %v3474 = vpop.f32.mrf.mxu0
        %v3475 = vadd.f32 %v3456, %v3474
        %3476 = vdwg.mxu0
        %v3477 = vld [vmem:[%s7] sm:$0xff]
        %v3478 = vld [vmem:[%s7 + $0x8] sm:$0xff]
        %v3479 = vld [vmem:[%s7 + $0x10] sm:$0xff]
        %v3480 = vld [vmem:[%s7 + $0x18] sm:$0xff]
        %v3481 = vld [vmem:[%s8] sm:$0x1]
        %v3482 = vld [vmem:[%s9] sm:$0xff]
        %v3483 = vld [vmem:[%s9 + $0x8] sm:$0xff]
        %v3484 = vld [vmem:[%s9 + $0x10] sm:$0xff]
        %v3485 = vld [vmem:[%s9 + $0x18] sm:$0xff]
        %v3486 = vld [vmem:[%s10] sm:$0xff]
        %v3487 = vld [vmem:[%s10 + $0x8] sm:$0xff]
        %v3488 = vld [vmem:[%s10 + $0x10] sm:$0xff]
        %v3489 = vld [vmem:[%s10 + $0x18] sm:$0xff]
        %v3490 = vadd.f32 %v3297, %v3354
        %3491 = vadd.xlane.f32.xlu0 %v3490
        %v3492 = vpop.xlane.xlu0 %3491
        %v3493 = vadd.f32 %v3299, %v3356
        %3494 = vadd.xlane.f32.xlu0 %v3493
        %v3495 = vpop.xlane.xlu0 %3494
        %v3496 = vadd.f32 %v3302, %v3359
        %3497 = vadd.xlane.f32.xlu0 %v3496
        %v3498 = vpop.xlane.xlu0 %3497
        %v3499 = vadd.f32 %v3304, %v3361
        %3500 = vadd.xlane.f32.xlu0 %v3499
        %v3501 = vpop.xlane.xlu0 %3500
        %v3502 = vrcp.pop 256.0
        %v3503 = vmul.f32 256.0, %v3502
        %v3504 = vsub.f32 1.0, %v3503
        %v3505 = vmul.f32 %v3502, %v3504
        %v3506 = vadd.f32 %v3502, %v3505
        %vm3507 = vweird.f32 %v3502
        %v3508 = vsel %vm3507, %v3502, %v3506
        %v3509 = vmul.f32 %v3492, %v3508
        %v3510 = vmul.f32 %v3495, %v3508
        %v3511 = vmul.f32 %v3498, %v3508
        %v3512 = vmul.f32 %v3501, %v3508
        %v3513 = vmul.f32 %v3477, %v3509
        %v3514 = vmul.f32 %v3478, %v3510
        %v3515 = vmul.f32 %v3479, %v3511
        %v3516 = vmul.f32 %v3480, %v3512
        %vm3517 = vcmask 15360
        %v3518 = vsel %vm3517, %v3513, 0.0
        %v3519 = vsel %vm3517, %v3514, 0.0
        %v3520 = vadd.f32 %v3518, %v3519
        %v3521 = vsel %vm3517, %v3515, 0.0
        %v3522 = vadd.f32 %v3520, %v3521
        %v3523 = vsel %vm3517, %v3516, 0.0
        %v3524 = vadd.f32 %v3522, %v3523
        %v3525 = vrot.slane %v3524, 4
        %v3526 = vadd.f32 %v3524, %v3525
        %v3527 = vrot.slane %v3526, 2
        %v3528 = vadd.f32 %v3526, %v3527
        %v3529 = vrot.slane %v3528, 1
        %v3530 = vadd.f32 %v3528, %v3529
        %v3531 = vadd.f32 %v3530, %v3481
        %v3532 = vmax.f32 %v3531, 0.0
        %v3533 = vperm.slane %v3532, 0
        %v3534 = vmul.f32 %v3482, %v3533
        %v3535 = vmul.f32 %v3483, %v3533
        %v3536 = vmul.f32 %v3484, %v3533
        %v3537 = vmul.f32 %v3485, %v3533
        %v3538 = vsel %vm3517, %v3534, 0.0
        %3539 = vadd.xlane.f32.xlu0 %v3538
        %v3540 = vpop.xlane.xlu0 %3539
        %v3541 = vsel %vm3517, %v3535, 0.0
        %3542 = vadd.xlane.f32.xlu0 %v3541
        %v3543 = vpop.xlane.xlu0 %3542
        %v3544 = vsel %vm3517, %v3536, 0.0
        %3545 = vadd.xlane.f32.xlu0 %v3544
        %v3546 = vpop.xlane.xlu0 %3545
        %v3547 = vsel %vm3517, %v3537, 0.0
        %3548 = vadd.xlane.f32.xlu0 %v3547
        %v3549 = vpop.xlane.xlu0 %3548
        %v3550 = vadd.f32 %v3540, %v3486
        %v3551 = vadd.f32 %v3543, %v3487
        %v3552 = vadd.f32 %v3546, %v3488
        %v3553 = vadd.f32 %v3549, %v3489
        %v3554 = vxor.u32 %v3550, 2147483648
        %v3555 = vxor.u32 %v3551, 2147483648
        %v3556 = vxor.u32 %v3552, 2147483648
        %v3557 = vxor.u32 %v3553, 2147483648
        %v3558 = vmul.f32 %v3554, 1.442695
        %v3559 = vpow.pop %v3558
        %v3560 = vmul.f32 %v3555, 1.442695
        %v3561 = vpow.pop %v3560
        %v3562 = vmul.f32 %v3556, 1.442695
        %v3563 = vpow.pop %v3562
        %v3564 = vmul.f32 %v3557, 1.442695
        %v3565 = vpow.pop %v3564
        %v3566 = vadd.f32 %v3559, 1.0
        %v3567 = vadd.f32 %v3561, 1.0
        %v3568 = vadd.f32 %v3563, 1.0
        %v3569 = vadd.f32 %v3565, 1.0
        %v3570 = vrcp.pop %v3566
        %v3571 = vmul.f32 %v3566, %v3570
        %v3572 = vsub.f32 1.0, %v3571
        %v3573 = vmul.f32 %v3570, %v3572
        %v3574 = vadd.f32 %v3570, %v3573
        %vm3575 = vweird.f32 %v3566
        %vm3576 = vweird.f32 %v3570
        %vm3577 = vmor %vm3575, %vm3576
        %v3578 = vsel %vm3577, %v3570, %v3574
        %v3579 = vand.u32 2147483647, %v3566
        %vm3580 = vcmp.eq.f32.partialorder %v3579, 8.507059e+37
        %v3581 = vand.u32 %v3566, 2147483648
        %v3582 = vor.u32 1.1754944e-38, %v3581
        %v3583 = vsel %vm3580, %v3582, %v3578
        %v3584 = vmul.f32 1.0, %v3583
        %v3585 = vrcp.pop %v3567
        %v3586 = vmul.f32 %v3567, %v3585
        %v3587 = vsub.f32 1.0, %v3586
        %v3588 = vmul.f32 %v3585, %v3587
        %v3589 = vadd.f32 %v3585, %v3588
        %vm3590 = vweird.f32 %v3567
        %vm3591 = vweird.f32 %v3585
        %vm3592 = vmor %vm3590, %vm3591
        %v3593 = vsel %vm3592, %v3585, %v3589
        %v3594 = vand.u32 2147483647, %v3567
        %vm3595 = vcmp.eq.f32.partialorder %v3594, 8.507059e+37
        %v3596 = vand.u32 %v3567, 2147483648
        %v3597 = vor.u32 1.1754944e-38, %v3596
        %v3598 = vsel %vm3595, %v3597, %v3593
        %v3599 = vmul.f32 1.0, %v3598
        %v3600 = vrcp.pop %v3568
        %v3601 = vmul.f32 %v3568, %v3600
        %v3602 = vsub.f32 1.0, %v3601
        %v3603 = vmul.f32 %v3600, %v3602
        %v3604 = vadd.f32 %v3600, %v3603
        %vm3605 = vweird.f32 %v3568
        %vm3606 = vweird.f32 %v3600
        %vm3607 = vmor %vm3605, %vm3606
        %v3608 = vsel %vm3607, %v3600, %v3604
        %v3609 = vand.u32 2147483647, %v3568
        %vm3610 = vcmp.eq.f32.partialorder %v3609, 8.507059e+37
        %v3611 = vand.u32 %v3568, 2147483648
        %v3612 = vor.u32 1.1754944e-38, %v3611
        %v3613 = vsel %vm3610, %v3612, %v3608
        %v3614 = vmul.f32 1.0, %v3613
        %v3615 = vrcp.pop %v3569
        %v3616 = vmul.f32 %v3569, %v3615
        %v3617 = vsub.f32 1.0, %v3616
        %v3618 = vmul.f32 %v3615, %v3617
        %v3619 = vadd.f32 %v3615, %v3618
        %vm3620 = vweird.f32 %v3569
        %vm3621 = vweird.f32 %v3615
        %vm3622 = vmor %vm3620, %vm3621
        %v3623 = vsel %vm3622, %v3615, %v3619
        %v3624 = vand.u32 2147483647, %v3569
        %vm3625 = vcmp.eq.f32.partialorder %v3624, 8.507059e+37
        %v3626 = vand.u32 %v3569, 2147483648
        %v3627 = vor.u32 1.1754944e-38, %v3626
        %v3628 = vsel %vm3625, %v3627, %v3623
        %v3629 = vmul.f32 1.0, %v3628
        %3631 = vset.pattern.permute.xlu0 0
        %3632 = vperm.xlu0 %3631, %v3584
        %v3633 = vpop.permute.xlu0 %3632
        %3636 = vset.pattern.permute.xlu0 0
        %3637 = vperm.xlu0 %3636, %v3599
        %v3638 = vpop.permute.xlu0 %3637
        %3641 = vset.pattern.permute.xlu0 0
        %3642 = vperm.xlu0 %3641, %v3614
        %v3643 = vpop.permute.xlu0 %3642
        %3646 = vset.pattern.permute.xlu0 0
        %3647 = vperm.xlu0 %3646, %v3629
        %v3648 = vpop.permute.xlu0 %3647
        %v3650 = vmul.f32 %v3297, %v3633
        %v3651 = vmul.f32 %v3354, %v3633
        %v3652 = vmul.f32 %v3299, %v3638
        %v3653 = vmul.f32 %v3356, %v3638
        %v3654 = vmul.f32 %v3302, %v3643
        %v3655 = vmul.f32 %v3359, %v3643
        %v3656 = vmul.f32 %v3304, %v3648
        %v3657 = vmul.f32 %v3361, %v3648
        %v3658 = vadd.f32 %v427, %v3650
        %v3659 = vadd.f32 %v428, %v3651
        %v3660 = vadd.f32 %v431, %v3652
        %v3661 = vadd.f32 %v432, %v3653
        %v3662 = vadd.f32 %v435, %v3654
        %v3663 = vadd.f32 %v436, %v3655
        %v3664 = vadd.f32 %v439, %v3656
        %v3665 = vadd.f32 %v440, %v3657
        %3666 = vst [vmem:[%s423] sm:$0xff] %v3658
        %3667 = vst [vmem:[%s423 + $0x8] sm:$0xff] %v3659
        %3668 = vst [vmem:[%s423 + $0x20] sm:$0xff] %v3660
        %3669 = vst [vmem:[%s423 + $0x28] sm:$0xff] %v3661
        %3670 = vst [vmem:[%s423 + $0x40] sm:$0xff] %v3662
        %3671 = vst [vmem:[%s423 + $0x48] sm:$0xff] %v3663
        %3672 = vst [vmem:[%s423 + $0x60] sm:$0xff] %v3664
        %3673 = vst [vmem:[%s423 + $0x68] sm:$0xff] %v3665
        %v3674 = vadd.f32 %v3411, %v3468
        %3675 = vadd.xlane.f32.xlu0 %v3674
        %v3676 = vpop.xlane.xlu0 %3675
        %v3677 = vadd.f32 %v3413, %v3470
        %3678 = vadd.xlane.f32.xlu0 %v3677
        %v3679 = vpop.xlane.xlu0 %3678
        %v3680 = vadd.f32 %v3416, %v3473
        %3681 = vadd.xlane.f32.xlu0 %v3680
        %v3682 = vpop.xlane.xlu0 %3681
        %v3683 = vadd.f32 %v3418, %v3475
        %3684 = vadd.xlane.f32.xlu0 %v3683
        %v3685 = vpop.xlane.xlu0 %3684
        %v3686 = vmul.f32 %v3676, %v3508
        %v3687 = vmul.f32 %v3679, %v3508
        %v3688 = vmul.f32 %v3682, %v3508
        %v3689 = vmul.f32 %v3685, %v3508
        %v3690 = vmul.f32 %v3477, %v3686
        %v3691 = vmul.f32 %v3478, %v3687
        %v3692 = vmul.f32 %v3479, %v3688
        %v3693 = vmul.f32 %v3480, %v3689
        %v3694 = vsel %vm3517, %v3690, 0.0
        %v3695 = vsel %vm3517, %v3691, 0.0
        %v3696 = vadd.f32 %v3694, %v3695
        %v3697 = vsel %vm3517, %v3692, 0.0
        %v3698 = vadd.f32 %v3696, %v3697
        %v3699 = vsel %vm3517, %v3693, 0.0
        %v3700 = vadd.f32 %v3698, %v3699
        %v3701 = vrot.slane %v3700, 4
        %v3702 = vadd.f32 %v3700, %v3701
        %v3703 = vrot.slane %v3702, 2
        %v3704 = vadd.f32 %v3702, %v3703
        %v3705 = vrot.slane %v3704, 1
        %v3706 = vadd.f32 %v3704, %v3705
        %v3707 = vadd.f32 %v3706, %v3481
        %v3708 = vmax.f32 %v3707, 0.0
        %v3709 = vperm.slane %v3708, 0
        %v3710 = vmul.f32 %v3482, %v3709
        %v3711 = vmul.f32 %v3483, %v3709
        %v3712 = vmul.f32 %v3484, %v3709
        %v3713 = vmul.f32 %v3485, %v3709
        %v3714 = vsel %vm3517, %v3710, 0.0
        %3715 = vadd.xlane.f32.xlu0 %v3714
        %v3716 = vpop.xlane.xlu0 %3715
        %v3717 = vsel %vm3517, %v3711, 0.0
        %3718 = vadd.xlane.f32.xlu0 %v3717
        %v3719 = vpop.xlane.xlu0 %3718
        %v3720 = vsel %vm3517, %v3712, 0.0
        %3721 = vadd.xlane.f32.xlu0 %v3720
        %v3722 = vpop.xlane.xlu0 %3721
        %v3723 = vsel %vm3517, %v3713, 0.0
        %3724 = vadd.xlane.f32.xlu0 %v3723
        %v3725 = vpop.xlane.xlu0 %3724
        %v3726 = vadd.f32 %v3716, %v3486
        %v3727 = vadd.f32 %v3719, %v3487
        %v3728 = vadd.f32 %v3722, %v3488
        %v3729 = vadd.f32 %v3725, %v3489
        %v3730 = vxor.u32 %v3726, 2147483648
        %v3731 = vxor.u32 %v3727, 2147483648
        %v3732 = vxor.u32 %v3728, 2147483648
        %v3733 = vxor.u32 %v3729, 2147483648
        %v3734 = vmul.f32 %v3730, 1.442695
        %v3735 = vpow.pop %v3734
        %v3736 = vmul.f32 %v3731, 1.442695
        %v3737 = vpow.pop %v3736
        %v3738 = vmul.f32 %v3732, 1.442695
        %v3739 = vpow.pop %v3738
        %v3740 = vmul.f32 %v3733, 1.442695
        %v3741 = vpow.pop %v3740
        %v3742 = vadd.f32 %v3735, 1.0
        %v3743 = vadd.f32 %v3737, 1.0
        %v3744 = vadd.f32 %v3739, 1.0
        %v3745 = vadd.f32 %v3741, 1.0
        %v3746 = vrcp.pop %v3742
        %v3747 = vmul.f32 %v3742, %v3746
        %v3748 = vsub.f32 1.0, %v3747
        %v3749 = vmul.f32 %v3746, %v3748
        %v3750 = vadd.f32 %v3746, %v3749
        %vm3751 = vweird.f32 %v3742
        %vm3752 = vweird.f32 %v3746
        %vm3753 = vmor %vm3751, %vm3752
        %v3754 = vsel %vm3753, %v3746, %v3750
        %v3755 = vand.u32 2147483647, %v3742
        %vm3756 = vcmp.eq.f32.partialorder %v3755, 8.507059e+37
        %v3757 = vand.u32 %v3742, 2147483648
        %v3758 = vor.u32 1.1754944e-38, %v3757
        %v3759 = vsel %vm3756, %v3758, %v3754
        %v3760 = vmul.f32 1.0, %v3759
        %v3761 = vrcp.pop %v3743
        %v3762 = vmul.f32 %v3743, %v3761
        %v3763 = vsub.f32 1.0, %v3762
        %v3764 = vmul.f32 %v3761, %v3763
        %v3765 = vadd.f32 %v3761, %v3764
        %vm3766 = vweird.f32 %v3743
        %vm3767 = vweird.f32 %v3761
        %vm3768 = vmor %vm3766, %vm3767
        %v3769 = vsel %vm3768, %v3761, %v3765
        %v3770 = vand.u32 2147483647, %v3743
        %vm3771 = vcmp.eq.f32.partialorder %v3770, 8.507059e+37
        %v3772 = vand.u32 %v3743, 2147483648
        %v3773 = vor.u32 1.1754944e-38, %v3772
        %v3774 = vsel %vm3771, %v3773, %v3769
        %v3775 = vmul.f32 1.0, %v3774
        %v3776 = vrcp.pop %v3744
        %v3777 = vmul.f32 %v3744, %v3776
        %v3778 = vsub.f32 1.0, %v3777
        %v3779 = vmul.f32 %v3776, %v3778
        %v3780 = vadd.f32 %v3776, %v3779
        %vm3781 = vweird.f32 %v3744
        %vm3782 = vweird.f32 %v3776
        %vm3783 = vmor %vm3781, %vm3782
        %v3784 = vsel %vm3783, %v3776, %v3780
        %v3785 = vand.u32 2147483647, %v3744
        %vm3786 = vcmp.eq.f32.partialorder %v3785, 8.507059e+37
        %v3787 = vand.u32 %v3744, 2147483648
        %v3788 = vor.u32 1.1754944e-38, %v3787
        %v3789 = vsel %vm3786, %v3788, %v3784
        %v3790 = vmul.f32 1.0, %v3789
        %v3791 = vrcp.pop %v3745
        %v3792 = vmul.f32 %v3745, %v3791
        %v3793 = vsub.f32 1.0, %v3792
        %v3794 = vmul.f32 %v3791, %v3793
        %v3795 = vadd.f32 %v3791, %v3794
        %vm3796 = vweird.f32 %v3745
        %vm3797 = vweird.f32 %v3791
        %vm3798 = vmor %vm3796, %vm3797
        %v3799 = vsel %vm3798, %v3791, %v3795
        %v3800 = vand.u32 2147483647, %v3745
        %vm3801 = vcmp.eq.f32.partialorder %v3800, 8.507059e+37
        %v3802 = vand.u32 %v3745, 2147483648
        %v3803 = vor.u32 1.1754944e-38, %v3802
        %v3804 = vsel %vm3801, %v3803, %v3799
        %v3805 = vmul.f32 1.0, %v3804
        %3807 = vset.pattern.permute.xlu0 0
        %3808 = vperm.xlu0 %3807, %v3760
        %v3809 = vpop.permute.xlu0 %3808
        %3812 = vset.pattern.permute.xlu0 0
        %3813 = vperm.xlu0 %3812, %v3775
        %v3814 = vpop.permute.xlu0 %3813
        %3817 = vset.pattern.permute.xlu0 0
        %3818 = vperm.xlu0 %3817, %v3790
        %v3819 = vpop.permute.xlu0 %3818
        %3822 = vset.pattern.permute.xlu0 0
        %3823 = vperm.xlu0 %3822, %v3805
        %v3824 = vpop.permute.xlu0 %3823
        %v3826 = vmul.f32 %v3411, %v3809
        %v3827 = vmul.f32 %v3468, %v3809
        %v3828 = vmul.f32 %v3413, %v3814
        %v3829 = vmul.f32 %v3470, %v3814
        %v3830 = vmul.f32 %v3416, %v3819
        %v3831 = vmul.f32 %v3473, %v3819
        %v3832 = vmul.f32 %v3418, %v3824
        %v3833 = vmul.f32 %v3475, %v3824
        %v3834 = vadd.f32 %v429, %v3826
        %v3835 = vadd.f32 %v430, %v3827
        %v3836 = vadd.f32 %v433, %v3828
        %v3837 = vadd.f32 %v434, %v3829
        %v3838 = vadd.f32 %v437, %v3830
        %v3839 = vadd.f32 %v438, %v3831
        %v3840 = vadd.f32 %v441, %v3832
        %v3841 = vadd.f32 %v442, %v3833
        %3842 = vst [vmem:[%s423 + $0x10] sm:$0xff] %v3834
        %3843 = vst [vmem:[%s423 + $0x18] sm:$0xff] %v3835
        %3844 = vst [vmem:[%s423 + $0x30] sm:$0xff] %v3836
        %3845 = vst [vmem:[%s423 + $0x38] sm:$0xff] %v3837
        %3846 = vst [vmem:[%s423 + $0x50] sm:$0xff] %v3838
        %3847 = vst [vmem:[%s423 + $0x58] sm:$0xff] %v3839
        %3848 = vst [vmem:[%s423 + $0x70] sm:$0xff] %v3840
        %3849 = vst [vmem:[%s423 + $0x78] sm:$0xff] %v3841
        %s3850 = sand.u32 %s273, 1
        %s3851 = scalar_lea.sflag [#allocation5], %s3850
        %s3852 = sand.u32 %s273, 1
        %s3853 = smul.addr %s3852, 128
        %s3854 = scalar_lea.vmem [#allocation8], %s3853
        // Predicated region
        $region73: #{tpu_custom_call.1} parent=63 // pred_check
          %p3855 = pneg %p283
        $region74: #{tpu_custom_call.1} parent=63 // pred_check_branch
          %3857 = sbr.rel (%p3855) target = $region76
        $region75: #{tpu_custom_call.1} parent=63 // pred_region
          %s3858 = smul.u32 4, %s29
          %3860 = vsyncadd %s3851, 0
          %s3861 = smul.addr %s3858, 8
          %s3862 = scalar_lea.hbm %s11, %s3861
          %s3863 = sshll.u32 %s3854, 4
          %s3864 = int_to_ptr.vmem [resolvable:$true] %s3863
          %s3865 = sshll.u32 %s3862, 4
          %s3866 = int_to_ptr.hbm [resolvable:$true] %s3865
          %3871 = dma.vmem_to_hbm [thread:$0]  %s3864, 2048, %s3866, %s3851, 512, 1024, 32
        $region76: #{tpu_custom_call.1} parent=63 // pred_fallthru
          _
      $region64: #{tpu_custom_call.1} parent=5 // pred_fallthru
        _
      %p3872 = scmp.le.s32.totalorder 2, %s24
      // Predicated region
      $region77: #{tpu_custom_call.1} parent=5 // pred_check
        %p3873 = pneg %p3872
      $region78: #{tpu_custom_call.1} parent=5 // pred_check_branch
        %3875 = sbr.rel (%p3873) target = $region80
      $region79: #{tpu_custom_call.1} parent=5 // pred_region
        %s3876 = ssub.s32 %s24, 2
        // Predicated region
        $region81: #{tpu_custom_call.1} parent=79 // pred_check
          %p3877 = pneg %p289
        $region82: #{tpu_custom_call.1} parent=79 // pred_check_branch
          %3879 = sbr.rel (%p3877) target = $region84
        $region83: #{tpu_custom_call.1} parent=79 // pred_region
          %s3880 = sand.u32 %s274, 1
          %s3881 = scalar_lea.sflag [#allocation5], %s3880
          %s3882 = sand.u32 %s274, 1
          %s3883 = smul.addr %s3882, 128
          %s3884 = scalar_lea.vmem [#allocation8], %s3883
          %3886 = dma.done %s3881, 2048
        $region84: #{tpu_custom_call.1} parent=79 // pred_fallthru
          _
      $region80: #{tpu_custom_call.1} parent=5 // pred_fallthru
        _
    $region6: #{tpu_custom_call.1} parent=1 // loop_footer
      %s28 = sadd.s32 1, %s24
    $region7: #{tpu_custom_call.1} parent=1 // loop_footer_branch
      %23 = sbr.rel target = $region3
    $region8: #{tpu_custom_call.1} parent=1 // loop_exit
      _
    %3887 = vsyncpa [#allocation4], 1
    %s3888 = scalar_lea.sflag [#allocation4], 1
    %3889 = vsyncpa %s3888, 1
    %3890 = vsyncpa [#allocation7], 1
    %3891 = vsyncpa [#allocation5], 1
    %s3892 = scalar_lea.sflag [#allocation5], 1
    %3893 = vsyncpa %s3892, 1

</llo_original>
